<compile_context>
chip_gen: v6e
topology: v6e:2x2x1
jax: 0.10.0
libtpu: 0.0.40
codegen_flags: <defaults>
</compile_context>

<pallas_src>
import functools
import math

import numpy as np
import jax
import jax.numpy as jnp
from jax.experimental import pallas as pl
from jax.experimental.pallas import tpu as pltpu

_VMEM_LIMIT = 32 * 1024 * 1024     # explicit scoped-VMEM budget (fits v5e..v7x)


def _round_up(x, m):
    return ((x + m - 1) // m) * m


def _cparams(semantics):
    return pltpu.CompilerParams(dimension_semantics=semantics,
                                vmem_limit_bytes=_VMEM_LIMIT)


def _choose_tiles(n, tn_max=1024, min_blocks=2):
    """(padded_n, tile_n): largest 128-multiple tile <= tn_max, preferring at
    least `min_blocks` grid steps so v7x's two TensorCores both get work."""
    npad0 = _round_up(max(n, 1), 128)
    tn = min(tn_max, max(128, _round_up(npad0 // min_blocks, 128)))
    npad = _round_up(npad0, tn)
    return npad, tn


# ----------------------------------------------------------------------------
# Generic tiled matmul + bias + activation (+ fused residual) kernel
# ----------------------------------------------------------------------------
def _mm_kernel(a_ref, b_ref, bias_ref, *rest, leaky, has_res):
    if has_res:
        res_ref, o_ref = rest
    else:
        (o_ref,) = rest
    acc = jnp.dot(a_ref[...], b_ref[...], preferred_element_type=jnp.float32)
    acc = acc + bias_ref[...]                      # (M,1) broadcast over lanes
    if leaky:
        acc = jnp.where(acc >= 0.0, acc, 0.1 * acc)
    if has_res:
        acc = acc + res_ref[...].astype(jnp.float32)   # fused shortcut add
    o_ref[...] = acc.astype(o_ref.dtype)


def pallas_matmul_bias_act(a, b, bias=None, leaky=False, residual=None,
                           out_dtype=jnp.bfloat16, tn_max=1024):
    """out = act(a @ b + bias) (+ residual).  a:(M,K), b:(K,N); the large N
    axis is the lane dim, tiled and marked "parallel"."""
    M, K = a.shape
    K2, N = b.shape
    assert K == K2
    if bias is None:
        bias = jnp.zeros((M, 1), jnp.float32)
    bias = bias.reshape(M, 1).astype(jnp.float32)

    npad, tn = _choose_tiles(N, tn_max)
    if npad != N:
        b = jnp.pad(b, ((0, 0), (0, npad - N)))
        if residual is not None:
            residual = jnp.pad(residual, ((0, 0), (0, npad - N)))
    a = a.astype(jnp.bfloat16)                     # bf16 MXU operands
    b = b.astype(jnp.bfloat16)

    in_specs = [pl.BlockSpec((M, K), lambda n: (0, 0)),
                pl.BlockSpec((K, tn), lambda n: (0, n)),
                pl.BlockSpec((M, 1), lambda n: (0, 0))]
    args = [a, b, bias]
    if residual is not None:
        in_specs.append(pl.BlockSpec((M, tn), lambda n: (0, n)))
        args.append(residual.astype(jnp.bfloat16))

    out = pl.pallas_call(
        functools.partial(_mm_kernel, leaky=leaky,
                          has_res=residual is not None),
        out_shape=jax.ShapeDtypeStruct((M, npad), out_dtype),
        grid=(npad // tn,),
        in_specs=in_specs,
        out_specs=pl.BlockSpec((M, tn), lambda n: (0, n)),
        compiler_params=_cparams(("parallel",)),
    )(*args)
    return out[:, :N] if npad != N else out


# ----------------------------------------------------------------------------
# KxK stride-1 conv: flat-shift, single fused MXU pass (K = KH*KW*Cpad)
# ----------------------------------------------------------------------------
def _conv_kxk_kernel(w_ref, xf_ref, bias_ref, o_ref, *, shifts, nout, leaky):
    """Stack the KH*KW statically shifted slices of the flat padded input along
    K and run one (OC, KK*C) @ (KK*C, nout) matmul.  Output columns >= nout are
    never written (garbage) and are stripped by the caller's reshape+slice."""
    stacked = jnp.concatenate([xf_ref[:, s:s + nout] for s in shifts], axis=0)
    acc = jnp.dot(w_ref[...], stacked, preferred_element_type=jnp.float32)
    acc = acc + bias_ref[...]
    if leaky:
        acc = jnp.where(acc >= 0.0, acc, 0.1 * acc)
    o_ref[:, :nout] = acc.astype(o_ref.dtype)


def conv_kxk_pallas(x, p):
    """KxK stride-1 conv on (C, B, H, W) bf16 activations -> (OC, B, OH, OW)."""
    C, B, H, W = x.shape
    ksize, pad, leaky = p['ksize'], p['pad'], p['leaky']
    assert p['stride'] == 1   # TODO(synk): strided conv not needed by this cfg
    cp = p['cin_pad']
    Hp, Wp = H + 2 * pad, W + 2 * pad
    OH, OW = Hp - ksize + 1, Wp - ksize + 1
    # One pad op covers channel alignment (8 sublanes) and the spatial halo.
    xp = jnp.pad(x, ((0, cp - C), (0, 0), (pad, pad), (pad, pad)))
    nfull = B * Hp * Wp
    xf = xp.reshape(cp, nfull)
    shifts = tuple(kh * Wp + kw for kh in range(ksize) for kw in range(ksize))
    nout = nfull - shifts[-1]          # every valid output column is < nout
    OC = p['w2d'].shape[0]
    ocb = OC // 2 if OC % 16 == 0 else OC   # split rows so both TCs get work

    out = pl.pallas_call(
        functools.partial(_conv_kxk_kernel, shifts=shifts, nout=nout,
                          leaky=leaky),
        out_shape=jax.ShapeDtypeStruct((OC, nfull), jnp.bfloat16),
        grid=(OC // ocb,),
        in_specs=[pl.BlockSpec((ocb, len(shifts) * cp), lambda o: (o, 0)),
                  pl.BlockSpec((cp, nfull), lambda o: (0, 0)),
                  pl.BlockSpec((ocb, 1), lambda o: (o, 0))],
        out_specs=pl.BlockSpec((ocb, nfull), lambda o: (o, 0)),
        compiler_params=_cparams(("parallel",)),
    )(p['w2d'], xf.astype(jnp.bfloat16), p['bias'])
    # TODO(synk): at real YOLO resolutions tile the flat N axis (with a halo)
    # instead of keeping the whole padded slab resident, and fold this crop
    # into the consumer's BlockSpec index_map.
    return out.reshape(OC, B, Hp, Wp)[:, :, :OH, :OW]


# ----------------------------------------------------------------------------
# 2x2 / stride-2 maxpool: free wrapper reshapes + tiny per-row selection dots
# ----------------------------------------------------------------------------
@functools.lru_cache(maxsize=None)
def _pool_sel(w):
    ow = w // 2
    se = np.zeros((w, ow), np.float32)
    so = np.zeros((w, ow), np.float32)
    for j in range(ow):
        se[2 * j, j] = 1.0
        so[2 * j + 1, j] = 1.0
    return jnp.asarray(se, jnp.bfloat16), jnp.asarray(so, jnp.bfloat16)


def _maxpool_kernel(x_ref, se_ref, so_ref, o_ref):
    w2 = x_ref.shape[1]
    w = w2 // 2
    vmax = jnp.maximum(x_ref[:, :w], x_ref[:, w:])          # max of row pair
    he = jnp.dot(vmax, se_ref[...], preferred_element_type=jnp.float32)
    ho = jnp.dot(vmax, so_ref[...], preferred_element_type=jnp.float32)
    o_ref[...] = jnp.maximum(he, ho).astype(o_ref.dtype)    # max of col pair


def pallas_maxpool_2x2(x):
    """Maxpool 2x2/2.  Wrapper reshape (free, contiguous) exposes each output
    row's two input rows side by side; column selection uses (W, W/2) 0/1
    matrices -- linear in the spatial size (no O(N^2) gather matrix)."""
    C, B, H, W = x.shape
    OH, OW = H // 2, W // 2
    R = C * B * OH
    x2 = x.reshape(R, 2 * W)      # row (c,b,oh) = [input row 2oh | row 2oh+1]
    se, so = _pool_sel(W)
    rb = R // 2 if R % 16 == 0 else R
    out = pl.pallas_call(
        _maxpool_kernel,
        out_shape=jax.ShapeDtypeStruct((R, OW), x.dtype),
        grid=(R // rb,),
        in_specs=[pl.BlockSpec((rb, 2 * W), lambda r: (r, 0)),
                  pl.BlockSpec((W, OW), lambda r: (0, 0)),
                  pl.BlockSpec((W, OW), lambda r: (0, 0))],
        out_specs=pl.BlockSpec((rb, OW), lambda r: (r, 0)),
        compiler_params=_cparams(("parallel",)),
    )(x2, se, so)
    return out.reshape(C, B, OH, OW)


# ----------------------------------------------------------------------------
# Bilinear 2x upsample (align_corners=False) as one matmul vs precomputed kron
# ----------------------------------------------------------------------------
def _interp_matrix(n_in, scale):
    n_out = n_in * scale
    m = np.zeros((n_out, n_in), dtype=np.float32)
    for o in range(n_out):
        src = max((o + 0.5) / scale - 0.5, 0.0)
        i0 = min(int(np.floor(src)), n_in - 1)
        i1 = min(i0 + 1, n_in - 1)
        w1 = src - i0
        m[o, i0] += 1.0 - w1
        m[o, i1] += w1
    return m


@functools.lru_cache(maxsize=None)
def _upsample_kron_t(h, w, scale):
    return jnp.asarray(
        np.kron(_interp_matrix(h, scale), _interp_matrix(w, scale)).T,
        jnp.bfloat16)


def upsample_bilinear_pallas(x, scale):
    """out[c,b] = Uh @ x[c,b] @ Uw^T as one lane-dense matmul against the
    precomputed bf16 kron(Uh, Uw)^T (1 read + 1 write).
    TODO(synk): quadratic in H*W; switch to a separable two-pass form at real
    YOLO resolutions (the kron would not fit v7x's 64 MiB VMEM at 52x52)."""
    C, B, H, W = x.shape
    out = pallas_matmul_bias_act(x.reshape(C * B, H * W),
                                 _upsample_kron_t(H, W, scale))
    return out.reshape(C, B, scale * H, scale * W)


# ----------------------------------------------------------------------------
# YOLO head: fused (split-K) 1x1 conv + predict_transform (+ standalone path)
# ----------------------------------------------------------------------------
@functools.lru_cache(maxsize=None)
def _yolo_meta(anchors, num_classes, stride):
    """Per-channel [scale, is_exp, add_gx, add_gy] rows for predict_transform."""
    na = len(anchors)
    bbox = 5 + num_classes
    meta = np.zeros((na * bbox, 4), np.float32)
    for a in range(na):
        for attr in range(bbox):
            ch = a * bbox + attr
            if attr in (0, 1):           # x, y: sigmoid + grid offset, *stride
                meta[ch, 0] = stride
                meta[ch, 2 + attr] = 1.0
            elif attr in (2, 3):         # w, h: exp * anchor
                meta[ch, 0] = anchors[a][attr - 2]
                meta[ch, 1] = 1.0
            else:                        # objectness / class scores: sigmoid
                meta[ch, 0] = 1.0
    return jnp.asarray(meta)


def _yolo_epilogue(acc, meta_ref, col0, *, G, stride, log2g):
    col = col0 + jax.lax.broadcasted_iota(jnp.int32, acc.shape, 1)
    g = col & (G * G - 1)                       # spatial cell (G is a pow of 2)
    gx = (g & (G - 1)).astype(jnp.float32)
    gy = (g >> log2g).astype(jnp.float32)
    scale = meta_ref[:, 0:1]
    is_exp = meta_ref[:, 1:2] > 0.5
    fx = meta_ref[:, 2:3]
    fy = meta_ref[:, 3:4]
    # One transcendental + two approx EUP reciprocals (instead of 2 exps + div)
    e = jnp.exp(-acc)
    sig = pl.reciprocal(1.0 + e, approx=True)
    ex = pl.reciprocal(e, approx=True)
    t = jnp.where(is_exp, ex, sig)
    return t * scale + stride * (fx * gx + fy * gy)


def _head_yolo_kernel(*refs, n_in, G, stride, log2g, tn):
    det_ref, meta_ref, bias_ref = refs[-1], refs[-2], refs[-3]
    acc = jnp.dot(refs[0][...], refs[1][...],
                  preferred_element_type=jnp.float32)
    if n_in == 2:          # route concat folded in as a second (w, x) pair
        acc = acc + jnp.dot(refs[2][...], refs[3][...],
                            preferred_element_type=jnp.float32)
    acc = acc + bias_ref[...]
    det_ref[...] = _yolo_epilogue(acc, meta_ref, pl.program_id(0) * tn,
                                  G=G, stride=stride, log2g=log2g)


def _det_reorder(det2d, na, bbox, B, G):
    # (na*bbox, B*G*G) -> (B, G*G*na, bbox), matching torch view/transpose/view.
    det = det2d.reshape(na, bbox, B, G * G).transpose(2, 3, 0, 1)
    return det.reshape(B, G * G * na, bbox)


def head_conv_yolo_pallas(xs, ws, bias, anchors, num_classes, inp_dim):
    """Detection-head 1x1 conv (optionally over a deferred route concat, as a
    split-K matmul) fused with predict_transform; the raw conv output is never
    materialized in HBM."""
    B, G = xs[0].shape[1], xs[0].shape[2]
    assert (G & (G - 1)) == 0
    stride = inp_dim // G
    na, bbox = len(anchors), 5 + num_classes
    CH = na * bbox
    N = B * G * G
    npad, tn = _choose_tiles(N)
    meta = _yolo_meta(tuple(anchors), num_classes, stride)

    in_specs, args = [], []
    for w, x in zip(ws, xs):
        ci = w.shape[1]
        x2 = x.reshape(ci, N)
        if npad != N:
            x2 = jnp.pad(x2, ((0, 0), (0, npad - N)))
        in_specs += [pl.BlockSpec((CH, ci), lambda n: (0, 0)),
                     pl.BlockSpec((ci, tn), lambda n: (0, n))]
        args += [w.astype(jnp.bfloat16), x2.astype(jnp.bfloat16)]
    in_specs += [pl.BlockSpec((CH, 1), lambda n: (0, 0)),
                 pl.BlockSpec((CH, 4), lambda n: (0, 0))]
    args += [bias.reshape(CH, 1).astype(jnp.float32), meta]

    det = pl.pallas_call(
        functools.partial(_head_yolo_kernel, n_in=len(xs), G=G,
                          stride=float(stride), log2g=int(math.log2(G)),
                          tn=tn),
        out_shape=jax.ShapeDtypeStruct((CH, npad), jnp.float32),
        grid=(npad // tn,),
        in_specs=in_specs,
        out_specs=pl.BlockSpec((CH, tn), lambda n: (0, n)),
        compiler_params=_cparams(("parallel",)),
    )(*args)
    if npad != N:
        det = det[:, :N]
    return _det_reorder(det, na, bbox, B, G)


def _yolo_only_kernel(x_ref, meta_ref, det_ref, *, G, stride, log2g, tn):
    det_ref[...] = _yolo_epilogue(x_ref[...].astype(jnp.float32), meta_ref,
                                  pl.program_id(0) * tn,
                                  G=G, stride=stride, log2g=log2g)


def predict_transform_pallas(x, inp_dim, anchors, num_classes):
    """Standalone predict_transform (fallback when the head conv is not fused)."""
    CH, B, G, _ = x.shape
    assert (G & (G - 1)) == 0
    stride = inp_dim // G
    na, bbox = len(anchors), 5 + num_classes
    N = B * G * G
    npad, tn = _choose_tiles(N)
    x2 = x.reshape(CH, N).astype(jnp.float32)
    if npad != N:
        x2 = jnp.pad(x2, ((0, 0), (0, npad - N)))
    meta = _yolo_meta(tuple(anchors), num_classes, stride)
    det = pl.pallas_call(
        functools.partial(_yolo_only_kernel, G=G, stride=float(stride),
                          log2g=int(math.log2(G)), tn=tn),
        out_shape=jax.ShapeDtypeStruct((CH, npad), jnp.float32),
        grid=(npad // tn,),
        in_specs=[pl.BlockSpec((CH, tn), lambda n: (0, n)),
                  pl.BlockSpec((CH, 4), lambda n: (0, 0))],
        out_specs=pl.BlockSpec((CH, tn), lambda n: (0, n)),
        compiler_params=_cparams(("parallel",)),
    )(x2, meta)
    if npad != N:
        det = det[:, :N]
    return _det_reorder(det, na, bbox, B, G)


# ----------------------------------------------------------------------------
# Elementwise residual add (fallback; shortcuts are normally fused)
# ----------------------------------------------------------------------------
def _add_kernel(a_ref, b_ref, o_ref):
    o_ref[...] = (a_ref[...].astype(jnp.float32)
                  + b_ref[...].astype(jnp.float32)).astype(o_ref.dtype)


def pallas_add(x, y):
    C, B, H, W = x.shape
    a, b = x.reshape(C, B * H * W), y.reshape(C, B * H * W)
    out = pl.pallas_call(
        _add_kernel,
        out_shape=jax.ShapeDtypeStruct(a.shape, x.dtype),
        grid=(1,),
        in_specs=[pl.BlockSpec(a.shape, lambda i: (0, 0)),
                  pl.BlockSpec(a.shape, lambda i: (0, 0))],
        out_specs=pl.BlockSpec(a.shape, lambda i: (0, 0)),
        compiler_params=_cparams(("arbitrary",)),
    )(a, b)
    return out.reshape(C, B, H, W)


# ----------------------------------------------------------------------------
# Darknet config (in-script, equivalent to parse_cfg output) and params
# ----------------------------------------------------------------------------
BLOCKS = [
    {'type': 'net', 'height': '16', 'width': '16', 'channels': '3'},
    {'type': 'convolutional', 'batch_normalize': '1', 'filters': '8',
     'size': '3', 'stride': '1', 'pad': '1', 'activation': 'leaky'},
    {'type': 'maxpool', 'size': '2', 'stride': '2'},
    {'type': 'convolutional', 'batch_normalize': '1', 'filters': '16',
     'size': '3', 'stride': '1', 'pad': '1', 'activation': 'leaky'},
    {'type': 'convolutional', 'batch_normalize': '1', 'filters': '16',
     'size': '1', 'stride': '1', 'pad': '1', 'activation': 'leaky'},
    {'type': 'shortcut', 'from': '-2', 'activation': 'linear'},
    {'type': 'convolutional', 'filters': '21', 'size': '1', 'stride': '1',
     'pad': '1', 'activation': 'linear'},
    {'type': 'yolo', 'mask': '0,1,2', 'anchors': '10,14, 23,27, 37,58',
     'classes': '2', 'num': '3'},
    {'type': 'route', 'layers': '-3'},
    {'type': 'convolutional', 'batch_normalize': '1', 'filters': '8',
     'size': '1', 'stride': '1', 'pad': '1', 'activation': 'leaky'},
    {'type': 'upsample', 'stride': '2'},
    {'type': 'route', 'layers': '-1,-10'},
    {'type': 'convolutional', 'filters': '21', 'size': '1', 'stride': '1',
     'pad': '1', 'activation': 'linear'},
    {'type': 'yolo', 'mask': '0,1,2', 'anchors': '10,14, 23,27, 37,58',
     'classes': '2', 'num': '3'},
]


def build_params(blocks, key):
    params = []
    prev_filters = int(blocks[0].get('channels', 3))
    output_filters = []
    for index, blk in enumerate(blocks[1:]):
        p = None
        if blk['type'] == 'convolutional':
            bn = int(blk.get('batch_normalize', 0))
            filters = int(blk['filters'])
            ksize = int(blk['size'])
            stride = int(blk['stride'])
            pad = (ksize - 1) // 2 if int(blk['pad']) else 0
            key, kw, kg, kb, km, kv = jax.random.split(key, 6)
            w = 0.1 * jax.random.normal(
                kw, (filters, prev_filters, ksize, ksize), jnp.float32)
            if bn:
                gamma = 1.0 + 0.1 * jax.random.normal(kg, (filters,), jnp.float32)
                beta = 0.1 * jax.random.normal(kb, (filters,), jnp.float32)
                rmean = 0.1 * jax.random.normal(km, (filters,), jnp.float32)
                rvar = 1.0 + 0.1 * jnp.abs(
                    jax.random.normal(kv, (filters,), jnp.float32))
                scale = gamma / jnp.sqrt(rvar + 1e-5)
                bias = beta - rmean * scale
            else:
                scale = jnp.ones((filters,), jnp.float32)
                bias = 0.1 * jax.random.normal(kb, (filters,), jnp.float32)
            w_fold = w * scale[:, None, None, None]   # fold BN scale into W
            p = dict(ksize=ksize, stride=stride, pad=pad,
                     leaky=(blk['activation'] == 'leaky'),
                     bias=bias.reshape(filters, 1).astype(jnp.float32))
            if ksize == 1:
                p['w2d'] = w_fold.reshape(filters, prev_filters).astype(
                    jnp.bfloat16)
            else:
                cp = _round_up(prev_filters, 8)   # sublane-aligned tap stacking
                wpad = jnp.pad(w_fold,
                               ((0, 0), (0, cp - prev_filters), (0, 0), (0, 0)))
                p['w2d'] = (wpad.transpose(0, 2, 3, 1)
                            .reshape(filters, ksize * ksize * cp)
                            .astype(jnp.bfloat16))
                p['cin_pad'] = cp
            prev_filters = filters
        elif blk['type'] == 'route':
            layers = [int(v) for v in blk['layers'].split(',')]
            start = layers[0]
            end = layers[1] if len(layers) > 1 else 0
            if start > 0:
                start -= index
            if end > 0:
                end -= index
            if end < 0:
                prev_filters = (output_filters[index + start]
                                + output_filters[index + end])
            else:
                prev_filters = output_filters[index + start]
        elif blk['type'] == 'yolo':
            mask = [int(m) for m in blk['mask'].split(',')]
            anch = [int(a) for a in blk['anchors'].split(',')]
            anch = [(anch[j], anch[j + 1]) for j in range(0, len(anch), 2)]
            p = dict(anchors=tuple(anch[m] for m in mask))
        output_filters.append(prev_filters)
        params.append(p)
    return params


def _reference_map(blocks):
    """producer module index -> set of later module indices that read its cache."""
    refs = {}
    for i, m in enumerate(blocks[1:]):
        srcs = []
        if m['type'] == 'route':
            layers = [int(v) for v in m['layers'].split(',')]
            srcs = [l if l > 0 else i + l for l in layers]
        elif m['type'] == 'shortcut':
            srcs = [i - 1, i + int(m['from'])]
        for s in srcs:
            refs.setdefault(s, set()).add(i)
    return refs


def darknet_forward(blocks, params, x_nchw):
    modules = blocks[1:]
    inp_dim = int(blocks[0]['height'])
    refs = _reference_map(blocks)
    # Internal activation layout is (C, B, H, W): lane-dense (C, B*H*W) views.
    x = jnp.transpose(x_nchw, (1, 0, 2, 3)).astype(jnp.bfloat16)
    cache, pending_det, pending_short = {}, {}, {}
    detections = None
    for i, module in enumerate(modules):
        mt = module['type']
        if mt == 'convolutional':
            p = params[i]
            xs = list(x) if isinstance(x, tuple) else [x]
            nxt = modules[i + 1] if i + 1 < len(modules) else None
            head_fusible = (
                nxt is not None and nxt['type'] == 'yolo' and p['ksize'] == 1
                and p['pad'] == 0 and p['stride'] == 1 and not p['leaky']
                and not refs.get(i))
            short_fusible = (
                nxt is not None and nxt['type'] == 'shortcut'
                and p['ksize'] == 1 and p['pad'] == 0 and p['stride'] == 1
                and len(xs) == 1 and refs.get(i, set()) <= {i + 1})
            if head_fusible:
                if len(xs) > 1:        # split-K weights for the deferred concat
                    offs = np.cumsum([0] + [t.shape[0] for t in xs])
                    ws = [p['w2d'][:, offs[j]:offs[j + 1]]
                          for j in range(len(xs))]
                else:
                    ws = [p['w2d']]
                det = head_conv_yolo_pallas(xs, ws, p['bias'],
                                            params[i + 1]['anchors'],
                                            int(nxt['classes']), inp_dim)
                pending_det[i + 1] = det
                x = det          # raw conv output unused (checked via refs)
            elif short_fusible:
                # Residual add fused into the 1x1 conv epilogue.
                res = cache[i + 1 + int(nxt['from'])]
                C, B, H, W = xs[0].shape
                OC = p['w2d'].shape[0]
                out = pallas_matmul_bias_act(
                    p['w2d'], xs[0].reshape(C, B * H * W), p['bias'],
                    leaky=p['leaky'], residual=res.reshape(OC, B * H * W))
                x = out.reshape(OC, B, H, W)
                pending_short[i + 1] = x
            else:
                if isinstance(x, tuple):
                    xs = [jnp.concatenate(xs, axis=0)]
                if p['ksize'] == 1:
                    C, B, H, W = xs[0].shape
                    out = pallas_matmul_bias_act(
                        p['w2d'], xs[0].reshape(C, B * H * W), p['bias'],
                        leaky=p['leaky'])
                    x = out.reshape(p['w2d'].shape[0], B, H, W)
                else:
                    x = conv_kxk_pallas(xs[0], p)
        elif mt == 'upsample':
            x = upsample_bilinear_pallas(x, int(module['stride']))
        elif mt == 'route':
            layers = [int(v) for v in module['layers'].split(',')]
            layers = [l if l > 0 else i + l for l in layers]
            if len(layers) == 1:
                x = cache[layers[0]]
            else:
                maps = [cache[l] for l in layers]
                nxt = modules[i + 1] if i + 1 < len(modules) else None
                nxt2 = modules[i + 2] if i + 2 < len(modules) else None
                defer = (nxt is not None and nxt['type'] == 'convolutional'
                         and int(nxt['size']) == 1
                         and nxt2 is not None and nxt2['type'] == 'yolo'
                         and not refs.get(i))
                # Defer the channel concat: it is folded into the head conv as
                # a split-K matmul so the concatenated map never hits HBM.
                x = tuple(maps) if defer else jnp.concatenate(maps, axis=0)
        elif mt == 'shortcut':
            if i in pending_short:
                x = pending_short.pop(i)
            else:
                x = pallas_add(cache[i - 1], cache[i + int(module['from'])])
        elif mt == 'yolo':
            if i in pending_det:
                det = pending_det.pop(i)
            else:
                det = predict_transform_pallas(x, inp_dim,
                                               params[i]['anchors'],
                                               int(module['classes']))
            x = det
            detections = det if detections is None else jnp.concatenate(
                [detections, det], axis=1)
        elif mt == 'maxpool':
            if int(module.get('pad', 0)):
                # The reference module explicitly zero-pads (F.pad ..., 0) here.
                x = jnp.pad(x, ((0, 0), (0, 0), (0, 1), (0, 1)))
            assert int(module['size']) == 2 and int(module['stride']) == 2
            x = pallas_maxpool_2x2(x)
        cache[i] = x
    return detections


if __name__ == "__main__":
    key = jax.random.PRNGKey(0)
    key, kx = jax.random.split(key)
    x = jax.random.normal(kx, (2, 3, 16, 16), jnp.float32)   # NCHW
    params = build_params(BLOCKS, key)

    @jax.jit
    def forward(inp):
        return darknet_forward(BLOCKS, params, inp)

    det = jax.block_until_ready(forward(x))
    assert det.shape == (2, 8 * 8 * 3 + 16 * 16 * 3, 7), det.shape
    assert bool(jnp.all(jnp.isfinite(det)))
    print("KERNEL_OK")
</pallas_src>

<mosaic_0001>
module attributes {stable_mosaic.version = 11 : i64} {
  func.func @_conv_kxk_kernel(%arg0: i32, %arg1: memref<8x72xbf16, #tpu.memory_space<vmem>>, %arg2: memref<8x648xbf16, #tpu.memory_space<vmem>>, %arg3: memref<8x1xf32, #tpu.memory_space<vmem>>, %arg4: memref<8x648xbf16, #tpu.memory_space<vmem>>) attributes {dimension_semantics = [#tpu.dimension_semantics<parallel>], iteration_bounds = array<i64: 1>, scalar_prefetch = 0 : i64, scratch_operands = 0 : i64, tpu.core_type = #tpu.core_type<tc>, window_params = [{transform_indices = @transform_0, window_bounds = array<i64: 8, 72>}, {pipeline_mode = #tpu.pipeline_mode<synchronous>, transform_indices = @transform_1, window_bounds = array<i64: 8, 648>}, {transform_indices = @transform_2, window_bounds = array<i64: 8, 1>}, {transform_indices = @transform_3, window_bounds = array<i64: 8, 648>}]} {
    %c0 = arith.constant 0 : index
    %c0_0 = arith.constant 0 : index
    %0 = vector.load %arg2[%c0, %c0_0] : memref<8x648xbf16, #tpu.memory_space<vmem>>, vector<8x610xbf16>
    %c0_1 = arith.constant 0 : index
    %c1 = arith.constant 1 : index
    %1 = vector.load %arg2[%c0_1, %c1] : memref<8x648xbf16, #tpu.memory_space<vmem>>, vector<8x610xbf16>
    %c0_2 = arith.constant 0 : index
    %c2 = arith.constant 2 : index
    %2 = vector.load %arg2[%c0_2, %c2] : memref<8x648xbf16, #tpu.memory_space<vmem>>, vector<8x610xbf16>
    %c0_3 = arith.constant 0 : index
    %c18 = arith.constant 18 : index
    %3 = vector.load %arg2[%c0_3, %c18] : memref<8x648xbf16, #tpu.memory_space<vmem>>, vector<8x610xbf16>
    %c0_4 = arith.constant 0 : index
    %c19 = arith.constant 19 : index
    %4 = vector.load %arg2[%c0_4, %c19] : memref<8x648xbf16, #tpu.memory_space<vmem>>, vector<8x610xbf16>
    %c0_5 = arith.constant 0 : index
    %c20 = arith.constant 20 : index
    %5 = vector.load %arg2[%c0_5, %c20] : memref<8x648xbf16, #tpu.memory_space<vmem>>, vector<8x610xbf16>
    %c0_6 = arith.constant 0 : index
    %c36 = arith.constant 36 : index
    %6 = vector.load %arg2[%c0_6, %c36] : memref<8x648xbf16, #tpu.memory_space<vmem>>, vector<8x610xbf16>
    %c0_7 = arith.constant 0 : index
    %c37 = arith.constant 37 : index
    %7 = vector.load %arg2[%c0_7, %c37] : memref<8x648xbf16, #tpu.memory_space<vmem>>, vector<8x610xbf16>
    %c0_8 = arith.constant 0 : index
    %c38 = arith.constant 38 : index
    %8 = vector.load %arg2[%c0_8, %c38] : memref<8x648xbf16, #tpu.memory_space<vmem>>, vector<8x610xbf16>
    %9 = tpu.concatenate %0, %1, %2, %3, %4, %5, %6, %7, %8 in 0 : vector<8x610xbf16>, vector<8x610xbf16>, vector<8x610xbf16>, vector<8x610xbf16>, vector<8x610xbf16>, vector<8x610xbf16>, vector<8x610xbf16>, vector<8x610xbf16>, vector<8x610xbf16> -> vector<72x610xbf16>
    %c0_9 = arith.constant 0 : index
    %c0_10 = arith.constant 0 : index
    %10 = vector.load %arg1[%c0_9, %c0_10] : memref<8x72xbf16, #tpu.memory_space<vmem>>, vector<8x72xbf16>
    %cst = arith.constant dense<0.000000e+00> : vector<8x610xf32>
    %11 = tpu.matmul %10, %9, %cst {dimension_numbers = #tpu.dot_dimension_numbers<[1], [0], [0], [1], [0, 0, 1, 1], [], []>} : vector<8x72xbf16>, vector<72x610xbf16>, vector<8x610xf32> -> vector<8x610xf32>
    %c0_11 = arith.constant 0 : index
    %c0_12 = arith.constant 0 : index
    %12 = vector.load %arg3[%c0_11, %c0_12] : memref<8x1xf32, #tpu.memory_space<vmem>>, vector<8x1xf32>
    %13 = vector.broadcast %12 : vector<8x1xf32> to vector<8x610xf32>
    %14 = arith.addf %11, %13 : vector<8x610xf32>
    %cst_13 = arith.constant 0.000000e+00 : f32
    %15 = vector.broadcast %cst_13 : f32 to vector<8x610xf32>
    %16 = arith.cmpf oge, %14, %15 : vector<8x610xf32>
    %cst_14 = arith.constant 1.000000e-01 : f32
    %17 = vector.broadcast %cst_14 : f32 to vector<8x610xf32>
    %18 = arith.mulf %17, %14 : vector<8x610xf32>
    %19 = arith.select %16, %14, %18 : vector<8x610xi1>, vector<8x610xf32>
    %20 = arith.truncf %19 : vector<8x610xf32> to vector<8x610xbf16>
    %c0_15 = arith.constant 0 : index
    %c0_16 = arith.constant 0 : index
    %21 = vector.load %arg4[%c0_15, %c0_16] : memref<8x648xbf16, #tpu.memory_space<vmem>>, vector<8x610xbf16>
    tpu.vector_store %arg4[%c0_15, %c0_16], %20 {strides = array<i32>} : memref<8x648xbf16, #tpu.memory_space<vmem>>, vector<8x610xbf16>,
    return
  }
  func.func @transform_0(%arg0: i32) -> (i32, i32) {
    %c0_i32 = arith.constant 0 : i32
    %c0_i32_0 = arith.constant 0 : i32
    return %arg0, %c0_i32 : i32, i32
  }
  func.func @transform_1(%arg0: i32) -> (i32, i32) {
    %c0_i32 = arith.constant 0 : i32
    %c0_i32_0 = arith.constant 0 : i32
    %c0_i32_1 = arith.constant 0 : i32
    return %c0_i32, %c0_i32_0 : i32, i32
  }
  func.func @transform_2(%arg0: i32) -> (i32, i32) {
    %c0_i32 = arith.constant 0 : i32
    %c0_i32_0 = arith.constant 0 : i32
    return %arg0, %c0_i32 : i32, i32
  }
  func.func @transform_3(%arg0: i32) -> (i32, i32) {
    %c0_i32 = arith.constant 0 : i32
    %c0_i32_0 = arith.constant 0 : i32
    return %arg0, %c0_i32 : i32, i32
  }
}

module attributes {stable_mosaic.version = 11 : i64} {
  func.func @_conv_kxk_kernel(%arg0: i32, %arg1: memref<8x72xbf16, #tpu.memory_space<vmem>>, %arg2: memref<8x200xbf16, #tpu.memory_space<vmem>>, %arg3: memref<8x1xf32, #tpu.memory_space<vmem>>, %arg4: memref<8x200xbf16, #tpu.memory_space<vmem>>) attributes {dimension_semantics = [#tpu.dimension_semantics<parallel>], iteration_bounds = array<i64: 2>, scalar_prefetch = 0 : i64, scratch_operands = 0 : i64, tpu.core_type = #tpu.core_type<tc>, window_params = [{transform_indices = @transform_0, window_bounds = array<i64: 8, 72>}, {pipeline_mode = #tpu.pipeline_mode<synchronous>, transform_indices = @transform_1, window_bounds = array<i64: 8, 200>}, {transform_indices = @transform_2, window_bounds = array<i64: 8, 1>}, {transform_indices = @transform_3, window_bounds = array<i64: 8, 200>}]} {
    %c0 = arith.constant 0 : index
    %c0_0 = arith.constant 0 : index
    %0 = vector.load %arg2[%c0, %c0_0] : memref<8x200xbf16, #tpu.memory_space<vmem>>, vector<8x178xbf16>
    %c0_1 = arith.constant 0 : index
    %c1 = arith.constant 1 : index
    %1 = vector.load %arg2[%c0_1, %c1] : memref<8x200xbf16, #tpu.memory_space<vmem>>, vector<8x178xbf16>
    %c0_2 = arith.constant 0 : index
    %c2 = arith.constant 2 : index
    %2 = vector.load %arg2[%c0_2, %c2] : memref<8x200xbf16, #tpu.memory_space<vmem>>, vector<8x178xbf16>
    %c0_3 = arith.constant 0 : index
    %c10 = arith.constant 10 : index
    %3 = vector.load %arg2[%c0_3, %c10] : memref<8x200xbf16, #tpu.memory_space<vmem>>, vector<8x178xbf16>
    %c0_4 = arith.constant 0 : index
    %c11 = arith.constant 11 : index
    %4 = vector.load %arg2[%c0_4, %c11] : memref<8x200xbf16, #tpu.memory_space<vmem>>, vector<8x178xbf16>
    %c0_5 = arith.constant 0 : index
    %c12 = arith.constant 12 : index
    %5 = vector.load %arg2[%c0_5, %c12] : memref<8x200xbf16, #tpu.memory_space<vmem>>, vector<8x178xbf16>
    %c0_6 = arith.constant 0 : index
    %c20 = arith.constant 20 : index
    %6 = vector.load %arg2[%c0_6, %c20] : memref<8x200xbf16, #tpu.memory_space<vmem>>, vector<8x178xbf16>
    %c0_7 = arith.constant 0 : index
    %c21 = arith.constant 21 : index
    %7 = vector.load %arg2[%c0_7, %c21] : memref<8x200xbf16, #tpu.memory_space<vmem>>, vector<8x178xbf16>
    %c0_8 = arith.constant 0 : index
    %c22 = arith.constant 22 : index
    %8 = vector.load %arg2[%c0_8, %c22] : memref<8x200xbf16, #tpu.memory_space<vmem>>, vector<8x178xbf16>
    %9 = tpu.concatenate %0, %1, %2, %3, %4, %5, %6, %7, %8 in 0 : vector<8x178xbf16>, vector<8x178xbf16>, vector<8x178xbf16>, vector<8x178xbf16>, vector<8x178xbf16>, vector<8x178xbf16>, vector<8x178xbf16>, vector<8x178xbf16>, vector<8x178xbf16> -> vector<72x178xbf16>
    %c0_9 = arith.constant 0 : index
    %c0_10 = arith.constant 0 : index
    %10 = vector.load %arg1[%c0_9, %c0_10] : memref<8x72xbf16, #tpu.memory_space<vmem>>, vector<8x72xbf16>
    %cst = arith.constant dense<0.000000e+00> : vector<8x178xf32>
    %11 = tpu.matmul %10, %9, %cst {dimension_numbers = #tpu.dot_dimension_numbers<[1], [0], [0], [1], [0, 0, 1, 1], [], []>} : vector<8x72xbf16>, vector<72x178xbf16>, vector<8x178xf32> -> vector<8x178xf32>
    %c0_11 = arith.constant 0 : index
    %c0_12 = arith.constant 0 : index
    %12 = vector.load %arg3[%c0_11, %c0_12] : memref<8x1xf32, #tpu.memory_space<vmem>>, vector<8x1xf32>
    %13 = vector.broadcast %12 : vector<8x1xf32> to vector<8x178xf32>
    %14 = arith.addf %11, %13 : vector<8x178xf32>
    %cst_13 = arith.constant 0.000000e+00 : f32
    %15 = vector.broadcast %cst_13 : f32 to vector<8x178xf32>
    %16 = arith.cmpf oge, %14, %15 : vector<8x178xf32>
    %cst_14 = arith.constant 1.000000e-01 : f32
    %17 = vector.broadcast %cst_14 : f32 to vector<8x178xf32>
    %18 = arith.mulf %17, %14 : vector<8x178xf32>
    %19 = arith.select %16, %14, %18 : vector<8x178xi1>, vector<8x178xf32>
    %20 = arith.truncf %19 : vector<8x178xf32> to vector<8x178xbf16>
    %c0_15 = arith.constant 0 : index
    %c0_16 = arith.constant 0 : index
    %21 = vector.load %arg4[%c0_15, %c0_16] : memref<8x200xbf16, #tpu.memory_space<vmem>>, vector<8x178xbf16>
    tpu.vector_store %arg4[%c0_15, %c0_16], %20 {strides = array<i32>} : memref<8x200xbf16, #tpu.memory_space<vmem>>, vector<8x178xbf16>,
    return
  }
  func.func @transform_0(%arg0: i32) -> (i32, i32) {
    %c0_i32 = arith.constant 0 : i32
    %c0_i32_0 = arith.constant 0 : i32
    return %arg0, %c0_i32 : i32, i32
  }
  func.func @transform_1(%arg0: i32) -> (i32, i32) {
    %c0_i32 = arith.constant 0 : i32
    %c0_i32_0 = arith.constant 0 : i32
    %c0_i32_1 = arith.constant 0 : i32
    return %c0_i32, %c0_i32_0 : i32, i32
  }
  func.func @transform_2(%arg0: i32) -> (i32, i32) {
    %c0_i32 = arith.constant 0 : i32
    %c0_i32_0 = arith.constant 0 : i32
    return %arg0, %c0_i32 : i32, i32
  }
  func.func @transform_3(%arg0: i32) -> (i32, i32) {
    %c0_i32 = arith.constant 0 : i32
    %c0_i32_0 = arith.constant 0 : i32
    return %arg0, %c0_i32 : i32, i32
  }
}

module attributes {stable_mosaic.version = 11 : i64} {
  func.func @_maxpool_kernel(%arg0: i32, %arg1: memref<64x32xbf16, #tpu.memory_space<vmem>>, %arg2: memref<16x8xbf16, #tpu.memory_space<vmem>>, %arg3: memref<16x8xbf16, #tpu.memory_space<vmem>>, %arg4: memref<64x8xbf16, #tpu.memory_space<vmem>>) attributes {dimension_semantics = [#tpu.dimension_semantics<parallel>], iteration_bounds = array<i64: 2>, scalar_prefetch = 0 : i64, scratch_operands = 0 : i64, tpu.core_type = #tpu.core_type<tc>, window_params = [{transform_indices = @transform_0, window_bounds = array<i64: 64, 32>}, {pipeline_mode = #tpu.pipeline_mode<synchronous>, transform_indices = @transform_1, window_bounds = array<i64: 16, 8>}, {pipeline_mode = #tpu.pipeline_mode<synchronous>, transform_indices = @transform_2, window_bounds = array<i64: 16, 8>}, {transform_indices = @transform_3, window_bounds = array<i64: 64, 8>}]} {
    %c0 = arith.constant 0 : index
    %c0_0 = arith.constant 0 : index
    %0 = vector.load %arg1[%c0, %c0_0] : memref<64x32xbf16, #tpu.memory_space<vmem>>, vector<64x16xbf16>
    %c0_1 = arith.constant 0 : index
    %c16 = arith.constant 16 : index
    %1 = vector.load %arg1[%c0_1, %c16] : memref<64x32xbf16, #tpu.memory_space<vmem>>, vector<64x16xbf16>
    %2 = arith.maximumf %0, %1 : vector<64x16xbf16>
    %c0_2 = arith.constant 0 : index
    %c0_3 = arith.constant 0 : index
    %3 = vector.load %arg2[%c0_2, %c0_3] : memref<16x8xbf16, #tpu.memory_space<vmem>>, vector<16x8xbf16>
    %cst = arith.constant dense<0.000000e+00> : vector<64x8xf32>
    %4 = tpu.matmul %2, %3, %cst {dimension_numbers = #tpu.dot_dimension_numbers<[1], [0], [0], [1], [0, 0, 1, 1], [], []>} : vector<64x16xbf16>, vector<16x8xbf16>, vector<64x8xf32> -> vector<64x8xf32>
    %c0_4 = arith.constant 0 : index
    %c0_5 = arith.constant 0 : index
    %5 = vector.load %arg3[%c0_4, %c0_5] : memref<16x8xbf16, #tpu.memory_space<vmem>>, vector<16x8xbf16>
    %cst_6 = arith.constant dense<0.000000e+00> : vector<64x8xf32>
    %6 = tpu.matmul %2, %5, %cst_6 {dimension_numbers = #tpu.dot_dimension_numbers<[1], [0], [0], [1], [0, 0, 1, 1], [], []>} : vector<64x16xbf16>, vector<16x8xbf16>, vector<64x8xf32> -> vector<64x8xf32>
    %7 = arith.maximumf %4, %6 : vector<64x8xf32>
    %8 = arith.truncf %7 : vector<64x8xf32> to vector<64x8xbf16>
    %c0_7 = arith.constant 0 : index
    %c0_8 = arith.constant 0 : index
    %9 = vector.load %arg4[%c0_7, %c0_8] : memref<64x8xbf16, #tpu.memory_space<vmem>>, vector<64x8xbf16>
    tpu.vector_store %arg4[%c0_7, %c0_8], %8 {strides = array<i32>} : memref<64x8xbf16, #tpu.memory_space<vmem>>, vector<64x8xbf16>,
    return
  }
  func.func @transform_0(%arg0: i32) -> (i32, i32) {
    %c0_i32 = arith.constant 0 : i32
    %c0_i32_0 = arith.constant 0 : i32
    return %arg0, %c0_i32 : i32, i32
  }
  func.func @transform_1(%arg0: i32) -> (i32, i32) {
    %c0_i32 = arith.constant 0 : i32
    %c0_i32_0 = arith.constant 0 : i32
    %c0_i32_1 = arith.constant 0 : i32
    return %c0_i32, %c0_i32_0 : i32, i32
  }
  func.func @transform_2(%arg0: i32) -> (i32, i32) {
    %c0_i32 = arith.constant 0 : i32
    %c0_i32_0 = arith.constant 0 : i32
    %c0_i32_1 = arith.constant 0 : i32
    return %c0_i32, %c0_i32_0 : i32, i32
  }
  func.func @transform_3(%arg0: i32) -> (i32, i32) {
    %c0_i32 = arith.constant 0 : i32
    %c0_i32_0 = arith.constant 0 : i32
    return %arg0, %c0_i32 : i32, i32
  }
}

module attributes {stable_mosaic.version = 11 : i64} {
  func.func @_mm_kernel(%arg0: i32, %arg1: memref<16x16xbf16, #tpu.memory_space<vmem>>, %arg2: memref<16x128xbf16, #tpu.memory_space<vmem>>, %arg3: memref<16x1xf32, #tpu.memory_space<vmem>>, %arg4: memref<16x128xbf16, #tpu.memory_space<vmem>>, %arg5: memref<16x128xbf16, #tpu.memory_space<vmem>>) attributes {dimension_semantics = [#tpu.dimension_semantics<parallel>], iteration_bounds = array<i64: 1>, scalar_prefetch = 0 : i64, scratch_operands = 0 : i64, tpu.core_type = #tpu.core_type<tc>, window_params = [{pipeline_mode = #tpu.pipeline_mode<synchronous>, transform_indices = @transform_0, window_bounds = array<i64: 16, 16>}, {transform_indices = @transform_1, window_bounds = array<i64: 16, 128>}, {pipeline_mode = #tpu.pipeline_mode<synchronous>, transform_indices = @transform_2, window_bounds = array<i64: 16, 1>}, {transform_indices = @transform_3, window_bounds = array<i64: 16, 128>}, {transform_indices = @transform_4, window_bounds = array<i64: 16, 128>}]} {
    %c0 = arith.constant 0 : index
    %c0_0 = arith.constant 0 : index
    %0 = vector.load %arg1[%c0, %c0_0] : memref<16x16xbf16, #tpu.memory_space<vmem>>, vector<16x16xbf16>
    %c0_1 = arith.constant 0 : index
    %c0_2 = arith.constant 0 : index
    %1 = vector.load %arg2[%c0_1, %c0_2] : memref<16x128xbf16, #tpu.memory_space<vmem>>, vector<16x128xbf16>
    %cst = arith.constant dense<0.000000e+00> : vector<16x128xf32>
    %2 = tpu.matmul %0, %1, %cst {dimension_numbers = #tpu.dot_dimension_numbers<[1], [0], [0], [1], [0, 0, 1, 1], [], []>} : vector<16x16xbf16>, vector<16x128xbf16>, vector<16x128xf32> -> vector<16x128xf32>
    %c0_3 = arith.constant 0 : index
    %c0_4 = arith.constant 0 : index
    %3 = vector.load %arg3[%c0_3, %c0_4] : memref<16x1xf32, #tpu.memory_space<vmem>>, vector<16x1xf32>
    %4 = vector.broadcast %3 : vector<16x1xf32> to vector<16x128xf32>
    %5 = arith.addf %2, %4 : vector<16x128xf32>
    %cst_5 = arith.constant 0.000000e+00 : f32
    %6 = vector.broadcast %cst_5 : f32 to vector<16x128xf32>
    %7 = arith.cmpf oge, %5, %6 : vector<16x128xf32>
    %cst_6 = arith.constant 1.000000e-01 : f32
    %8 = vector.broadcast %cst_6 : f32 to vector<16x128xf32>
    %9 = arith.mulf %8, %5 : vector<16x128xf32>
    %10 = arith.select %7, %5, %9 : vector<16x128xi1>, vector<16x128xf32>
    %c0_7 = arith.constant 0 : index
    %c0_8 = arith.constant 0 : index
    %11 = vector.load %arg4[%c0_7, %c0_8] : memref<16x128xbf16, #tpu.memory_space<vmem>>, vector<16x128xbf16>
    %12 = arith.extf %11 : vector<16x128xbf16> to vector<16x128xf32>
    %13 = arith.addf %10, %12 : vector<16x128xf32>
    %14 = arith.truncf %13 : vector<16x128xf32> to vector<16x128xbf16>
    %c0_9 = arith.constant 0 : index
    %c0_10 = arith.constant 0 : index
    %15 = vector.load %arg5[%c0_9, %c0_10] : memref<16x128xbf16, #tpu.memory_space<vmem>>, vector<16x128xbf16>
    tpu.vector_store %arg5[%c0_9, %c0_10], %14 {strides = array<i32>} : memref<16x128xbf16, #tpu.memory_space<vmem>>, vector<16x128xbf16>,
    return
  }
  func.func @transform_0(%arg0: i32) -> (i32, i32) {
    %c0_i32 = arith.constant 0 : i32
    %c0_i32_0 = arith.constant 0 : i32
    %c0_i32_1 = arith.constant 0 : i32
    return %c0_i32, %c0_i32_0 : i32, i32
  }
  func.func @transform_1(%arg0: i32) -> (i32, i32) {
    %c0_i32 = arith.constant 0 : i32
    %c0_i32_0 = arith.constant 0 : i32
    return %c0_i32, %arg0 : i32, i32
  }
  func.func @transform_2(%arg0: i32) -> (i32, i32) {
    %c0_i32 = arith.constant 0 : i32
    %c0_i32_0 = arith.constant 0 : i32
    %c0_i32_1 = arith.constant 0 : i32
    return %c0_i32, %c0_i32_0 : i32, i32
  }
  func.func @transform_3(%arg0: i32) -> (i32, i32) {
    %c0_i32 = arith.constant 0 : i32
    %c0_i32_0 = arith.constant 0 : i32
    return %c0_i32, %arg0 : i32, i32
  }
  func.func @transform_4(%arg0: i32) -> (i32, i32) {
    %c0_i32 = arith.constant 0 : i32
    %c0_i32_0 = arith.constant 0 : i32
    return %c0_i32, %arg0 : i32, i32
  }
}

module attributes {stable_mosaic.version = 11 : i64} {
  func.func @_mm_kernel(%arg0: i32, %arg1: memref<8x16xbf16, #tpu.memory_space<vmem>>, %arg2: memref<16x128xbf16, #tpu.memory_space<vmem>>, %arg3: memref<8x1xf32, #tpu.memory_space<vmem>>, %arg4: memref<8x128xbf16, #tpu.memory_space<vmem>>) attributes {dimension_semantics = [#tpu.dimension_semantics<parallel>], iteration_bounds = array<i64: 1>, scalar_prefetch = 0 : i64, scratch_operands = 0 : i64, tpu.core_type = #tpu.core_type<tc>, window_params = [{pipeline_mode = #tpu.pipeline_mode<synchronous>, transform_indices = @transform_0, window_bounds = array<i64: 8, 16>}, {transform_indices = @transform_1, window_bounds = array<i64: 16, 128>}, {pipeline_mode = #tpu.pipeline_mode<synchronous>, transform_indices = @transform_2, window_bounds = array<i64: 8, 1>}, {transform_indices = @transform_3, window_bounds = array<i64: 8, 128>}]} {
    %c0 = arith.constant 0 : index
    %c0_0 = arith.constant 0 : index
    %0 = vector.load %arg1[%c0, %c0_0] : memref<8x16xbf16, #tpu.memory_space<vmem>>, vector<8x16xbf16>
    %c0_1 = arith.constant 0 : index
    %c0_2 = arith.constant 0 : index
    %1 = vector.load %arg2[%c0_1, %c0_2] : memref<16x128xbf16, #tpu.memory_space<vmem>>, vector<16x128xbf16>
    %cst = arith.constant dense<0.000000e+00> : vector<8x128xf32>
    %2 = tpu.matmul %0, %1, %cst {dimension_numbers = #tpu.dot_dimension_numbers<[1], [0], [0], [1], [0, 0, 1, 1], [], []>} : vector<8x16xbf16>, vector<16x128xbf16>, vector<8x128xf32> -> vector<8x128xf32>
    %c0_3 = arith.constant 0 : index
    %c0_4 = arith.constant 0 : index
    %3 = vector.load %arg3[%c0_3, %c0_4] : memref<8x1xf32, #tpu.memory_space<vmem>>, vector<8x1xf32>
    %4 = vector.broadcast %3 : vector<8x1xf32> to vector<8x128xf32>
    %5 = arith.addf %2, %4 : vector<8x128xf32>
    %cst_5 = arith.constant 0.000000e+00 : f32
    %6 = vector.broadcast %cst_5 : f32 to vector<8x128xf32>
    %7 = arith.cmpf oge, %5, %6 : vector<8x128xf32>
    %cst_6 = arith.constant 1.000000e-01 : f32
    %8 = vector.broadcast %cst_6 : f32 to vector<8x128xf32>
    %9 = arith.mulf %8, %5 : vector<8x128xf32>
    %10 = arith.select %7, %5, %9 : vector<8x128xi1>, vector<8x128xf32>
    %11 = arith.truncf %10 : vector<8x128xf32> to vector<8x128xbf16>
    %c0_7 = arith.constant 0 : index
    %c0_8 = arith.constant 0 : index
    %12 = vector.load %arg4[%c0_7, %c0_8] : memref<8x128xbf16, #tpu.memory_space<vmem>>, vector<8x128xbf16>
    tpu.vector_store %arg4[%c0_7, %c0_8], %11 {strides = array<i32>} : memref<8x128xbf16, #tpu.memory_space<vmem>>, vector<8x128xbf16>,
    return
  }
  func.func @transform_0(%arg0: i32) -> (i32, i32) {
    %c0_i32 = arith.constant 0 : i32
    %c0_i32_0 = arith.constant 0 : i32
    %c0_i32_1 = arith.constant 0 : i32
    return %c0_i32, %c0_i32_0 : i32, i32
  }
  func.func @transform_1(%arg0: i32) -> (i32, i32) {
    %c0_i32 = arith.constant 0 : i32
    %c0_i32_0 = arith.constant 0 : i32
    return %c0_i32, %arg0 : i32, i32
  }
  func.func @transform_2(%arg0: i32) -> (i32, i32) {
    %c0_i32 = arith.constant 0 : i32
    %c0_i32_0 = arith.constant 0 : i32
    %c0_i32_1 = arith.constant 0 : i32
    return %c0_i32, %c0_i32_0 : i32, i32
  }
  func.func @transform_3(%arg0: i32) -> (i32, i32) {
    %c0_i32 = arith.constant 0 : i32
    %c0_i32_0 = arith.constant 0 : i32
    return %c0_i32, %arg0 : i32, i32
  }
}

module attributes {stable_mosaic.version = 11 : i64} {
  func.func @_mm_kernel(%arg0: i32, %arg1: memref<16x64xbf16, #tpu.memory_space<vmem>>, %arg2: memref<64x128xbf16, #tpu.memory_space<vmem>>, %arg3: memref<16x1xf32, #tpu.memory_space<vmem>>, %arg4: memref<16x128xbf16, #tpu.memory_space<vmem>>) attributes {dimension_semantics = [#tpu.dimension_semantics<parallel>], iteration_bounds = array<i64: 2>, scalar_prefetch = 0 : i64, scratch_operands = 0 : i64, tpu.core_type = #tpu.core_type<tc>, window_params = [{pipeline_mode = #tpu.pipeline_mode<synchronous>, transform_indices = @transform_0, window_bounds = array<i64: 16, 64>}, {transform_indices = @transform_1, window_bounds = array<i64: 64, 128>}, {pipeline_mode = #tpu.pipeline_mode<synchronous>, transform_indices = @transform_2, window_bounds = array<i64: 16, 1>}, {transform_indices = @transform_3, window_bounds = array<i64: 16, 128>}]} {
    %c0 = arith.constant 0 : index
    %c0_0 = arith.constant 0 : index
    %0 = vector.load %arg1[%c0, %c0_0] : memref<16x64xbf16, #tpu.memory_space<vmem>>, vector<16x64xbf16>
    %c0_1 = arith.constant 0 : index
    %c0_2 = arith.constant 0 : index
    %1 = vector.load %arg2[%c0_1, %c0_2] : memref<64x128xbf16, #tpu.memory_space<vmem>>, vector<64x128xbf16>
    %cst = arith.constant dense<0.000000e+00> : vector<16x128xf32>
    %2 = tpu.matmul %0, %1, %cst {dimension_numbers = #tpu.dot_dimension_numbers<[1], [0], [0], [1], [0, 0, 1, 1], [], []>} : vector<16x64xbf16>, vector<64x128xbf16>, vector<16x128xf32> -> vector<16x128xf32>
    %c0_3 = arith.constant 0 : index
    %c0_4 = arith.constant 0 : index
    %3 = vector.load %arg3[%c0_3, %c0_4] : memref<16x1xf32, #tpu.memory_space<vmem>>, vector<16x1xf32>
    %4 = vector.broadcast %3 : vector<16x1xf32> to vector<16x128xf32>
    %5 = arith.addf %2, %4 : vector<16x128xf32>
    %6 = arith.truncf %5 : vector<16x128xf32> to vector<16x128xbf16>
    %c0_5 = arith.constant 0 : index
    %c0_6 = arith.constant 0 : index
    %7 = vector.load %arg4[%c0_5, %c0_6] : memref<16x128xbf16, #tpu.memory_space<vmem>>, vector<16x128xbf16>
    tpu.vector_store %arg4[%c0_5, %c0_6], %6 {strides = array<i32>} : memref<16x128xbf16, #tpu.memory_space<vmem>>, vector<16x128xbf16>,
    return
  }
  func.func @transform_0(%arg0: i32) -> (i32, i32) {
    %c0_i32 = arith.constant 0 : i32
    %c0_i32_0 = arith.constant 0 : i32
    %c0_i32_1 = arith.constant 0 : i32
    return %c0_i32, %c0_i32_0 : i32, i32
  }
  func.func @transform_1(%arg0: i32) -> (i32, i32) {
    %c0_i32 = arith.constant 0 : i32
    %c0_i32_0 = arith.constant 0 : i32
    return %c0_i32, %arg0 : i32, i32
  }
  func.func @transform_2(%arg0: i32) -> (i32, i32) {
    %c0_i32 = arith.constant 0 : i32
    %c0_i32_0 = arith.constant 0 : i32
    %c0_i32_1 = arith.constant 0 : i32
    return %c0_i32, %c0_i32_0 : i32, i32
  }
  func.func @transform_3(%arg0: i32) -> (i32, i32) {
    %c0_i32 = arith.constant 0 : i32
    %c0_i32_0 = arith.constant 0 : i32
    return %c0_i32, %arg0 : i32, i32
  }
}

module attributes {stable_mosaic.version = 11 : i64} {
  func.func @_head_yolo_kernel(%arg0: i32, %arg1: memref<21x8xbf16, #tpu.memory_space<vmem>>, %arg2: memref<8x256xbf16, #tpu.memory_space<vmem>>, %arg3: memref<21x8xbf16, #tpu.memory_space<vmem>>, %arg4: memref<8x256xbf16, #tpu.memory_space<vmem>>, %arg5: memref<21x1xf32, #tpu.memory_space<vmem>>, %arg6: memref<21x4xf32, #tpu.memory_space<vmem>>, %arg7: memref<21x256xf32, #tpu.memory_space<vmem>>) attributes {dimension_semantics = [#tpu.dimension_semantics<parallel>], iteration_bounds = array<i64: 2>, scalar_prefetch = 0 : i64, scratch_operands = 0 : i64, tpu.core_type = #tpu.core_type<tc>, window_params = [{pipeline_mode = #tpu.pipeline_mode<synchronous>, transform_indices = @transform_0, window_bounds = array<i64: 21, 8>}, {transform_indices = @transform_1, window_bounds = array<i64: 8, 256>}, {pipeline_mode = #tpu.pipeline_mode<synchronous>, transform_indices = @transform_2, window_bounds = array<i64: 21, 8>}, {transform_indices = @transform_3, window_bounds = array<i64: 8, 256>}, {pipeline_mode = #tpu.pipeline_mode<synchronous>, transform_indices = @transform_4, window_bounds = array<i64: 21, 1>}, {pipeline_mode = #tpu.pipeline_mode<synchronous>, transform_indices = @transform_5, window_bounds = array<i64: 21, 4>}, {transform_indices = @transform_6, window_bounds = array<i64: 21, 256>}]} {
    %c0 = arith.constant 0 : index
    %c0_0 = arith.constant 0 : index
    %0 = vector.load %arg1[%c0, %c0_0] : memref<21x8xbf16, #tpu.memory_space<vmem>>, vector<21x8xbf16>
    %c0_1 = arith.constant 0 : index
    %c0_2 = arith.constant 0 : index
    %1 = vector.load %arg2[%c0_1, %c0_2] : memref<8x256xbf16, #tpu.memory_space<vmem>>, vector<8x256xbf16>
    %cst = arith.constant dense<0.000000e+00> : vector<21x256xf32>
    %2 = tpu.matmul %0, %1, %cst {dimension_numbers = #tpu.dot_dimension_numbers<[1], [0], [0], [1], [0, 0, 1, 1], [], []>} : vector<21x8xbf16>, vector<8x256xbf16>, vector<21x256xf32> -> vector<21x256xf32>
    %c0_3 = arith.constant 0 : index
    %c0_4 = arith.constant 0 : index
    %3 = vector.load %arg3[%c0_3, %c0_4] : memref<21x8xbf16, #tpu.memory_space<vmem>>, vector<21x8xbf16>
    %c0_5 = arith.constant 0 : index
    %c0_6 = arith.constant 0 : index
    %4 = vector.load %arg4[%c0_5, %c0_6] : memref<8x256xbf16, #tpu.memory_space<vmem>>, vector<8x256xbf16>
    %cst_7 = arith.constant dense<0.000000e+00> : vector<21x256xf32>
    %5 = tpu.matmul %3, %4, %cst_7 {dimension_numbers = #tpu.dot_dimension_numbers<[1], [0], [0], [1], [0, 0, 1, 1], [], []>} : vector<21x8xbf16>, vector<8x256xbf16>, vector<21x256xf32> -> vector<21x256xf32>
    %6 = arith.addf %2, %5 : vector<21x256xf32>
    %c0_8 = arith.constant 0 : index
    %c0_9 = arith.constant 0 : index
    %7 = vector.load %arg5[%c0_8, %c0_9] : memref<21x1xf32, #tpu.memory_space<vmem>>, vector<21x1xf32>
    %8 = vector.broadcast %7 : vector<21x1xf32> to vector<21x256xf32>
    %9 = arith.addf %6, %8 : vector<21x256xf32>
    %c256_i32 = arith.constant 256 : i32
    %10 = arith.muli %arg0, %c256_i32 : i32
    %11 = tpu.iota {dimensions = array<i32: 1>} : vector<21x256xi32>
    %12 = vector.broadcast %10 : i32 to vector<21x256xi32>
    %13 = arith.addi %12, %11 : vector<21x256xi32>
    %c255_i32 = arith.constant 255 : i32
    %14 = vector.broadcast %c255_i32 : i32 to vector<21x256xi32>
    %15 = arith.andi %13, %14 : vector<21x256xi32>
    %c15_i32 = arith.constant 15 : i32
    %16 = vector.broadcast %c15_i32 : i32 to vector<21x256xi32>
    %17 = arith.andi %15, %16 : vector<21x256xi32>
    %18 = arith.sitofp %17 : vector<21x256xi32> to vector<21x256xf32>
    %c4_i32 = arith.constant 4 : i32
    %19 = vector.broadcast %c4_i32 : i32 to vector<21x256xi32>
    %20 = arith.shrsi %15, %19 : vector<21x256xi32>
    %21 = arith.sitofp %20 : vector<21x256xi32> to vector<21x256xf32>
    %c0_10 = arith.constant 0 : index
    %c0_11 = arith.constant 0 : index
    %22 = vector.load %arg6[%c0_10, %c0_11] : memref<21x4xf32, #tpu.memory_space<vmem>>, vector<21x1xf32>
    %c0_12 = arith.constant 0 : index
    %c1 = arith.constant 1 : index
    %23 = vector.load %arg6[%c0_12, %c1] : memref<21x4xf32, #tpu.memory_space<vmem>>, vector<21x1xf32>
    %cst_13 = arith.constant 5.000000e-01 : f32
    %24 = vector.broadcast %cst_13 : f32 to vector<21x1xf32>
    %25 = arith.cmpf ogt, %23, %24 : vector<21x1xf32>
    %c0_14 = arith.constant 0 : index
    %c2 = arith.constant 2 : index
    %26 = vector.load %arg6[%c0_14, %c2] : memref<21x4xf32, #tpu.memory_space<vmem>>, vector<21x1xf32>
    %c0_15 = arith.constant 0 : index
    %c3 = arith.constant 3 : index
    %27 = vector.load %arg6[%c0_15, %c3] : memref<21x4xf32, #tpu.memory_space<vmem>>, vector<21x1xf32>
    %cst_16 = arith.constant 0.000000e+00 : f32
    %28 = vector.broadcast %cst_16 : f32 to vector<21x256xf32>
    %29 = arith.subf %28, %9 : vector<21x256xf32>
    %30 = math.exp %29 : vector<21x256xf32>
    %cst_17 = arith.constant 1.000000e+00 : f32
    %31 = vector.broadcast %cst_17 : f32 to vector<21x256xf32>
    %32 = arith.addf %31, %30 : vector<21x256xf32>
    %33 = tpu.reciprocal %32 {approx = true} : vector<21x256xf32> -> vector<21x256xf32>
    %34 = tpu.reciprocal %30 {approx = true} : vector<21x256xf32> -> vector<21x256xf32>
    %35 = vector.shape_cast %25 : vector<21x1xi1> to vector<21x1xi1>
    %36 = vector.broadcast %35 : vector<21x1xi1> to vector<21x256xi1>
    %37 = arith.select %36, %34, %33 : vector<21x256xi1>, vector<21x256xf32>
    %38 = vector.broadcast %22 : vector<21x1xf32> to vector<21x256xf32>
    %39 = arith.mulf %37, %38 : vector<21x256xf32>
    %40 = vector.broadcast %26 : vector<21x1xf32> to vector<21x256xf32>
    %41 = arith.mulf %40, %18 : vector<21x256xf32>
    %42 = vector.broadcast %27 : vector<21x1xf32> to vector<21x256xf32>
    %43 = arith.mulf %42, %21 : vector<21x256xf32>
    %44 = arith.addf %41, %43 : vector<21x256xf32>
    %cst_18 = arith.constant 1.000000e+00 : f32
    %45 = vector.broadcast %cst_18 : f32 to vector<21x256xf32>
    %46 = arith.mulf %45, %44 : vector<21x256xf32>
    %47 = arith.addf %39, %46 : vector<21x256xf32>
    %c0_19 = arith.constant 0 : index
    %c0_20 = arith.constant 0 : index
    %48 = vector.load %arg7[%c0_19, %c0_20] : memref<21x256xf32, #tpu.memory_space<vmem>>, vector<21x256xf32>
    tpu.vector_store %arg7[%c0_19, %c0_20], %47 {strides = array<i32>} : memref<21x256xf32, #tpu.memory_space<vmem>>, vector<21x256xf32>,
    return
  }
  func.func @transform_0(%arg0: i32) -> (i32, i32) {
    %c0_i32 = arith.constant 0 : i32
    %c0_i32_0 = arith.constant 0 : i32
    %c0_i32_1 = arith.constant 0 : i32
    return %c0_i32, %c0_i32_0 : i32, i32
  }
  func.func @transform_1(%arg0: i32) -> (i32, i32) {
    %c0_i32 = arith.constant 0 : i32
    %c0_i32_0 = arith.constant 0 : i32
    return %c0_i32, %arg0 : i32, i32
  }
  func.func @transform_2(%arg0: i32) -> (i32, i32) {
    %c0_i32 = arith.constant 0 : i32
    %c0_i32_0 = arith.constant 0 : i32
    %c0_i32_1 = arith.constant 0 : i32
    return %c0_i32, %c0_i32_0 : i32, i32
  }
  func.func @transform_3(%arg0: i32) -> (i32, i32) {
    %c0_i32 = arith.constant 0 : i32
    %c0_i32_0 = arith.constant 0 : i32
    return %c0_i32, %arg0 : i32, i32
  }
  func.func @transform_4(%arg0: i32) -> (i32, i32) {
    %c0_i32 = arith.constant 0 : i32
    %c0_i32_0 = arith.constant 0 : i32
    %c0_i32_1 = arith.constant 0 : i32
    return %c0_i32, %c0_i32_0 : i32, i32
  }
  func.func @transform_5(%arg0: i32) -> (i32, i32) {
    %c0_i32 = arith.constant 0 : i32
    %c0_i32_0 = arith.constant 0 : i32
    %c0_i32_1 = arith.constant 0 : i32
    return %c0_i32, %c0_i32_0 : i32, i32
  }
  func.func @transform_6(%arg0: i32) -> (i32, i32) {
    %c0_i32 = arith.constant 0 : i32
    %c0_i32_0 = arith.constant 0 : i32
    return %c0_i32, %arg0 : i32, i32
  }
}

module attributes {stable_mosaic.version = 11 : i64} {
  func.func @_head_yolo_kernel(%arg0: i32, %arg1: memref<21x16xbf16, #tpu.memory_space<vmem>>, %arg2: memref<16x128xbf16, #tpu.memory_space<vmem>>, %arg3: memref<21x1xf32, #tpu.memory_space<vmem>>, %arg4: memref<21x4xf32, #tpu.memory_space<vmem>>, %arg5: memref<21x128xf32, #tpu.memory_space<vmem>>) attributes {dimension_semantics = [#tpu.dimension_semantics<parallel>], iteration_bounds = array<i64: 1>, scalar_prefetch = 0 : i64, scratch_operands = 0 : i64, tpu.core_type = #tpu.core_type<tc>, window_params = [{pipeline_mode = #tpu.pipeline_mode<synchronous>, transform_indices = @transform_0, window_bounds = array<i64: 21, 16>}, {transform_indices = @transform_1, window_bounds = array<i64: 16, 128>}, {pipeline_mode = #tpu.pipeline_mode<synchronous>, transform_indices = @transform_2, window_bounds = array<i64: 21, 1>}, {pipeline_mode = #tpu.pipeline_mode<synchronous>, transform_indices = @transform_3, window_bounds = array<i64: 21, 4>}, {transform_indices = @transform_4, window_bounds = array<i64: 21, 128>}]} {
    %c0 = arith.constant 0 : index
    %c0_0 = arith.constant 0 : index
    %0 = vector.load %arg1[%c0, %c0_0] : memref<21x16xbf16, #tpu.memory_space<vmem>>, vector<21x16xbf16>
    %c0_1 = arith.constant 0 : index
    %c0_2 = arith.constant 0 : index
    %1 = vector.load %arg2[%c0_1, %c0_2] : memref<16x128xbf16, #tpu.memory_space<vmem>>, vector<16x128xbf16>
    %cst = arith.constant dense<0.000000e+00> : vector<21x128xf32>
    %2 = tpu.matmul %0, %1, %cst {dimension_numbers = #tpu.dot_dimension_numbers<[1], [0], [0], [1], [0, 0, 1, 1], [], []>} : vector<21x16xbf16>, vector<16x128xbf16>, vector<21x128xf32> -> vector<21x128xf32>
    %c0_3 = arith.constant 0 : index
    %c0_4 = arith.constant 0 : index
    %3 = vector.load %arg3[%c0_3, %c0_4] : memref<21x1xf32, #tpu.memory_space<vmem>>, vector<21x1xf32>
    %4 = vector.broadcast %3 : vector<21x1xf32> to vector<21x128xf32>
    %5 = arith.addf %2, %4 : vector<21x128xf32>
    %c128_i32 = arith.constant 128 : i32
    %6 = arith.muli %arg0, %c128_i32 : i32
    %7 = tpu.iota {dimensions = array<i32: 1>} : vector<21x128xi32>
    %8 = vector.broadcast %6 : i32 to vector<21x128xi32>
    %9 = arith.addi %8, %7 : vector<21x128xi32>
    %c63_i32 = arith.constant 63 : i32
    %10 = vector.broadcast %c63_i32 : i32 to vector<21x128xi32>
    %11 = arith.andi %9, %10 : vector<21x128xi32>
    %c7_i32 = arith.constant 7 : i32
    %12 = vector.broadcast %c7_i32 : i32 to vector<21x128xi32>
    %13 = arith.andi %11, %12 : vector<21x128xi32>
    %14 = arith.sitofp %13 : vector<21x128xi32> to vector<21x128xf32>
    %c3_i32 = arith.constant 3 : i32
    %15 = vector.broadcast %c3_i32 : i32 to vector<21x128xi32>
    %16 = arith.shrsi %11, %15 : vector<21x128xi32>
    %17 = arith.sitofp %16 : vector<21x128xi32> to vector<21x128xf32>
    %c0_5 = arith.constant 0 : index
    %c0_6 = arith.constant 0 : index
    %18 = vector.load %arg4[%c0_5, %c0_6] : memref<21x4xf32, #tpu.memory_space<vmem>>, vector<21x1xf32>
    %c0_7 = arith.constant 0 : index
    %c1 = arith.constant 1 : index
    %19 = vector.load %arg4[%c0_7, %c1] : memref<21x4xf32, #tpu.memory_space<vmem>>, vector<21x1xf32>
    %cst_8 = arith.constant 5.000000e-01 : f32
    %20 = vector.broadcast %cst_8 : f32 to vector<21x1xf32>
    %21 = arith.cmpf ogt, %19, %20 : vector<21x1xf32>
    %c0_9 = arith.constant 0 : index
    %c2 = arith.constant 2 : index
    %22 = vector.load %arg4[%c0_9, %c2] : memref<21x4xf32, #tpu.memory_space<vmem>>, vector<21x1xf32>
    %c0_10 = arith.constant 0 : index
    %c3 = arith.constant 3 : index
    %23 = vector.load %arg4[%c0_10, %c3] : memref<21x4xf32, #tpu.memory_space<vmem>>, vector<21x1xf32>
    %cst_11 = arith.constant 0.000000e+00 : f32
    %24 = vector.broadcast %cst_11 : f32 to vector<21x128xf32>
    %25 = arith.subf %24, %5 : vector<21x128xf32>
    %26 = math.exp %25 : vector<21x128xf32>
    %cst_12 = arith.constant 1.000000e+00 : f32
    %27 = vector.broadcast %cst_12 : f32 to vector<21x128xf32>
    %28 = arith.addf %27, %26 : vector<21x128xf32>
    %29 = tpu.reciprocal %28 {approx = true} : vector<21x128xf32> -> vector<21x128xf32>
    %30 = tpu.reciprocal %26 {approx = true} : vector<21x128xf32> -> vector<21x128xf32>
    %31 = vector.shape_cast %21 : vector<21x1xi1> to vector<21x1xi1>
    %32 = vector.broadcast %31 : vector<21x1xi1> to vector<21x128xi1>
    %33 = arith.select %32, %30, %29 : vector<21x128xi1>, vector<21x128xf32>
    %34 = vector.broadcast %18 : vector<21x1xf32> to vector<21x128xf32>
    %35 = arith.mulf %33, %34 : vector<21x128xf32>
    %36 = vector.broadcast %22 : vector<21x1xf32> to vector<21x128xf32>
    %37 = arith.mulf %36, %14 : vector<21x128xf32>
    %38 = vector.broadcast %23 : vector<21x1xf32> to vector<21x128xf32>
    %39 = arith.mulf %38, %17 : vector<21x128xf32>
    %40 = arith.addf %37, %39 : vector<21x128xf32>
    %cst_13 = arith.constant 2.000000e+00 : f32
    %41 = vector.broadcast %cst_13 : f32 to vector<21x128xf32>
    %42 = arith.mulf %41, %40 : vector<21x128xf32>
    %43 = arith.addf %35, %42 : vector<21x128xf32>
    %c0_14 = arith.constant 0 : index
    %c0_15 = arith.constant 0 : index
    %44 = vector.load %arg5[%c0_14, %c0_15] : memref<21x128xf32, #tpu.memory_space<vmem>>, vector<21x128xf32>
    tpu.vector_store %arg5[%c0_14, %c0_15], %43 {strides = array<i32>} : memref<21x128xf32, #tpu.memory_space<vmem>>, vector<21x128xf32>,
    return
  }
  func.func @transform_0(%arg0: i32) -> (i32, i32) {
    %c0_i32 = arith.constant 0 : i32
    %c0_i32_0 = arith.constant 0 : i32
    %c0_i32_1 = arith.constant 0 : i32
    return %c0_i32, %c0_i32_0 : i32, i32
  }
  func.func @transform_1(%arg0: i32) -> (i32, i32) {
    %c0_i32 = arith.constant 0 : i32
    %c0_i32_0 = arith.constant 0 : i32
    return %c0_i32, %arg0 : i32, i32
  }
  func.func @transform_2(%arg0: i32) -> (i32, i32) {
    %c0_i32 = arith.constant 0 : i32
    %c0_i32_0 = arith.constant 0 : i32
    %c0_i32_1 = arith.constant 0 : i32
    return %c0_i32, %c0_i32_0 : i32, i32
  }
  func.func @transform_3(%arg0: i32) -> (i32, i32) {
    %c0_i32 = arith.constant 0 : i32
    %c0_i32_0 = arith.constant 0 : i32
    %c0_i32_1 = arith.constant 0 : i32
    return %c0_i32, %c0_i32_0 : i32, i32
  }
  func.func @transform_4(%arg0: i32) -> (i32, i32) {
    %c0_i32 = arith.constant 0 : i32
    %c0_i32_0 = arith.constant 0 : i32
    return %c0_i32, %arg0 : i32, i32
  }
}

</mosaic_0001>

<llo_original>
// kernel: forward.8
$region0: #{forward.8}
  #allocation0 [shape = 'u32[]', space=smem, size = 0x4, offset = 0x4, fixed_abs, tag = 'smem constant byte address 0x4 - core index']
  #allocation1 [shape = 'u32[144,128]{1,0:T(1,128)}', space=vmem, size = 0x12000, scoped, tag = 'internal scratch']
  %s0 = inlined_call_operand.vmem [shape: bf16[8,72], index: 0, kind: input, shape index: {}]
  %s1 = inlined_call_operand.vmem [shape: bf16[8,648], index: 1, kind: input, shape index: {}]
  %s2 = inlined_call_operand.vmem [shape: f32[8,1], index: 2, kind: input, shape index: {}]
  %s3 = inlined_call_operand.vmem [shape: bf16[8,648], index: 3, kind: output, shape index: {}]
  %s4 = sld [smem:[#allocation0]]
  $region22: #{forward.8} parent=0
    _
  %s6 = ssub.s32 1, %s4
  %s7 = scalar_select 0, %s6, %s4
  // Predicated region
  $region2: #{forward.8} parent=0 // pred_check
    _
  $region3: #{forward.8} parent=0 // pred_check_branch
    %9 = sbr.rel (0) target = $region5
  $region4: #{forward.8} parent=0 // pred_region
    _
  $region5: #{forward.8} parent=0 // pred_fallthru
    _
  // Predicated region
  $region6: #{forward.8} parent=0 // pred_check
    _
  $region7: #{forward.8} parent=0 // pred_check_branch
    %11 = sbr.rel (0) target = $region9
  $region8: #{forward.8} parent=0 // pred_region
    _
  $region9: #{forward.8} parent=0 // pred_fallthru
    _
  // Predicated region
  $region10: #{forward.8} parent=0 // pred_check
    _
  $region11: #{forward.8} parent=0 // pred_check_branch
    %13 = sbr.rel (0) target = $region13
  $region12: #{forward.8} parent=0 // pred_region
    _
  $region13: #{forward.8} parent=0 // pred_fallthru
    _
  %v15 = vld [vmem:[%s1] sm:$0xff]
  %v16 = vld [vmem:[%s1 + $0x8] sm:$0xff]
  %v17 = vld [vmem:[%s1 + $0x10] sm:$0xf]
  %v18 = vld [vmem:[%s1 + $0x10] sm:$0xff]
  %v22 = vunpack.c.l.b16 %v15
  %v23 = vunpack.c.h.b16 %v15
  %v24 = vunpack.c.l.b16 %v16
  %v25 = vunpack.c.h.b16 %v16
  %v26 = vunpack.c.l.b16 %v17
  %v27 = vpack.c.b16 %v22, %v22
  %v28 = vpack.c.b16 %v23, %v23
  %v29 = vpack.c.b16 %v24, %v24
  %v30 = vpack.c.b16 %v25, %v25
  %v31 = vpack.c.b16 %v26, %v26
  %32 = vrot.lane.b32.xlu0 %v27, 127
  %v33 = vpop.permute.xlu0 %32
  %34 = vrot.lane.b32.xlu0 %v28, 127
  %v35 = vpop.permute.xlu0 %34
  %36 = vrot.lane.b32.xlu0 %v29, 127
  %v37 = vpop.permute.xlu0 %36
  %38 = vrot.lane.b32.xlu0 %v30, 127
  %v39 = vpop.permute.xlu0 %38
  %40 = vrot.lane.b32.xlu0 %v31, 127
  %v41 = vpop.permute.xlu0 %40
  %vm42 = vcmask 1039360
  %v43 = vsel %vm42, %v33, %v35
  %v44 = vsel %vm42, %v35, %v37
  %v45 = vsel %vm42, %v37, %v39
  %v46 = vsel %vm42, %v39, %v41
  %47 = vrot.lane.b32.xlu0 %v27, 126
  %v48 = vpop.permute.xlu0 %47
  %49 = vrot.lane.b32.xlu0 %v28, 126
  %v50 = vpop.permute.xlu0 %49
  %51 = vrot.lane.b32.xlu0 %v29, 126
  %v52 = vpop.permute.xlu0 %51
  %53 = vrot.lane.b32.xlu0 %v30, 126
  %v54 = vpop.permute.xlu0 %53
  %55 = vrot.lane.b32.xlu0 %v31, 126
  %v56 = vpop.permute.xlu0 %55
  %vm57 = vcmask 1031168
  %v58 = vsel %vm57, %v48, %v50
  %v59 = vsel %vm57, %v50, %v52
  %v60 = vsel %vm57, %v52, %v54
  %v61 = vsel %vm57, %v54, %v56
  %62 = vrot.lane.b32.xlu0 %v27, 110
  %v63 = vpop.permute.xlu0 %62
  %64 = vrot.lane.b32.xlu0 %v28, 110
  %v65 = vpop.permute.xlu0 %64
  %66 = vrot.lane.b32.xlu0 %v29, 110
  %v67 = vpop.permute.xlu0 %66
  %68 = vrot.lane.b32.xlu0 %v30, 110
  %v69 = vpop.permute.xlu0 %68
  %70 = vrot.lane.b32.xlu0 %v31, 110
  %v71 = vpop.permute.xlu0 %70
  %vm72 = vcmask 900096
  %v73 = vsel %vm72, %v63, %v65
  %v74 = vsel %vm72, %v65, %v67
  %v75 = vsel %vm72, %v67, %v69
  %v76 = vsel %vm72, %v69, %v71
  %77 = vrot.lane.b32.xlu0 %v27, 109
  %v78 = vpop.permute.xlu0 %77
  %79 = vrot.lane.b32.xlu0 %v28, 109
  %v80 = vpop.permute.xlu0 %79
  %81 = vrot.lane.b32.xlu0 %v29, 109
  %v82 = vpop.permute.xlu0 %81
  %83 = vrot.lane.b32.xlu0 %v30, 109
  %v84 = vpop.permute.xlu0 %83
  %85 = vrot.lane.b32.xlu0 %v31, 109
  %v86 = vpop.permute.xlu0 %85
  %vm87 = vcmask 891904
  %v88 = vsel %vm87, %v78, %v80
  %v89 = vsel %vm87, %v80, %v82
  %v90 = vsel %vm87, %v82, %v84
  %v91 = vsel %vm87, %v84, %v86
  %92 = vrot.lane.b32.xlu0 %v27, 108
  %v93 = vpop.permute.xlu0 %92
  %94 = vrot.lane.b32.xlu0 %v28, 108
  %v95 = vpop.permute.xlu0 %94
  %96 = vrot.lane.b32.xlu0 %v29, 108
  %v97 = vpop.permute.xlu0 %96
  %98 = vrot.lane.b32.xlu0 %v30, 108
  %v99 = vpop.permute.xlu0 %98
  %100 = vrot.lane.b32.xlu0 %v31, 108
  %v101 = vpop.permute.xlu0 %100
  %vm102 = vcmask 883712
  %v103 = vsel %vm102, %v93, %v95
  %v104 = vsel %vm102, %v95, %v97
  %v105 = vsel %vm102, %v97, %v99
  %v106 = vsel %vm102, %v99, %v101
  %v108 = vunpack.c.l.b16 %v18
  %v109 = vunpack.c.h.b16 %v18
  %v110 = vpack.c.b16 %v108, %v108
  %v111 = vpack.c.b16 %v109, %v109
  %112 = vrot.lane.b32.xlu0 %v27, 92
  %v113 = vpop.permute.xlu0 %112
  %114 = vrot.lane.b32.xlu0 %v28, 92
  %v115 = vpop.permute.xlu0 %114
  %116 = vrot.lane.b32.xlu0 %v29, 92
  %v117 = vpop.permute.xlu0 %116
  %118 = vrot.lane.b32.xlu0 %v30, 92
  %v119 = vpop.permute.xlu0 %118
  %120 = vrot.lane.b32.xlu0 %v110, 92
  %v121 = vpop.permute.xlu0 %120
  %122 = vrot.lane.b32.xlu0 %v111, 92
  %v123 = vpop.permute.xlu0 %122
  %vm124 = vcmask 752640
  %v125 = vsel %vm124, %v113, %v115
  %v126 = vsel %vm124, %v115, %v117
  %v127 = vsel %vm124, %v117, %v119
  %v128 = vsel %vm124, %v119, %v121
  %v129 = vsel %vm124, %v121, %v123
  %130 = vrot.lane.b32.xlu0 %v27, 91
  %v131 = vpop.permute.xlu0 %130
  %132 = vrot.lane.b32.xlu0 %v28, 91
  %v133 = vpop.permute.xlu0 %132
  %134 = vrot.lane.b32.xlu0 %v29, 91
  %v135 = vpop.permute.xlu0 %134
  %136 = vrot.lane.b32.xlu0 %v30, 91
  %v137 = vpop.permute.xlu0 %136
  %138 = vrot.lane.b32.xlu0 %v110, 91
  %v139 = vpop.permute.xlu0 %138
  %140 = vrot.lane.b32.xlu0 %v111, 91
  %v141 = vpop.permute.xlu0 %140
  %vm142 = vcmask 744448
  %v143 = vsel %vm142, %v131, %v133
  %v144 = vsel %vm142, %v133, %v135
  %v145 = vsel %vm142, %v135, %v137
  %v146 = vsel %vm142, %v137, %v139
  %v147 = vsel %vm142, %v139, %v141
  %148 = vrot.lane.b32.xlu0 %v27, 90
  %v149 = vpop.permute.xlu0 %148
  %150 = vrot.lane.b32.xlu0 %v28, 90
  %v151 = vpop.permute.xlu0 %150
  %152 = vrot.lane.b32.xlu0 %v29, 90
  %v153 = vpop.permute.xlu0 %152
  %154 = vrot.lane.b32.xlu0 %v30, 90
  %v155 = vpop.permute.xlu0 %154
  %156 = vrot.lane.b32.xlu0 %v110, 90
  %v157 = vpop.permute.xlu0 %156
  %158 = vrot.lane.b32.xlu0 %v111, 90
  %v159 = vpop.permute.xlu0 %158
  %vm160 = vcmask 736256
  %v161 = vsel %vm160, %v149, %v151
  %v162 = vsel %vm160, %v151, %v153
  %v163 = vsel %vm160, %v153, %v155
  %v164 = vsel %vm160, %v155, %v157
  %v165 = vsel %vm160, %v157, %v159
  %vm166 = vcmask 1043456
  %v169 = vsel %vm166, %v27, %v43
  %v173 = vsel %vm166, %v28, %v44
  %v177 = vsel %vm166, %v29, %v45
  %v181 = vsel %vm166, %v30, %v46
  %v185 = vsel %vm166, %v31, %v41
  %v189 = vsel %vm166, %v58, %v73
  %v193 = vsel %vm166, %v59, %v74
  %v197 = vsel %vm166, %v60, %v75
  %v201 = vsel %vm166, %v61, %v76
  %v205 = vsel %vm166, %v56, %v71
  %v209 = vsel %vm166, %v88, %v103
  %v213 = vsel %vm166, %v89, %v104
  %v217 = vsel %vm166, %v90, %v105
  %v221 = vsel %vm166, %v91, %v106
  %v225 = vsel %vm166, %v86, %v101
  %v229 = vsel %vm166, %v125, %v143
  %v233 = vsel %vm166, %v126, %v144
  %v237 = vsel %vm166, %v127, %v145
  %v241 = vsel %vm166, %v128, %v146
  %v245 = vsel %vm166, %v129, %v147
  %v247 = vld [vmem:[%s0] sm:$0xf]
  %v248 = vld [vmem:[%s2] sm:$0xff]
  %250 = vset.pattern.permute.xlu0 0
  %251 = vperm.xlu0 %250, %v248
  %v252 = vpop.permute.xlu0 %251
  %vm254 = vcmask 588800
  %v256 = vsel %vm254, %v247, 0
  %v259 = vsel %vm166, %v161, 0
  %v262 = vsel %vm166, %v162, 0
  %v265 = vsel %vm166, %v163, 0
  %v268 = vsel %vm166, %v164, 0
  %v271 = vsel %vm166, %v165, 0
  %273 = vmatprep.subr.bf16.mxu0 0
  %274 = vmatpush1.bf16.msra.mxu0 0
  %275 = vmatprep.subr.bf16.mxu0 0
  %276 = vmatpush1.bf16.msra.mxu0 0
  %277 = vmatprep.subr.bf16.mxu0 0
  %278 = vmatpush1.bf16.msra.mxu0 0
  %279 = vmatprep.subr.bf16.mxu0 %v262
  %280 = vmatpush1.bf16.msra.mxu0 %v259
  %281 = vmatprep.subr.bf16.mxu0 %v233
  %282 = vmatpush1.bf16.msra.mxu0 %v229
  %283 = vmatprep.subr.bf16.mxu0 %v213
  %284 = vmatpush1.bf16.msra.mxu0 %v209
  %285 = vmatprep.subr.bf16.mxu0 %v193
  %286 = vmatpush1.bf16.msra.mxu0 %v189
  %287 = vmatprep.subr.bf16.mxu0 %v173
  %288 = vmatpush1.bf16.msra.mxu0 %v169
  %289 = vmatprep.subr.bf16.mxu0 0
  %290 = vmatpush2.bf16.msra.mxu0 0
  %291 = vmatprep.subr.bf16.mxu0 0
  %292 = vmatpush2.bf16.msra.mxu0 0
  %293 = vmatprep.subr.bf16.mxu0 0
  %294 = vmatpush2.bf16.msra.mxu0 0
  %295 = vmatprep.subr.bf16.mxu0 0
  %296 = vmatpush2.bf16.msra.mxu0 0
  %297 = vmatprep.subr.bf16.mxu0 0
  %298 = vmatpush2.bf16.msra.mxu0 0
  %299 = vmatprep.subr.bf16.mxu0 0
  %300 = vmatpush2.bf16.msra.mxu0 0
  %301 = vmatprep.subr.bf16.mxu0 0
  %302 = vmatpush2.bf16.msra.mxu0 0
  %303 = vmatprep.subr.bf16.mxu0 0
  %304 = vmatpush2.bf16.msra.mxu0 0
  %305 = vmatprep.mubr.bf16.mxu0 0
  %306 = vmatmul.mubr.bf16.gmra.mxu0 %v256
  %v307 = vpop.f32.mrf.mxu0
  %v308 = vadd.f32 %v252, %v307
  %v309 = vpop.f32.mrf.mxu0
  %v310 = vadd.f32 %v252, %v309
  %v311 = vpop.f32.mrf.mxu0
  %v312 = vpop.f32.mrf.mxu0
  %313 = vdwg.mxu0
  %314 = vmatprep.subr.bf16.mxu0 0
  %315 = vmatpush1.bf16.msra.mxu0 0
  %316 = vmatprep.subr.bf16.mxu0 0
  %317 = vmatpush1.bf16.msra.mxu0 0
  %318 = vmatprep.subr.bf16.mxu0 0
  %319 = vmatpush1.bf16.msra.mxu0 0
  %320 = vmatprep.subr.bf16.mxu0 %v268
  %321 = vmatpush1.bf16.msra.mxu0 %v265
  %322 = vmatprep.subr.bf16.mxu0 %v241
  %323 = vmatpush1.bf16.msra.mxu0 %v237
  %324 = vmatprep.subr.bf16.mxu0 %v221
  %325 = vmatpush1.bf16.msra.mxu0 %v217
  %326 = vmatprep.subr.bf16.mxu0 %v201
  %327 = vmatpush1.bf16.msra.mxu0 %v197
  %328 = vmatprep.subr.bf16.mxu0 %v181
  %329 = vmatpush1.bf16.msra.mxu0 %v177
  %330 = vmatprep.subr.bf16.mxu0 0
  %331 = vmatpush2.bf16.msra.mxu0 0
  %332 = vmatprep.subr.bf16.mxu0 0
  %333 = vmatpush2.bf16.msra.mxu0 0
  %334 = vmatprep.subr.bf16.mxu0 0
  %335 = vmatpush2.bf16.msra.mxu0 0
  %336 = vmatprep.subr.bf16.mxu0 0
  %337 = vmatpush2.bf16.msra.mxu0 0
  %338 = vmatprep.subr.bf16.mxu0 0
  %339 = vmatpush2.bf16.msra.mxu0 0
  %340 = vmatprep.subr.bf16.mxu0 0
  %341 = vmatpush2.bf16.msra.mxu0 0
  %342 = vmatprep.subr.bf16.mxu0 0
  %343 = vmatpush2.bf16.msra.mxu0 0
  %344 = vmatprep.subr.bf16.mxu0 0
  %345 = vmatpush2.bf16.msra.mxu0 0
  %346 = vmatprep.mubr.bf16.mxu0 0
  %347 = vmatmul.mubr.bf16.gmra.mxu0 %v256
  %v348 = vpop.f32.mrf.mxu0
  %v349 = vadd.f32 %v252, %v348
  %v350 = vpop.f32.mrf.mxu0
  %v351 = vadd.f32 %v252, %v350
  %v352 = vpop.f32.mrf.mxu0
  %v353 = vpop.f32.mrf.mxu0
  %354 = vdwg.mxu0
  %355 = vmatprep.subr.bf16.mxu0 0
  %356 = vmatpush1.bf16.msra.mxu0 0
  %357 = vmatprep.subr.bf16.mxu0 0
  %358 = vmatpush1.bf16.msra.mxu0 0
  %359 = vmatprep.subr.bf16.mxu0 0
  %360 = vmatpush1.bf16.msra.mxu0 0
  %361 = vmatprep.subr.bf16.mxu0 0
  %362 = vmatpush1.bf16.msra.mxu0 %v271
  %363 = vmatprep.subr.bf16.mxu0 0
  %364 = vmatpush1.bf16.msra.mxu0 %v245
  %365 = vmatprep.subr.bf16.mxu0 0
  %366 = vmatpush1.bf16.msra.mxu0 %v225
  %367 = vmatprep.subr.bf16.mxu0 0
  %368 = vmatpush1.bf16.msra.mxu0 %v205
  %369 = vmatprep.subr.bf16.mxu0 0
  %370 = vmatpush1.bf16.msra.mxu0 %v185
  %371 = vmatprep.subr.bf16.mxu0 0
  %372 = vmatpush2.bf16.msra.mxu0 0
  %373 = vmatprep.subr.bf16.mxu0 0
  %374 = vmatpush2.bf16.msra.mxu0 0
  %375 = vmatprep.subr.bf16.mxu0 0
  %376 = vmatpush2.bf16.msra.mxu0 0
  %377 = vmatprep.subr.bf16.mxu0 0
  %378 = vmatpush2.bf16.msra.mxu0 0
  %379 = vmatprep.subr.bf16.mxu0 0
  %380 = vmatpush2.bf16.msra.mxu0 0
  %381 = vmatprep.subr.bf16.mxu0 0
  %382 = vmatpush2.bf16.msra.mxu0 0
  %383 = vmatprep.subr.bf16.mxu0 0
  %384 = vmatpush2.bf16.msra.mxu0 0
  %385 = vmatprep.subr.bf16.mxu0 0
  %386 = vmatpush2.bf16.msra.mxu0 0
  %387 = vmatprep.mubr.bf16.mxu0 0
  %388 = vmatmul.mubr.bf16.gmra.mxu0 %v256
  %v389 = vpop.f32.mrf.mxu0
  %v390 = vadd.f32 %v252, %v389
  %v391 = vpop.f32.mrf.mxu0
  %v392 = vpop.f32.mrf.mxu0
  %v393 = vpop.f32.mrf.mxu0
  %394 = vdwg.mxu0
  %vm395 = vcmp.ge.f32.partialorder %v308, 0.0
  %vm396 = vcmp.ge.f32.partialorder %v310, 0.0
  %vm397 = vcmp.ge.f32.partialorder %v349, 0.0
  %vm398 = vcmp.ge.f32.partialorder %v351, 0.0
  %vm399 = vcmp.ge.f32.partialorder %v390, 0.0
  %v400 = vmul.f32 %v308, 0.1
  %v401 = vmul.f32 %v310, 0.1
  %v402 = vmul.f32 %v349, 0.1
  %v403 = vmul.f32 %v351, 0.1
  %v404 = vmul.f32 %v390, 0.1
  %v405 = vsel %vm395, %v308, %v400
  %v406 = vsel %vm396, %v310, %v401
  %v407 = vsel %vm397, %v349, %v402
  %v408 = vsel %vm398, %v351, %v403
  %v409 = vsel %vm399, %v390, %v404
  %v410 = vpack.c.bf16 %v405, %v405
  %v411 = vpack.c.bf16 %v406, %v406
  %v412 = vpack.c.bf16 %v407, %v407
  %v413 = vpack.c.bf16 %v408, %v408
  %v414 = vpack.c.bf16 %v409, %v409
  %v420 = vunpack.c.l.b16 %v410
  %v421 = vunpack.c.l.b16 %v411
  %v422 = vunpack.c.l.b16 %v412
  %v423 = vunpack.c.l.b16 %v413
  %v424 = vunpack.c.l.b16 %v414
  %v425 = vpack.c.b16 %v421, %v420
  %v426 = vpack.c.b16 %v423, %v422
  %v427 = vpack.c.b16 %v424, %v424
  %431 = vst [vmem:[%s3] sm:$0xff] %v425
  %432 = vst [vmem:[%s3 + $0x8] sm:$0xff] %v426
  %vm433 = vcmask 797696
  %434 = vst.msk [vmem:[%s3 + $0x10] sm:$0xf] %vm433, %v427
  // Predicated region
  $region14: #{forward.8} parent=0 // pred_check
    _
  $region15: #{forward.8} parent=0 // pred_check_branch
    %436 = sbr.rel (0) target = $region17
  $region16: #{forward.8} parent=0 // pred_region
    _
  $region17: #{forward.8} parent=0 // pred_fallthru
    _
  // Predicated region
  $region18: #{forward.8} parent=0 // pred_check
    _
  $region19: #{forward.8} parent=0 // pred_check_branch
    %438 = sbr.rel (0) target = $region21
  $region20: #{forward.8} parent=0 // pred_region
    _
  $region21: #{forward.8} parent=0 // pred_fallthru
    _

// kernel: forward.10
$region0: #{forward.10}
  #allocation0 [shape = 'u32[]', space=smem, size = 0x4, offset = 0x4, fixed_abs, tag = 'smem constant byte address 0x4 - core index']
  #allocation1 [shape = 'u32[144,128]{1,0:T(1,128)}', space=vmem, size = 0x12000, scoped, tag = 'internal scratch']
  %s0 = inlined_call_operand.vmem [shape: bf16[16,72], index: 0, kind: input, shape index: {}]
  %s1 = inlined_call_operand.vmem [shape: bf16[8,200], index: 1, kind: input, shape index: {}]
  %s2 = inlined_call_operand.vmem [shape: f32[16,1], index: 2, kind: input, shape index: {}]
  %s3 = inlined_call_operand.vmem [shape: bf16[16,200], index: 3, kind: output, shape index: {}]
  %s4 = sld [smem:[#allocation0]]
  $region45: #{forward.10} parent=0
    _
  %s6 = ssub.s32 1, %s4
  %s7 = scalar_select 0, %s6, %s4
  loop: start=0, step=1, limit=4
  $region2: #{forward.10} parent=0 // loop_pre_header
    _
  $region3: #{forward.10} parent=0 // loop_header
    %s9 = sphi 0, %s13
    %p10 = scmp.ge.s32.totalorder %s9, 4
    %s19 = sphi 0, %s21
    %s22 = sphi 0, %s19
    %s23 = sphi 0, %s22
    %s39 = sphi 0, %s23
    %s43 = sphi 0, %s43
    %s45 = sphi 0, %s43
    %s46 = sphi 0, %s45
    %s60 = sphi 0, %s46
    %s66 = sphi 0, %s68
    %s69 = sphi 0, %s66
    %s70 = sphi 0, %s69
    %s86 = sphi 0, %s70
    %s92 = sphi 0, %s94
    %s95 = sphi 0, %s92
    %s96 = sphi 0, %s95
    %s112 = sphi 0, %s96
  $region4: #{forward.10} parent=0 // loop_header_branch
    %12 = sbr.rel (%p10) target = $region8
  $region5: #{forward.10} parent=0 // loop_body
    %s14 = ssub.s32 %s9, 1
    %s15 = ssub.s32 %s9, 2
    %s16 = sadd.s32 %s9, 1
    %s17 = ssub.s32 %s9, %s16
    %p18 = scmp.eq.s32.totalorder %s17, 0
    %s20 = sadd.s32 %s19, 1
    %s21 = scalar_select %p18, %s19, %s20
    %p24 = pneg %p18
    %p25 = scmp.eq.s32.totalorder %s9, 1
    %p26 = por %p24, %p25
    %p27 = scmp.ne.s32.totalorder %s19, %s22
    %p28 = scmp.eq.s32.totalorder %s9, 0
    %p29 = por %p27, %p28
    %p30 = scmp.ne.s32.totalorder %s19, %s22
    %p31 = scmp.eq.s32.totalorder %s14, 1
    %p32 = por %p30, %p31
    %p33 = scmp.ne.s32.totalorder %s22, %s23
    %p34 = scmp.eq.s32.totalorder %s14, 0
    %p35 = por %p33, %p34
    %p36 = scmp.ne.s32.totalorder %s22, %s23
    %p37 = scmp.eq.s32.totalorder %s15, 1
    %p38 = por %p36, %p37
    %p40 = scmp.ne.s32.totalorder %s23, %s39
    %p41 = scmp.eq.s32.totalorder %s15, 0
    %p42 = por %p40, %p41
    %s44 = sadd.s32 %s43, 1
    %p47 = scmp.eq.s32.totalorder %s9, 1
    %p48 = scmp.ne.s32.totalorder %s43, %s45
    %p49 = scmp.eq.s32.totalorder %s9, 0
    %p50 = por %p48, %p49
    %p51 = scmp.ne.s32.totalorder %s43, %s45
    %p52 = scmp.eq.s32.totalorder %s14, 1
    %p53 = por %p51, %p52
    %p54 = scmp.ne.s32.totalorder %s45, %s46
    %p55 = scmp.eq.s32.totalorder %s14, 0
    %p56 = por %p54, %p55
    %p57 = scmp.ne.s32.totalorder %s45, %s46
    %p58 = scmp.eq.s32.totalorder %s15, 1
    %p59 = por %p57, %p58
    %p61 = scmp.ne.s32.totalorder %s46, %s60
    %p62 = scmp.eq.s32.totalorder %s15, 0
    %p63 = por %p61, %p62
    %s64 = ssub.s32 %s9, %s16
    %p65 = scmp.eq.s32.totalorder %s64, 0
    %s67 = sadd.s32 %s66, 1
    %s68 = scalar_select %p65, %s66, %s67
    %p71 = pneg %p65
    %p72 = scmp.eq.s32.totalorder %s9, 1
    %p73 = por %p71, %p72
    %p74 = scmp.ne.s32.totalorder %s66, %s69
    %p75 = scmp.eq.s32.totalorder %s9, 0
    %p76 = por %p74, %p75
    %p77 = scmp.ne.s32.totalorder %s66, %s69
    %p78 = scmp.eq.s32.totalorder %s14, 1
    %p79 = por %p77, %p78
    %p80 = scmp.ne.s32.totalorder %s69, %s70
    %p81 = scmp.eq.s32.totalorder %s14, 0
    %p82 = por %p80, %p81
    %p83 = scmp.ne.s32.totalorder %s69, %s70
    %p84 = scmp.eq.s32.totalorder %s15, 1
    %p85 = por %p83, %p84
    %p87 = scmp.ne.s32.totalorder %s70, %s86
    %p88 = scmp.eq.s32.totalorder %s15, 0
    %p89 = por %p87, %p88
    %s90 = ssub.s32 %s9, %s16
    %p91 = scmp.eq.s32.totalorder %s90, 0
    %s93 = sadd.s32 %s92, 1
    %s94 = scalar_select %p91, %s92, %s93
    %p97 = pneg %p91
    %p98 = scmp.eq.s32.totalorder %s9, 1
    %p99 = por %p97, %p98
    %p100 = scmp.ne.s32.totalorder %s92, %s95
    %p101 = scmp.eq.s32.totalorder %s9, 0
    %p102 = por %p100, %p101
    %p103 = scmp.ne.s32.totalorder %s92, %s95
    %p104 = scmp.eq.s32.totalorder %s14, 1
    %p105 = por %p103, %p104
    %p106 = scmp.ne.s32.totalorder %s95, %s96
    %p107 = scmp.eq.s32.totalorder %s14, 0
    %p108 = por %p106, %p107
    %p109 = scmp.ne.s32.totalorder %s95, %s96
    %p110 = scmp.eq.s32.totalorder %s15, 1
    %p111 = por %p109, %p110
    %p113 = scmp.ne.s32.totalorder %s96, %s112
    %p114 = scmp.eq.s32.totalorder %s15, 0
    %p115 = por %p113, %p114
    %p116 = scmp.le.s32.totalorder 1, %s9
    %p117 = scmp.lt.s32.totalorder %s9, 3
    %p118 = pnand %p116, %p117
    %p119 = pneg %p118
    // Predicated region
    $region9: #{forward.10} parent=5 // pred_check
      _
    $region10: #{forward.10} parent=5 // pred_check_branch
      %121 = sbr.rel (%p118) target = $region12
    $region11: #{forward.10} parent=5 // pred_region
      %s122 = ssub.s32 %s9, 1
      // Predicated region
      $region13: #{forward.10} parent=11 // pred_check
        %p123 = pneg %p56
      $region14: #{forward.10} parent=11 // pred_check_branch
        %125 = sbr.rel (%p123) target = $region16
      $region15: #{forward.10} parent=11 // pred_region
        _
      $region16: #{forward.10} parent=11 // pred_fallthru
        _
    $region12: #{forward.10} parent=5 // pred_fallthru
      _
    %p126 = scmp.lt.s32.totalorder %s9, 2
    // Predicated region
    $region17: #{forward.10} parent=5 // pred_check
      %p127 = pneg %p126
    $region18: #{forward.10} parent=5 // pred_check_branch
      %129 = sbr.rel (%p127) target = $region20
    $region19: #{forward.10} parent=5 // pred_region
      // Predicated region
      $region21: #{forward.10} parent=19 // pred_check
        %p130 = pneg %p29
      $region22: #{forward.10} parent=19 // pred_check_branch
        %132 = sbr.rel (%p130) target = $region24
      $region23: #{forward.10} parent=19 // pred_region
        %p133 = scmp.lt.s32.totalorder %s9, 1
        %s134 = scalar_select %p133, %s9, 1
        %s135 = smul.addr %s134, 4
        %s136 = scalar_lea.vmem %s0, %s135
      $region24: #{forward.10} parent=19 // pred_fallthru
        _
      // Predicated region
      $region25: #{forward.10} parent=19 // pred_check
        %p137 = pneg %p76
      $region26: #{forward.10} parent=19 // pred_check_branch
        %139 = sbr.rel (%p137) target = $region28
      $region27: #{forward.10} parent=19 // pred_region
        %p140 = scmp.lt.s32.totalorder %s9, 1
        %s141 = scalar_select %p140, %s9, 1
        %s142 = smul.addr %s141, 8
        %s143 = scalar_lea.vmem %s2, %s142
      $region28: #{forward.10} parent=19 // pred_fallthru
        _
    $region20: #{forward.10} parent=5 // pred_fallthru
      _
    %p144 = scmp.le.s32.totalorder 1, %s9
    %p145 = scmp.lt.s32.totalorder %s9, 3
    %p146 = pnand %p144, %p145
    %p147 = pneg %p146
    // Predicated region
    $region29: #{forward.10} parent=5 // pred_check
      _
    $region30: #{forward.10} parent=5 // pred_check_branch
      %149 = sbr.rel (%p146) target = $region32
    $region31: #{forward.10} parent=5 // pred_region
      %s150 = ssub.s32 %s9, 1
      %p151 = scmp.lt.s32.totalorder %s14, 1
      %s152 = scalar_select %p151, %s14, 1
      %s153 = smul.addr %s152, 4
      %s154 = scalar_lea.vmem %s0, %s153
      %p155 = pneg %p35
      %p156 = pneg %p32
      %p157 = pneg %p56
      %p158 = pneg %p53
      %p159 = scmp.lt.s32.totalorder %s14, 1
      %s160 = scalar_select %p159, %s14, 1
      %s161 = smul.addr %s160, 8
      %s162 = scalar_lea.vmem %s2, %s161
      %p163 = pneg %p82
      %p164 = pneg %p79
      %p165 = pneg %p108
      %p166 = pneg %p105
      %p167 = scmp.lt.s32.totalorder %s14, 1
      %s168 = scalar_select %p167, %s14, 1
      %s169 = smul.addr %s168, 2
      %s170 = smul.addr %s169, 4
      %s171 = scalar_lea.vmem %s3, %s170
      %p172 = scmp.lt.s32.totalorder %s14, 1
      %s173 = scalar_select %p172, %s14, 1
      %s174 = smul.addr %s173, 4
      %s175 = scalar_lea.vmem %s0, %s174
      %p176 = scmp.lt.s32.totalorder %s14, 1
      %s177 = scalar_select %p176, %s14, 1
      %s178 = smul.addr %s177, 8
      %s179 = scalar_lea.vmem %s2, %s178
      %p180 = scmp.lt.s32.totalorder %s14, 1
      %s181 = scalar_select %p180, %s14, 1
      %s182 = smul.addr %s181, 2
      %s183 = smul.addr %s182, 4
      %s184 = scalar_lea.vmem %s3, %s183
      %v186 = vld [vmem:[%s1] sm:$0xff]
      %v188 = vunpack.c.l.b16 %v186
      %v189 = vunpack.c.h.b16 %v186
      %v190 = vpack.c.b16 %v188, %v188
      %v191 = vpack.c.b16 %v189, %v189
      %192 = vrot.lane.b32.xlu0 %v190, 127
      %v193 = vpop.permute.xlu0 %192
      %194 = vrot.lane.b32.xlu0 %v191, 127
      %v195 = vpop.permute.xlu0 %194
      %vm196 = vcmask 1039360
      %v197 = vsel %vm196, %v193, %v195
      %198 = vrot.lane.b32.xlu0 %v190, 126
      %v199 = vpop.permute.xlu0 %198
      %200 = vrot.lane.b32.xlu0 %v191, 126
      %v201 = vpop.permute.xlu0 %200
      %vm202 = vcmask 1031168
      %v203 = vsel %vm202, %v199, %v201
      %204 = vrot.lane.b32.xlu0 %v190, 118
      %v205 = vpop.permute.xlu0 %204
      %206 = vrot.lane.b32.xlu0 %v191, 118
      %v207 = vpop.permute.xlu0 %206
      %vm208 = vcmask 965632
      %v209 = vsel %vm208, %v205, %v207
      %210 = vrot.lane.b32.xlu0 %v190, 117
      %v211 = vpop.permute.xlu0 %210
      %212 = vrot.lane.b32.xlu0 %v191, 117
      %v213 = vpop.permute.xlu0 %212
      %vm214 = vcmask 957440
      %v215 = vsel %vm214, %v211, %v213
      %216 = vrot.lane.b32.xlu0 %v190, 116
      %v217 = vpop.permute.xlu0 %216
      %218 = vrot.lane.b32.xlu0 %v191, 116
      %v219 = vpop.permute.xlu0 %218
      %vm220 = vcmask 949248
      %v221 = vsel %vm220, %v217, %v219
      %222 = vrot.lane.b32.xlu0 %v190, 108
      %v223 = vpop.permute.xlu0 %222
      %224 = vrot.lane.b32.xlu0 %v191, 108
      %v225 = vpop.permute.xlu0 %224
      %vm226 = vcmask 883712
      %v227 = vsel %vm226, %v223, %v225
      %228 = vrot.lane.b32.xlu0 %v190, 107
      %v229 = vpop.permute.xlu0 %228
      %230 = vrot.lane.b32.xlu0 %v191, 107
      %v231 = vpop.permute.xlu0 %230
      %vm232 = vcmask 875520
      %v233 = vsel %vm232, %v229, %v231
      %234 = vrot.lane.b32.xlu0 %v190, 106
      %v235 = vpop.permute.xlu0 %234
      %236 = vrot.lane.b32.xlu0 %v191, 106
      %v237 = vpop.permute.xlu0 %236
      %vm238 = vcmask 867328
      %v239 = vsel %vm238, %v235, %v237
      %vm240 = vcmask 1043456
      %v243 = vsel %vm240, %v190, %v197
      %v247 = vsel %vm240, %v191, %v195
      %v251 = vsel %vm240, %v203, %v209
      %v255 = vsel %vm240, %v201, %v207
      %v259 = vsel %vm240, %v215, %v221
      %v263 = vsel %vm240, %v213, %v219
      %v267 = vsel %vm240, %v227, %v233
      %v271 = vsel %vm240, %v225, %v231
      %v273 = vld [vmem:[%s175] sm:$0xf]
      %v274 = vld [vmem:[%s179] sm:$0xff]
      %276 = vset.pattern.permute.xlu0 0
      %277 = vperm.xlu0 %276, %v274
      %v278 = vpop.permute.xlu0 %277
      %vm280 = vcmask 588800
      %v282 = vsel %vm280, %v273, 0
      %v285 = vsel %vm240, %v239, 0
      %v288 = vsel %vm240, %v237, 0
      %290 = vmatprep.subr.bf16.mxu0 0
      %291 = vmatpush1.bf16.msra.mxu0 0
      %292 = vmatprep.subr.bf16.mxu0 0
      %293 = vmatpush1.bf16.msra.mxu0 0
      %294 = vmatprep.subr.bf16.mxu0 0
      %295 = vmatpush1.bf16.msra.mxu0 0
      %296 = vmatprep.subr.bf16.mxu0 %v288
      %297 = vmatpush1.bf16.msra.mxu0 %v285
      %298 = vmatprep.subr.bf16.mxu0 %v271
      %299 = vmatpush1.bf16.msra.mxu0 %v267
      %300 = vmatprep.subr.bf16.mxu0 %v263
      %301 = vmatpush1.bf16.msra.mxu0 %v259
      %302 = vmatprep.subr.bf16.mxu0 %v255
      %303 = vmatpush1.bf16.msra.mxu0 %v251
      %304 = vmatprep.subr.bf16.mxu0 %v247
      %305 = vmatpush1.bf16.msra.mxu0 %v243
      %306 = vmatprep.subr.bf16.mxu0 0
      %307 = vmatpush2.bf16.msra.mxu0 0
      %308 = vmatprep.subr.bf16.mxu0 0
      %309 = vmatpush2.bf16.msra.mxu0 0
      %310 = vmatprep.subr.bf16.mxu0 0
      %311 = vmatpush2.bf16.msra.mxu0 0
      %312 = vmatprep.subr.bf16.mxu0 0
      %313 = vmatpush2.bf16.msra.mxu0 0
      %314 = vmatprep.subr.bf16.mxu0 0
      %315 = vmatpush2.bf16.msra.mxu0 0
      %316 = vmatprep.subr.bf16.mxu0 0
      %317 = vmatpush2.bf16.msra.mxu0 0
      %318 = vmatprep.subr.bf16.mxu0 0
      %319 = vmatpush2.bf16.msra.mxu0 0
      %320 = vmatprep.subr.bf16.mxu0 0
      %321 = vmatpush2.bf16.msra.mxu0 0
      %322 = vmatprep.mubr.bf16.mxu0 0
      %323 = vmatmul.mubr.bf16.gmra.mxu0 %v282
      %v324 = vpop.f32.mrf.mxu0
      %v325 = vadd.f32 %v278, %v324
      %v326 = vpop.f32.mrf.mxu0
      %v327 = vadd.f32 %v278, %v326
      %v328 = vpop.f32.mrf.mxu0
      %v329 = vpop.f32.mrf.mxu0
      %330 = vdwg.mxu0
      %vm331 = vcmp.ge.f32.partialorder %v325, 0.0
      %vm332 = vcmp.ge.f32.partialorder %v327, 0.0
      %v333 = vmul.f32 %v325, 0.1
      %v334 = vmul.f32 %v327, 0.1
      %v335 = vsel %vm331, %v325, %v333
      %v336 = vsel %vm332, %v327, %v334
      %v337 = vpack.c.bf16 %v335, %v335
      %v338 = vpack.c.bf16 %v336, %v336
      %v341 = vunpack.c.l.b16 %v337
      %v342 = vunpack.c.l.b16 %v338
      %v343 = vpack.c.b16 %v342, %v341
      %vm345 = vcmask 408580
      %vm346 = vmor %vm345, %vm240
      %347 = vst.msk [vmem:[%s184] sm:$0xff] %vm346, %v343
      %p348 = scmp.lt.s32.totalorder %s14, 1
      %s349 = scalar_select %p348, %s14, 1
      %s350 = smul.addr %s349, 2
      %s351 = smul.addr %s350, 4
      %s352 = scalar_lea.vmem %s3, %s351
      // Predicated region
      $region33: #{forward.10} parent=31 // pred_check
        %p353 = pneg %p105
      $region34: #{forward.10} parent=31 // pred_check_branch
        %355 = sbr.rel (%p353) target = $region36
      $region35: #{forward.10} parent=31 // pred_region
        _
      $region36: #{forward.10} parent=31 // pred_fallthru
        _
    $region32: #{forward.10} parent=5 // pred_fallthru
      _
    %p356 = scmp.le.s32.totalorder 2, %s9
    // Predicated region
    $region37: #{forward.10} parent=5 // pred_check
      %p357 = pneg %p356
    $region38: #{forward.10} parent=5 // pred_check_branch
      %359 = sbr.rel (%p357) target = $region40
    $region39: #{forward.10} parent=5 // pred_region
      %s360 = ssub.s32 %s9, 2
      // Predicated region
      $region41: #{forward.10} parent=39 // pred_check
        %p361 = pneg %p111
      $region42: #{forward.10} parent=39 // pred_check_branch
        %363 = sbr.rel (%p361) target = $region44
      $region43: #{forward.10} parent=39 // pred_region
        %p364 = scmp.lt.s32.totalorder %s15, 1
        %s365 = scalar_select %p364, %s15, 1
        %s366 = smul.addr %s365, 2
        %s367 = smul.addr %s366, 4
        %s368 = scalar_lea.vmem %s3, %s367
      $region44: #{forward.10} parent=39 // pred_fallthru
        _
    $region40: #{forward.10} parent=5 // pred_fallthru
      _
  $region6: #{forward.10} parent=0 // loop_footer
    %s13 = sadd.s32 1, %s9
  $region7: #{forward.10} parent=0 // loop_footer_branch
    %8 = sbr.rel target = $region3
  $region8: #{forward.10} parent=0 // loop_exit
    _

// kernel: forward.9
$region0: #{forward.9}
  #allocation0 [shape = 'u32[]', space=smem, size = 0x4, offset = 0x4, fixed_abs, tag = 'smem constant byte address 0x4 - core index']
  #allocation1 [shape = 'u32[144,128]{1,0:T(1,128)}', space=vmem, size = 0x12000, scoped, tag = 'internal scratch']
  %s0 = inlined_call_operand.vmem [shape: bf16[128,32], index: 0, kind: input, shape index: {}]
  %s1 = inlined_call_operand.vmem [shape: bf16[16,8], index: 1, kind: input, shape index: {}]
  %s2 = inlined_call_operand.vmem [shape: bf16[16,8], index: 2, kind: input, shape index: {}]
  %s3 = inlined_call_operand.vmem [shape: bf16[128,8], index: 3, kind: output, shape index: {}]
  %s4 = sld [smem:[#allocation0]]
  $region45: #{forward.9} parent=0
    _
  %s6 = ssub.s32 1, %s4
  %s7 = scalar_select 0, %s6, %s4
  loop: start=0, step=1, limit=4
  $region2: #{forward.9} parent=0 // loop_pre_header
    _
  $region3: #{forward.9} parent=0 // loop_header
    %s9 = sphi 0, %s13
    %p10 = scmp.ge.s32.totalorder %s9, 4
    %s19 = sphi 0, %s21
    %s22 = sphi 0, %s19
    %s23 = sphi 0, %s22
    %s39 = sphi 0, %s23
    %s43 = sphi 0, %s43
    %s45 = sphi 0, %s43
    %s46 = sphi 0, %s45
    %s60 = sphi 0, %s46
    %s64 = sphi 0, %s64
    %s66 = sphi 0, %s64
    %s67 = sphi 0, %s66
    %s81 = sphi 0, %s67
    %s87 = sphi 0, %s89
    %s90 = sphi 0, %s87
    %s91 = sphi 0, %s90
    %s107 = sphi 0, %s91
  $region4: #{forward.9} parent=0 // loop_header_branch
    %12 = sbr.rel (%p10) target = $region8
  $region5: #{forward.9} parent=0 // loop_body
    %s14 = ssub.s32 %s9, 1
    %s15 = ssub.s32 %s9, 2
    %s16 = sadd.s32 %s9, 1
    %s17 = ssub.s32 %s9, %s16
    %p18 = scmp.eq.s32.totalorder %s17, 0
    %s20 = sadd.s32 %s19, 1
    %s21 = scalar_select %p18, %s19, %s20
    %p24 = pneg %p18
    %p25 = scmp.eq.s32.totalorder %s9, 1
    %p26 = por %p24, %p25
    %p27 = scmp.ne.s32.totalorder %s19, %s22
    %p28 = scmp.eq.s32.totalorder %s9, 0
    %p29 = por %p27, %p28
    %p30 = scmp.ne.s32.totalorder %s19, %s22
    %p31 = scmp.eq.s32.totalorder %s14, 1
    %p32 = por %p30, %p31
    %p33 = scmp.ne.s32.totalorder %s22, %s23
    %p34 = scmp.eq.s32.totalorder %s14, 0
    %p35 = por %p33, %p34
    %p36 = scmp.ne.s32.totalorder %s22, %s23
    %p37 = scmp.eq.s32.totalorder %s15, 1
    %p38 = por %p36, %p37
    %p40 = scmp.ne.s32.totalorder %s23, %s39
    %p41 = scmp.eq.s32.totalorder %s15, 0
    %p42 = por %p40, %p41
    %s44 = sadd.s32 %s43, 1
    %p47 = scmp.eq.s32.totalorder %s9, 1
    %p48 = scmp.ne.s32.totalorder %s43, %s45
    %p49 = scmp.eq.s32.totalorder %s9, 0
    %p50 = por %p48, %p49
    %p51 = scmp.ne.s32.totalorder %s43, %s45
    %p52 = scmp.eq.s32.totalorder %s14, 1
    %p53 = por %p51, %p52
    %p54 = scmp.ne.s32.totalorder %s45, %s46
    %p55 = scmp.eq.s32.totalorder %s14, 0
    %p56 = por %p54, %p55
    %p57 = scmp.ne.s32.totalorder %s45, %s46
    %p58 = scmp.eq.s32.totalorder %s15, 1
    %p59 = por %p57, %p58
    %p61 = scmp.ne.s32.totalorder %s46, %s60
    %p62 = scmp.eq.s32.totalorder %s15, 0
    %p63 = por %p61, %p62
    %s65 = sadd.s32 %s64, 1
    %p68 = scmp.eq.s32.totalorder %s9, 1
    %p69 = scmp.ne.s32.totalorder %s64, %s66
    %p70 = scmp.eq.s32.totalorder %s9, 0
    %p71 = por %p69, %p70
    %p72 = scmp.ne.s32.totalorder %s64, %s66
    %p73 = scmp.eq.s32.totalorder %s14, 1
    %p74 = por %p72, %p73
    %p75 = scmp.ne.s32.totalorder %s66, %s67
    %p76 = scmp.eq.s32.totalorder %s14, 0
    %p77 = por %p75, %p76
    %p78 = scmp.ne.s32.totalorder %s66, %s67
    %p79 = scmp.eq.s32.totalorder %s15, 1
    %p80 = por %p78, %p79
    %p82 = scmp.ne.s32.totalorder %s67, %s81
    %p83 = scmp.eq.s32.totalorder %s15, 0
    %p84 = por %p82, %p83
    %s85 = ssub.s32 %s9, %s16
    %p86 = scmp.eq.s32.totalorder %s85, 0
    %s88 = sadd.s32 %s87, 1
    %s89 = scalar_select %p86, %s87, %s88
    %p92 = pneg %p86
    %p93 = scmp.eq.s32.totalorder %s9, 1
    %p94 = por %p92, %p93
    %p95 = scmp.ne.s32.totalorder %s87, %s90
    %p96 = scmp.eq.s32.totalorder %s9, 0
    %p97 = por %p95, %p96
    %p98 = scmp.ne.s32.totalorder %s87, %s90
    %p99 = scmp.eq.s32.totalorder %s14, 1
    %p100 = por %p98, %p99
    %p101 = scmp.ne.s32.totalorder %s90, %s91
    %p102 = scmp.eq.s32.totalorder %s14, 0
    %p103 = por %p101, %p102
    %p104 = scmp.ne.s32.totalorder %s90, %s91
    %p105 = scmp.eq.s32.totalorder %s15, 1
    %p106 = por %p104, %p105
    %p108 = scmp.ne.s32.totalorder %s91, %s107
    %p109 = scmp.eq.s32.totalorder %s15, 0
    %p110 = por %p108, %p109
    %p111 = scmp.le.s32.totalorder 1, %s9
    %p112 = scmp.lt.s32.totalorder %s9, 3
    %p113 = pnand %p111, %p112
    %p114 = pneg %p113
    // Predicated region
    $region9: #{forward.9} parent=5 // pred_check
      _
    $region10: #{forward.9} parent=5 // pred_check_branch
      %116 = sbr.rel (%p113) target = $region12
    $region11: #{forward.9} parent=5 // pred_region
      %s117 = ssub.s32 %s9, 1
      // Predicated region
      $region13: #{forward.9} parent=11 // pred_check
        %p118 = pneg %p56
      $region14: #{forward.9} parent=11 // pred_check_branch
        %120 = sbr.rel (%p118) target = $region16
      $region15: #{forward.9} parent=11 // pred_region
        _
      $region16: #{forward.9} parent=11 // pred_fallthru
        _
      // Predicated region
      $region17: #{forward.9} parent=11 // pred_check
        %p121 = pneg %p77
      $region18: #{forward.9} parent=11 // pred_check_branch
        %123 = sbr.rel (%p121) target = $region20
      $region19: #{forward.9} parent=11 // pred_region
        _
      $region20: #{forward.9} parent=11 // pred_fallthru
        _
    $region12: #{forward.9} parent=5 // pred_fallthru
      _
    %p124 = scmp.lt.s32.totalorder %s9, 2
    // Predicated region
    $region21: #{forward.9} parent=5 // pred_check
      %p125 = pneg %p124
    $region22: #{forward.9} parent=5 // pred_check_branch
      %127 = sbr.rel (%p125) target = $region24
    $region23: #{forward.9} parent=5 // pred_region
      // Predicated region
      $region25: #{forward.9} parent=23 // pred_check
        %p128 = pneg %p29
      $region26: #{forward.9} parent=23 // pred_check_branch
        %130 = sbr.rel (%p128) target = $region28
      $region27: #{forward.9} parent=23 // pred_region
        %s131 = smul.u32 8, %s9
        %p132 = scmp.lt.s32.totalorder %s131, 15
        %s133 = scalar_select %p132, %s131, 15
        %s134 = smul.addr %s133, 4
        %s135 = scalar_lea.vmem %s0, %s134
        %s136 = smul.u32 8, %s9
      $region28: #{forward.9} parent=23 // pred_fallthru
        _
    $region24: #{forward.9} parent=5 // pred_fallthru
      _
    %p137 = scmp.le.s32.totalorder 1, %s9
    %p138 = scmp.lt.s32.totalorder %s9, 3
    %p139 = pnand %p137, %p138
    %p140 = pneg %p139
    // Predicated region
    $region29: #{forward.9} parent=5 // pred_check
      _
    $region30: #{forward.9} parent=5 // pred_check_branch
      %142 = sbr.rel (%p139) target = $region32
    $region31: #{forward.9} parent=5 // pred_region
      %s143 = ssub.s32 %s9, 1
      %s144 = smul.u32 8, %s14
      %p145 = scmp.lt.s32.totalorder %s144, 15
      %s146 = scalar_select %p145, %s144, 15
      %s147 = smul.addr %s146, 4
      %s148 = scalar_lea.vmem %s0, %s147
      %p149 = pneg %p35
      %p150 = pneg %p32
      %p151 = pneg %p56
      %p152 = pneg %p53
      %p153 = pneg %p77
      %p154 = pneg %p74
      %p155 = pneg %p103
      %p156 = pneg %p100
      %s157 = smul.u32 8, %s14
      %p158 = scmp.lt.s32.totalorder %s157, 15
      %s159 = scalar_select %p158, %s157, 15
      %s160 = smul.addr %s159, 4
      %s161 = scalar_lea.vmem %s3, %s160
      %s162 = smul.u32 8, %s14
      %p163 = scmp.lt.s32.totalorder %s162, 15
      %s164 = scalar_select %p163, %s162, 15
      %s165 = smul.addr %s164, 4
      %s166 = scalar_lea.vmem %s0, %s165
      %s167 = smul.u32 8, %s14
      %s168 = smul.u32 8, %s14
      %p169 = scmp.lt.s32.totalorder %s168, 15
      %s170 = scalar_select %p169, %s168, 15
      %s171 = smul.addr %s170, 4
      %s172 = scalar_lea.vmem %s3, %s171
      %s173 = smul.u32 8, %s14
      %v175 = vld [vmem:[%s166] sm:$0xf]
      %v176 = vld [vmem:[%s166 + $0x4] sm:$0xf]
      %v177 = vld [vmem:[%s166 + $0x8] sm:$0xf]
      %v178 = vld [vmem:[%s166 + $0xc] sm:$0xf]
      %v179 = vld [vmem:[%s166 + $0x10] sm:$0xf]
      %v180 = vld [vmem:[%s166 + $0x14] sm:$0xf]
      %v181 = vld [vmem:[%s166 + $0x18] sm:$0xf]
      %v182 = vld [vmem:[%s166 + $0x1c] sm:$0xf]
      %191 = vrot.lane.b32.xlu0 %v175, 112
      %v192 = vpop.permute.xlu0 %191
      %193 = vrot.lane.b32.xlu0 %v176, 112
      %v194 = vpop.permute.xlu0 %193
      %195 = vrot.lane.b32.xlu0 %v177, 112
      %v196 = vpop.permute.xlu0 %195
      %197 = vrot.lane.b32.xlu0 %v178, 112
      %v198 = vpop.permute.xlu0 %197
      %199 = vrot.lane.b32.xlu0 %v179, 112
      %v200 = vpop.permute.xlu0 %199
      %201 = vrot.lane.b32.xlu0 %v180, 112
      %v202 = vpop.permute.xlu0 %201
      %203 = vrot.lane.b32.xlu0 %v181, 112
      %v204 = vpop.permute.xlu0 %203
      %205 = vrot.lane.b32.xlu0 %v182, 112
      %v206 = vpop.permute.xlu0 %205
      %v215 = vmax.bf16 %v175, %v192
      %v216 = vmax.bf16 %v176, %v194
      %v217 = vmax.bf16 %v177, %v196
      %v218 = vmax.bf16 %v178, %v198
      %v219 = vmax.bf16 %v179, %v200
      %v220 = vmax.bf16 %v180, %v202
      %v221 = vmax.bf16 %v181, %v204
      %v222 = vmax.bf16 %v182, %v206
      %v223 = vld [vmem:[%s1] sm:$0xf]
      %v224 = vld [vmem:[%s1 + $0x4] sm:$0xf]
      %v233 = vunpack.c.l.b16 %v215
      %v234 = vunpack.c.l.b16 %v216
      %v235 = vunpack.c.l.b16 %v217
      %v236 = vunpack.c.l.b16 %v218
      %v237 = vunpack.c.l.b16 %v219
      %v238 = vunpack.c.l.b16 %v220
      %v239 = vunpack.c.l.b16 %v221
      %v240 = vunpack.c.l.b16 %v222
      %v241 = vpack.c.b16 %v234, %v233
      %v242 = vpack.c.b16 %v236, %v235
      %v243 = vpack.c.b16 %v238, %v237
      %v244 = vpack.c.b16 %v240, %v239
      %v247 = vunpack.c.l.b16 %v223
      %v248 = vunpack.c.l.b16 %v224
      %v249 = vpack.c.b16 %v248, %v247
      %vm251 = vcmask 130048
      %v253 = vsel %vm251, %v241, 0
      %v256 = vsel %vm251, %v242, 0
      %v259 = vsel %vm251, %v243, 0
      %v262 = vsel %vm251, %v244, 0
      %264 = vmatprep.subr.bf16.mxu0 0
      %265 = vmatpush1.bf16.msra.mxu0 0
      %266 = vmatprep.subr.bf16.mxu0 0
      %267 = vmatpush1.bf16.msra.mxu0 0
      %268 = vmatprep.subr.bf16.mxu0 0
      %269 = vmatpush1.bf16.msra.mxu0 0
      %270 = vmatprep.subr.bf16.mxu0 0
      %271 = vmatpush1.bf16.msra.mxu0 0
      %272 = vmatprep.subr.bf16.mxu0 0
      %273 = vmatpush1.bf16.msra.mxu0 0
      %274 = vmatprep.subr.bf16.mxu0 0
      %275 = vmatpush1.bf16.msra.mxu0 0
      %276 = vmatprep.subr.bf16.mxu0 0
      %277 = vmatpush1.bf16.msra.mxu0 0
      %278 = vmatprep.subr.bf16.mxu0 0
      %279 = vmatpush1.bf16.msra.mxu0 %v249
      %280 = vmatprep.subr.bf16.mxu0 0
      %281 = vmatpush2.bf16.msra.mxu0 0
      %282 = vmatprep.subr.bf16.mxu0 0
      %283 = vmatpush2.bf16.msra.mxu0 0
      %284 = vmatprep.subr.bf16.mxu0 0
      %285 = vmatpush2.bf16.msra.mxu0 0
      %286 = vmatprep.subr.bf16.mxu0 0
      %287 = vmatpush2.bf16.msra.mxu0 0
      %288 = vmatprep.subr.bf16.mxu0 0
      %289 = vmatpush2.bf16.msra.mxu0 0
      %290 = vmatprep.subr.bf16.mxu0 0
      %291 = vmatpush2.bf16.msra.mxu0 0
      %292 = vmatprep.subr.bf16.mxu0 0
      %293 = vmatpush2.bf16.msra.mxu0 0
      %294 = vmatprep.subr.bf16.mxu0 0
      %295 = vmatpush2.bf16.msra.mxu0 0
      %296 = vmatprep.mubr.bf16.mxu0 0
      %297 = vmatmul.mubr.bf16.gmra.mxu0 %v253
      %v298 = vpop.f32.mrf.mxu0
      %v299 = vadd.f32 0.0, %v298
      %v300 = vpop.f32.mrf.mxu0
      %v301 = vpop.f32.mrf.mxu0
      %v302 = vadd.f32 0.0, %v301
      %v303 = vpop.f32.mrf.mxu0
      %304 = vmatprep.mubr.bf16.mxu0 0
      %305 = vmatmul.mubr.bf16.gmra.mxu0 %v256
      %v306 = vpop.f32.mrf.mxu0
      %v307 = vadd.f32 0.0, %v306
      %v308 = vpop.f32.mrf.mxu0
      %v309 = vpop.f32.mrf.mxu0
      %v310 = vadd.f32 0.0, %v309
      %v311 = vpop.f32.mrf.mxu0
      %312 = vmatprep.mubr.bf16.mxu0 0
      %313 = vmatmul.mubr.bf16.gmra.mxu0 %v259
      %v314 = vpop.f32.mrf.mxu0
      %v315 = vadd.f32 0.0, %v314
      %v316 = vpop.f32.mrf.mxu0
      %v317 = vpop.f32.mrf.mxu0
      %v318 = vadd.f32 0.0, %v317
      %v319 = vpop.f32.mrf.mxu0
      %320 = vmatprep.mubr.bf16.mxu0 0
      %321 = vmatmul.mubr.bf16.gmra.mxu0 %v262
      %v322 = vpop.f32.mrf.mxu0
      %v323 = vadd.f32 0.0, %v322
      %v324 = vpop.f32.mrf.mxu0
      %v325 = vpop.f32.mrf.mxu0
      %v326 = vadd.f32 0.0, %v325
      %v327 = vpop.f32.mrf.mxu0
      %328 = vdwg.mxu0
      %v329 = vld [vmem:[%s2] sm:$0xf]
      %v330 = vld [vmem:[%s2 + $0x4] sm:$0xf]
      %v333 = vunpack.c.l.b16 %v329
      %v334 = vunpack.c.l.b16 %v330
      %v335 = vpack.c.b16 %v334, %v333
      %337 = vmatprep.subr.bf16.mxu0 0
      %338 = vmatpush1.bf16.msra.mxu0 0
      %339 = vmatprep.subr.bf16.mxu0 0
      %340 = vmatpush1.bf16.msra.mxu0 0
      %341 = vmatprep.subr.bf16.mxu0 0
      %342 = vmatpush1.bf16.msra.mxu0 0
      %343 = vmatprep.subr.bf16.mxu0 0
      %344 = vmatpush1.bf16.msra.mxu0 0
      %345 = vmatprep.subr.bf16.mxu0 0
      %346 = vmatpush1.bf16.msra.mxu0 0
      %347 = vmatprep.subr.bf16.mxu0 0
      %348 = vmatpush1.bf16.msra.mxu0 0
      %349 = vmatprep.subr.bf16.mxu0 0
      %350 = vmatpush1.bf16.msra.mxu0 0
      %351 = vmatprep.subr.bf16.mxu0 0
      %352 = vmatpush1.bf16.msra.mxu0 %v335
      %353 = vmatprep.subr.bf16.mxu0 0
      %354 = vmatpush2.bf16.msra.mxu0 0
      %355 = vmatprep.subr.bf16.mxu0 0
      %356 = vmatpush2.bf16.msra.mxu0 0
      %357 = vmatprep.subr.bf16.mxu0 0
      %358 = vmatpush2.bf16.msra.mxu0 0
      %359 = vmatprep.subr.bf16.mxu0 0
      %360 = vmatpush2.bf16.msra.mxu0 0
      %361 = vmatprep.subr.bf16.mxu0 0
      %362 = vmatpush2.bf16.msra.mxu0 0
      %363 = vmatprep.subr.bf16.mxu0 0
      %364 = vmatpush2.bf16.msra.mxu0 0
      %365 = vmatprep.subr.bf16.mxu0 0
      %366 = vmatpush2.bf16.msra.mxu0 0
      %367 = vmatprep.subr.bf16.mxu0 0
      %368 = vmatpush2.bf16.msra.mxu0 0
      %369 = vmatprep.mubr.bf16.mxu0 0
      %370 = vmatmul.mubr.bf16.gmra.mxu0 %v253
      %v371 = vpop.f32.mrf.mxu0
      %v372 = vadd.f32 0.0, %v371
      %v373 = vpop.f32.mrf.mxu0
      %v374 = vpop.f32.mrf.mxu0
      %v375 = vadd.f32 0.0, %v374
      %v376 = vpop.f32.mrf.mxu0
      %377 = vmatprep.mubr.bf16.mxu0 0
      %378 = vmatmul.mubr.bf16.gmra.mxu0 %v256
      %v379 = vpop.f32.mrf.mxu0
      %v380 = vadd.f32 0.0, %v379
      %v381 = vpop.f32.mrf.mxu0
      %v382 = vpop.f32.mrf.mxu0
      %v383 = vadd.f32 0.0, %v382
      %v384 = vpop.f32.mrf.mxu0
      %385 = vmatprep.mubr.bf16.mxu0 0
      %386 = vmatmul.mubr.bf16.gmra.mxu0 %v259
      %v387 = vpop.f32.mrf.mxu0
      %v388 = vadd.f32 0.0, %v387
      %v389 = vpop.f32.mrf.mxu0
      %v390 = vpop.f32.mrf.mxu0
      %v391 = vadd.f32 0.0, %v390
      %v392 = vpop.f32.mrf.mxu0
      %393 = vmatprep.mubr.bf16.mxu0 0
      %394 = vmatmul.mubr.bf16.gmra.mxu0 %v262
      %v395 = vpop.f32.mrf.mxu0
      %v396 = vadd.f32 0.0, %v395
      %v397 = vpop.f32.mrf.mxu0
      %v398 = vpop.f32.mrf.mxu0
      %v399 = vadd.f32 0.0, %v398
      %v400 = vpop.f32.mrf.mxu0
      %401 = vdwg.mxu0
      %v402 = vmax.f32 %v299, %v372
      %v403 = vmax.f32 %v302, %v375
      %v404 = vmax.f32 %v307, %v380
      %v405 = vmax.f32 %v310, %v383
      %v406 = vmax.f32 %v315, %v388
      %v407 = vmax.f32 %v318, %v391
      %v408 = vmax.f32 %v323, %v396
      %v409 = vmax.f32 %v326, %v399
      %v410 = vpack.c.bf16 %v403, %v402
      %v411 = vpack.c.bf16 %v405, %v404
      %v412 = vpack.c.bf16 %v407, %v406
      %v413 = vpack.c.bf16 %v409, %v408
      %v418 = vunpack.c.l.b16 %v410
      %v419 = vunpack.c.h.b16 %v410
      %v420 = vunpack.c.l.b16 %v411
      %v421 = vunpack.c.h.b16 %v411
      %v422 = vunpack.c.l.b16 %v412
      %v423 = vunpack.c.h.b16 %v412
      %v424 = vunpack.c.l.b16 %v413
      %v425 = vunpack.c.h.b16 %v413
      %v426 = vpack.c.b16 %v418, %v418
      %v427 = vpack.c.b16 %v419, %v419
      %v428 = vpack.c.b16 %v420, %v420
      %v429 = vpack.c.b16 %v421, %v421
      %v430 = vpack.c.b16 %v422, %v422
      %v431 = vpack.c.b16 %v423, %v423
      %v432 = vpack.c.b16 %v424, %v424
      %v433 = vpack.c.b16 %v425, %v425
      %vm442 = vcmask 60416
      %443 = vst.msk [vmem:[%s172] sm:$0xf] %vm442, %v426
      %444 = vst.msk [vmem:[%s172 + $0x4] sm:$0xf] %vm442, %v427
      %445 = vst.msk [vmem:[%s172 + $0x8] sm:$0xf] %vm442, %v428
      %446 = vst.msk [vmem:[%s172 + $0xc] sm:$0xf] %vm442, %v429
      %447 = vst.msk [vmem:[%s172 + $0x10] sm:$0xf] %vm442, %v430
      %448 = vst.msk [vmem:[%s172 + $0x14] sm:$0xf] %vm442, %v431
      %449 = vst.msk [vmem:[%s172 + $0x18] sm:$0xf] %vm442, %v432
      %450 = vst.msk [vmem:[%s172 + $0x1c] sm:$0xf] %vm442, %v433
      %s451 = smul.u32 8, %s14
      %p452 = scmp.lt.s32.totalorder %s451, 15
      %s453 = scalar_select %p452, %s451, 15
      %s454 = smul.addr %s453, 4
      %s455 = scalar_lea.vmem %s3, %s454
      // Predicated region
      $region33: #{forward.9} parent=31 // pred_check
        %p456 = pneg %p100
      $region34: #{forward.9} parent=31 // pred_check_branch
        %458 = sbr.rel (%p456) target = $region36
      $region35: #{forward.9} parent=31 // pred_region
        %s459 = smul.u32 8, %s14
      $region36: #{forward.9} parent=31 // pred_fallthru
        _
    $region32: #{forward.9} parent=5 // pred_fallthru
      _
    %p460 = scmp.le.s32.totalorder 2, %s9
    // Predicated region
    $region37: #{forward.9} parent=5 // pred_check
      %p461 = pneg %p460
    $region38: #{forward.9} parent=5 // pred_check_branch
      %463 = sbr.rel (%p461) target = $region40
    $region39: #{forward.9} parent=5 // pred_region
      %s464 = ssub.s32 %s9, 2
      // Predicated region
      $region41: #{forward.9} parent=39 // pred_check
        %p465 = pneg %p106
      $region42: #{forward.9} parent=39 // pred_check_branch
        %467 = sbr.rel (%p465) target = $region44
      $region43: #{forward.9} parent=39 // pred_region
        %s468 = smul.u32 8, %s15
        %p469 = scmp.lt.s32.totalorder %s468, 15
        %s470 = scalar_select %p469, %s468, 15
        %s471 = smul.addr %s470, 4
        %s472 = scalar_lea.vmem %s3, %s471
      $region44: #{forward.9} parent=39 // pred_fallthru
        _
    $region40: #{forward.9} parent=5 // pred_fallthru
      _
  $region6: #{forward.9} parent=0 // loop_footer
    %s13 = sadd.s32 1, %s9
  $region7: #{forward.9} parent=0 // loop_footer_branch
    %8 = sbr.rel target = $region3
  $region8: #{forward.9} parent=0 // loop_exit
    _

// kernel: forward.13
$region0: #{forward.13}
  #allocation0 [shape = 'u32[]', space=smem, size = 0x4, offset = 0x4, fixed_abs, tag = 'smem constant byte address 0x4 - core index']
  #allocation1 [shape = 'u32[144,128]{1,0:T(1,128)}', space=vmem, size = 0x12000, scoped, tag = 'internal scratch']
  %s0 = inlined_call_operand.vmem [shape: bf16[8,16], index: 0, kind: input, shape index: {}]
  %s1 = inlined_call_operand.vmem [shape: bf16[16,128], index: 1, kind: input, shape index: {}]
  %s2 = inlined_call_operand.vmem [shape: f32[8,1], index: 2, kind: input, shape index: {}]
  %s3 = inlined_call_operand.vmem [shape: bf16[8,128], index: 3, kind: output, shape index: {}]
  %s4 = sld [smem:[#allocation0]]
  $region22: #{forward.13} parent=0
    _
  %s6 = ssub.s32 1, %s4
  %s7 = scalar_select 0, %s6, %s4
  // Predicated region
  $region2: #{forward.13} parent=0 // pred_check
    _
  $region3: #{forward.13} parent=0 // pred_check_branch
    %9 = sbr.rel (0) target = $region5
  $region4: #{forward.13} parent=0 // pred_region
    _
  $region5: #{forward.13} parent=0 // pred_fallthru
    _
  // Predicated region
  $region6: #{forward.13} parent=0 // pred_check
    _
  $region7: #{forward.13} parent=0 // pred_check_branch
    %11 = sbr.rel (0) target = $region9
  $region8: #{forward.13} parent=0 // pred_region
    _
  $region9: #{forward.13} parent=0 // pred_fallthru
    _
  // Predicated region
  $region10: #{forward.13} parent=0 // pred_check
    _
  $region11: #{forward.13} parent=0 // pred_check_branch
    %13 = sbr.rel (0) target = $region13
  $region12: #{forward.13} parent=0 // pred_region
    _
  $region13: #{forward.13} parent=0 // pred_fallthru
    _
  %v15 = vld [vmem:[%s0] sm:$0xf]
  %v16 = vld [vmem:[%s1] sm:$0xf]
  %v17 = vld [vmem:[%s1 + $0x4] sm:$0xf]
  %v18 = vld [vmem:[%s2] sm:$0xff]
  %20 = vset.pattern.permute.xlu0 0
  %21 = vperm.xlu0 %20, %v18
  %v22 = vpop.permute.xlu0 %21
  %v26 = vunpack.c.l.b16 %v16
  %v27 = vunpack.c.l.b16 %v17
  %v28 = vpack.c.b16 %v27, %v26
  %vm30 = vcmask 130048
  %v32 = vsel %vm30, %v15, 0
  %34 = vmatprep.subr.bf16.mxu0 0
  %35 = vmatpush1.bf16.msra.mxu0 0
  %36 = vmatprep.subr.bf16.mxu0 0
  %37 = vmatpush1.bf16.msra.mxu0 0
  %38 = vmatprep.subr.bf16.mxu0 0
  %39 = vmatpush1.bf16.msra.mxu0 0
  %40 = vmatprep.subr.bf16.mxu0 0
  %41 = vmatpush1.bf16.msra.mxu0 0
  %42 = vmatprep.subr.bf16.mxu0 0
  %43 = vmatpush1.bf16.msra.mxu0 0
  %44 = vmatprep.subr.bf16.mxu0 0
  %45 = vmatpush1.bf16.msra.mxu0 0
  %46 = vmatprep.subr.bf16.mxu0 0
  %47 = vmatpush1.bf16.msra.mxu0 0
  %48 = vmatprep.subr.bf16.mxu0 0
  %49 = vmatpush1.bf16.msra.mxu0 %v28
  %50 = vmatprep.subr.bf16.mxu0 0
  %51 = vmatpush2.bf16.msra.mxu0 0
  %52 = vmatprep.subr.bf16.mxu0 0
  %53 = vmatpush2.bf16.msra.mxu0 0
  %54 = vmatprep.subr.bf16.mxu0 0
  %55 = vmatpush2.bf16.msra.mxu0 0
  %56 = vmatprep.subr.bf16.mxu0 0
  %57 = vmatpush2.bf16.msra.mxu0 0
  %58 = vmatprep.subr.bf16.mxu0 0
  %59 = vmatpush2.bf16.msra.mxu0 0
  %60 = vmatprep.subr.bf16.mxu0 0
  %61 = vmatpush2.bf16.msra.mxu0 0
  %62 = vmatprep.subr.bf16.mxu0 0
  %63 = vmatpush2.bf16.msra.mxu0 0
  %64 = vmatprep.subr.bf16.mxu0 0
  %65 = vmatpush2.bf16.msra.mxu0 0
  %66 = vmatprep.mubr.bf16.mxu0 0
  %67 = vmatmul.mubr.bf16.gmra.mxu0 %v32
  %v68 = vpop.f32.mrf.mxu0
  %v69 = vadd.f32 %v22, %v68
  %v70 = vpop.f32.mrf.mxu0
  %v71 = vpop.f32.mrf.mxu0
  %v72 = vpop.f32.mrf.mxu0
  %73 = vdwg.mxu0
  %vm74 = vcmp.ge.f32.partialorder %v69, 0.0
  %v75 = vmul.f32 %v69, 0.1
  %v76 = vsel %vm74, %v69, %v75
  %v77 = vpack.c.bf16 %v76, %v76
  %78 = vst [vmem:[%s3] sm:$0xf] %v77
  // Predicated region
  $region14: #{forward.13} parent=0 // pred_check
    _
  $region15: #{forward.13} parent=0 // pred_check_branch
    %80 = sbr.rel (0) target = $region17
  $region16: #{forward.13} parent=0 // pred_region
    _
  $region17: #{forward.13} parent=0 // pred_fallthru
    _
  // Predicated region
  $region18: #{forward.13} parent=0 // pred_check
    _
  $region19: #{forward.13} parent=0 // pred_check_branch
    %82 = sbr.rel (0) target = $region21
  $region20: #{forward.13} parent=0 // pred_region
    _
  $region21: #{forward.13} parent=0 // pred_fallthru
    _

// kernel: forward.11
$region0: #{forward.11}
  #allocation0 [shape = 'u32[]', space=smem, size = 0x4, offset = 0x4, fixed_abs, tag = 'smem constant byte address 0x4 - core index']
  #allocation1 [shape = 'u32[144,128]{1,0:T(1,128)}', space=vmem, size = 0x12000, scoped, tag = 'internal scratch']
  %s0 = inlined_call_operand.vmem [shape: bf16[16,16], index: 0, kind: input, shape index: {}]
  %s1 = inlined_call_operand.vmem [shape: bf16[16,128], index: 1, kind: input, shape index: {}, may-alias: {1,3}]
  %s2 = inlined_call_operand.vmem [shape: f32[16,1], index: 2, kind: input, shape index: {}]
  %s3 = inlined_call_operand.vmem [shape: bf16[16,128], index: 3, kind: input, shape index: {}, may-alias: {1,3}]
  %s4 = inlined_call_operand.vmem [shape: bf16[16,128], index: 4, kind: output, shape index: {}]
  %s5 = sld [smem:[#allocation0]]
  $region26: #{forward.11} parent=0
    _
  %s7 = ssub.s32 1, %s5
  %s8 = scalar_select 0, %s7, %s5
  // Predicated region
  $region2: #{forward.11} parent=0 // pred_check
    _
  $region3: #{forward.11} parent=0 // pred_check_branch
    %10 = sbr.rel (0) target = $region5
  $region4: #{forward.11} parent=0 // pred_region
    _
  $region5: #{forward.11} parent=0 // pred_fallthru
    _
  // Predicated region
  $region6: #{forward.11} parent=0 // pred_check
    _
  $region7: #{forward.11} parent=0 // pred_check_branch
    %12 = sbr.rel (0) target = $region9
  $region8: #{forward.11} parent=0 // pred_region
    _
  $region9: #{forward.11} parent=0 // pred_fallthru
    _
  // Predicated region
  $region10: #{forward.11} parent=0 // pred_check
    _
  $region11: #{forward.11} parent=0 // pred_check_branch
    %14 = sbr.rel (0) target = $region13
  $region12: #{forward.11} parent=0 // pred_region
    _
  $region13: #{forward.11} parent=0 // pred_fallthru
    _
  // Predicated region
  $region14: #{forward.11} parent=0 // pred_check
    _
  $region15: #{forward.11} parent=0 // pred_check_branch
    %16 = sbr.rel (0) target = $region17
  $region16: #{forward.11} parent=0 // pred_region
    _
  $region17: #{forward.11} parent=0 // pred_fallthru
    _
  %v18 = vld [vmem:[%s0] sm:$0xf]
  %v19 = vld [vmem:[%s0 + $0x4] sm:$0xf]
  %v20 = vld [vmem:[%s1] sm:$0xf]
  %v21 = vld [vmem:[%s1 + $0x4] sm:$0xf]
  %v22 = vld [vmem:[%s2] sm:$0xff]
  %v23 = vld [vmem:[%s2 + $0x8] sm:$0xff]
  %25 = vset.pattern.permute.xlu0 0
  %26 = vperm.xlu0 %25, %v22
  %v27 = vpop.permute.xlu0 %26
  %30 = vset.pattern.permute.xlu0 0
  %31 = vperm.xlu0 %30, %v23
  %v32 = vpop.permute.xlu0 %31
  %v36 = vunpack.c.l.b16 %v18
  %v37 = vunpack.c.l.b16 %v19
  %v38 = vpack.c.b16 %v37, %v36
  %v41 = vunpack.c.l.b16 %v20
  %v42 = vunpack.c.l.b16 %v21
  %v43 = vpack.c.b16 %v42, %v41
  %vm45 = vcmask 130048
  %v47 = vsel %vm45, %v38, 0
  %49 = vmatprep.subr.bf16.mxu0 0
  %50 = vmatpush1.bf16.msra.mxu0 0
  %51 = vmatprep.subr.bf16.mxu0 0
  %52 = vmatpush1.bf16.msra.mxu0 0
  %53 = vmatprep.subr.bf16.mxu0 0
  %54 = vmatpush1.bf16.msra.mxu0 0
  %55 = vmatprep.subr.bf16.mxu0 0
  %56 = vmatpush1.bf16.msra.mxu0 0
  %57 = vmatprep.subr.bf16.mxu0 0
  %58 = vmatpush1.bf16.msra.mxu0 0
  %59 = vmatprep.subr.bf16.mxu0 0
  %60 = vmatpush1.bf16.msra.mxu0 0
  %61 = vmatprep.subr.bf16.mxu0 0
  %62 = vmatpush1.bf16.msra.mxu0 0
  %63 = vmatprep.subr.bf16.mxu0 0
  %64 = vmatpush1.bf16.msra.mxu0 %v43
  %65 = vmatprep.subr.bf16.mxu0 0
  %66 = vmatpush2.bf16.msra.mxu0 0
  %67 = vmatprep.subr.bf16.mxu0 0
  %68 = vmatpush2.bf16.msra.mxu0 0
  %69 = vmatprep.subr.bf16.mxu0 0
  %70 = vmatpush2.bf16.msra.mxu0 0
  %71 = vmatprep.subr.bf16.mxu0 0
  %72 = vmatpush2.bf16.msra.mxu0 0
  %73 = vmatprep.subr.bf16.mxu0 0
  %74 = vmatpush2.bf16.msra.mxu0 0
  %75 = vmatprep.subr.bf16.mxu0 0
  %76 = vmatpush2.bf16.msra.mxu0 0
  %77 = vmatprep.subr.bf16.mxu0 0
  %78 = vmatpush2.bf16.msra.mxu0 0
  %79 = vmatprep.subr.bf16.mxu0 0
  %80 = vmatpush2.bf16.msra.mxu0 0
  %81 = vmatprep.mubr.bf16.mxu0 0
  %82 = vmatmul.mubr.bf16.gmra.mxu0 %v47
  %v83 = vpop.f32.mrf.mxu0
  %v84 = vadd.f32 %v27, %v83
  %v85 = vpop.f32.mrf.mxu0
  %v86 = vpop.f32.mrf.mxu0
  %v87 = vadd.f32 %v32, %v86
  %v88 = vpop.f32.mrf.mxu0
  %89 = vdwg.mxu0
  %vm90 = vcmp.ge.f32.partialorder %v84, 0.0
  %vm91 = vcmp.ge.f32.partialorder %v87, 0.0
  %v92 = vmul.f32 %v84, 0.1
  %v93 = vmul.f32 %v87, 0.1
  %v94 = vsel %vm90, %v84, %v92
  %v95 = vsel %vm91, %v87, %v93
  %v96 = vld [vmem:[%s3] sm:$0xf]
  %v97 = vld [vmem:[%s3 + $0x4] sm:$0xf]
  %v98 = vunpack.c.l.bf16 %v96
  %v99 = vunpack.c.l.bf16 %v97
  %v100 = vadd.f32 %v94, %v98
  %v101 = vadd.f32 %v95, %v99
  %v102 = vpack.c.bf16 %v101, %v100
  %v104 = vunpack.c.l.b16 %v102
  %v105 = vunpack.c.h.b16 %v102
  %v106 = vpack.c.b16 %v104, %v104
  %v107 = vpack.c.b16 %v105, %v105
  %110 = vst [vmem:[%s4] sm:$0xf] %v106
  %111 = vst [vmem:[%s4 + $0x4] sm:$0xf] %v107
  // Predicated region
  $region18: #{forward.11} parent=0 // pred_check
    _
  $region19: #{forward.11} parent=0 // pred_check_branch
    %113 = sbr.rel (0) target = $region21
  $region20: #{forward.11} parent=0 // pred_region
    _
  $region21: #{forward.11} parent=0 // pred_fallthru
    _
  // Predicated region
  $region22: #{forward.11} parent=0 // pred_check
    _
  $region23: #{forward.11} parent=0 // pred_check_branch
    %115 = sbr.rel (0) target = $region25
  $region24: #{forward.11} parent=0 // pred_region
    _
  $region25: #{forward.11} parent=0 // pred_fallthru
    _

// kernel: forward.14
$region0: #{forward.14}
  #allocation0 [shape = 'u32[]', space=smem, size = 0x4, offset = 0x4, fixed_abs, tag = 'smem constant byte address 0x4 - core index']
  #allocation1 [shape = 'u32[144,128]{1,0:T(1,128)}', space=vmem, size = 0x12000, scoped, tag = 'internal scratch']
  %s0 = inlined_call_operand.vmem [shape: bf16[16,64], index: 0, kind: input, shape index: {}]
  %s1 = inlined_call_operand.vmem [shape: bf16[64,256], index: 1, kind: input, shape index: {}]
  %s2 = inlined_call_operand.vmem [shape: f32[16,1], index: 2, kind: input, shape index: {}]
  %s3 = inlined_call_operand.vmem [shape: bf16[16,256], index: 3, kind: output, shape index: {}]
  %s4 = sld [smem:[#allocation0]]
  $region123: #{forward.14} parent=0
    _
  %s6 = ssub.s32 1, %s4
  %s7 = scalar_select 0, %s6, %s4
  $region1: #{forward.14} parent=0
    #allocation2 [shape = 'u8[32768]{0}', space=vmem, size = 0x8000, scoped, tag = 'input window, operand 1']
    #allocation3 [shape = 'u8[8192]{0}', space=vmem, size = 0x2000, scoped, tag = 'output window, operand 0']
    loop: start=0, step=1, limit=4
    $region2: #{forward.14} parent=1 // loop_pre_header
      _
    $region3: #{forward.14} parent=1 // loop_header
      %s9 = sphi 0, %s13
      %p10 = scmp.ge.s32.totalorder %s9, 4
      %s17 = sphi 0, %s17
      %s19 = sphi 0, %s17
      %s20 = sphi 0, %s19
      %s34 = sphi 0, %s20
      %s40 = sphi 0, %s42
      %s43 = sphi 0, %s40
      %s44 = sphi 0, %s43
      %s60 = sphi 0, %s44
      %s64 = sphi 0, %s64
      %s66 = sphi 0, %s64
      %s67 = sphi 0, %s66
      %s81 = sphi 0, %s67
      %s87 = sphi 0, %s89
      %s90 = sphi 0, %s87
      %s91 = sphi 0, %s90
      %s107 = sphi 0, %s91
    $region4: #{forward.14} parent=1 // loop_header_branch
      %12 = sbr.rel (%p10) target = $region8
    $region5: #{forward.14} parent=1 // loop_body
      %s14 = ssub.s32 %s9, 1
      %s15 = ssub.s32 %s9, 2
      %s16 = sadd.s32 %s9, 1
      %s18 = sadd.s32 %s17, 1
      %p21 = scmp.eq.s32.totalorder %s9, 1
      %p22 = scmp.ne.s32.totalorder %s17, %s19
      %p23 = scmp.eq.s32.totalorder %s9, 0
      %p24 = por %p22, %p23
      %p25 = scmp.ne.s32.totalorder %s17, %s19
      %p26 = scmp.eq.s32.totalorder %s14, 1
      %p27 = por %p25, %p26
      %p28 = scmp.ne.s32.totalorder %s19, %s20
      %p29 = scmp.eq.s32.totalorder %s14, 0
      %p30 = por %p28, %p29
      %p31 = scmp.ne.s32.totalorder %s19, %s20
      %p32 = scmp.eq.s32.totalorder %s15, 1
      %p33 = por %p31, %p32
      %p35 = scmp.ne.s32.totalorder %s20, %s34
      %p36 = scmp.eq.s32.totalorder %s15, 0
      %p37 = por %p35, %p36
      %s38 = ssub.s32 %s9, %s16
      %p39 = scmp.eq.s32.totalorder %s38, 0
      %s41 = sadd.s32 %s40, 1
      %s42 = scalar_select %p39, %s40, %s41
      %p45 = pneg %p39
      %p46 = scmp.eq.s32.totalorder %s9, 1
      %p47 = por %p45, %p46
      %p48 = scmp.ne.s32.totalorder %s40, %s43
      %p49 = scmp.eq.s32.totalorder %s9, 0
      %p50 = por %p48, %p49
      %p51 = scmp.ne.s32.totalorder %s40, %s43
      %p52 = scmp.eq.s32.totalorder %s14, 1
      %p53 = por %p51, %p52
      %p54 = scmp.ne.s32.totalorder %s43, %s44
      %p55 = scmp.eq.s32.totalorder %s14, 0
      %p56 = por %p54, %p55
      %p57 = scmp.ne.s32.totalorder %s43, %s44
      %p58 = scmp.eq.s32.totalorder %s15, 1
      %p59 = por %p57, %p58
      %p61 = scmp.ne.s32.totalorder %s44, %s60
      %p62 = scmp.eq.s32.totalorder %s15, 0
      %p63 = por %p61, %p62
      %s65 = sadd.s32 %s64, 1
      %p68 = scmp.eq.s32.totalorder %s9, 1
      %p69 = scmp.ne.s32.totalorder %s64, %s66
      %p70 = scmp.eq.s32.totalorder %s9, 0
      %p71 = por %p69, %p70
      %p72 = scmp.ne.s32.totalorder %s64, %s66
      %p73 = scmp.eq.s32.totalorder %s14, 1
      %p74 = por %p72, %p73
      %p75 = scmp.ne.s32.totalorder %s66, %s67
      %p76 = scmp.eq.s32.totalorder %s14, 0
      %p77 = por %p75, %p76
      %p78 = scmp.ne.s32.totalorder %s66, %s67
      %p79 = scmp.eq.s32.totalorder %s15, 1
      %p80 = por %p78, %p79
      %p82 = scmp.ne.s32.totalorder %s67, %s81
      %p83 = scmp.eq.s32.totalorder %s15, 0
      %p84 = por %p82, %p83
      %s85 = ssub.s32 %s9, %s16
      %p86 = scmp.eq.s32.totalorder %s85, 0
      %s88 = sadd.s32 %s87, 1
      %s89 = scalar_select %p86, %s87, %s88
      %p92 = pneg %p86
      %p93 = scmp.eq.s32.totalorder %s9, 1
      %p94 = por %p92, %p93
      %p95 = scmp.ne.s32.totalorder %s87, %s90
      %p96 = scmp.eq.s32.totalorder %s9, 0
      %p97 = por %p95, %p96
      %p98 = scmp.ne.s32.totalorder %s87, %s90
      %p99 = scmp.eq.s32.totalorder %s14, 1
      %p100 = por %p98, %p99
      %p101 = scmp.ne.s32.totalorder %s90, %s91
      %p102 = scmp.eq.s32.totalorder %s14, 0
      %p103 = por %p101, %p102
      %p104 = scmp.ne.s32.totalorder %s90, %s91
      %p105 = scmp.eq.s32.totalorder %s15, 1
      %p106 = por %p104, %p105
      %p108 = scmp.ne.s32.totalorder %s91, %s107
      %p109 = scmp.eq.s32.totalorder %s15, 0
      %p110 = por %p108, %p109
      %p111 = scmp.le.s32.totalorder 1, %s9
      %p112 = scmp.lt.s32.totalorder %s9, 3
      %p113 = pnand %p111, %p112
      %p114 = pneg %p113
      // Predicated region
      $region9: #{forward.14} parent=5 // pred_check
        _
      $region10: #{forward.14} parent=5 // pred_check_branch
        %116 = sbr.rel (%p113) target = $region12
      $region11: #{forward.14} parent=5 // pred_region
        %s117 = ssub.s32 %s9, 1
        // Predicated region
        $region13: #{forward.14} parent=11 // pred_check
          %p118 = pneg %p30
        $region14: #{forward.14} parent=11 // pred_check_branch
          %120 = sbr.rel (%p118) target = $region16
        $region15: #{forward.14} parent=11 // pred_region
          _
        $region16: #{forward.14} parent=11 // pred_fallthru
          _
        // Predicated region
        $region17: #{forward.14} parent=11 // pred_check
          %p121 = pneg %p77
        $region18: #{forward.14} parent=11 // pred_check_branch
          %123 = sbr.rel (%p121) target = $region20
        $region19: #{forward.14} parent=11 // pred_region
          _
        $region20: #{forward.14} parent=11 // pred_fallthru
          _
      $region12: #{forward.14} parent=5 // pred_fallthru
        _
      %p124 = scmp.lt.s32.totalorder %s9, 2
      // Predicated region
      $region21: #{forward.14} parent=5 // pred_check
        %p125 = pneg %p124
      $region22: #{forward.14} parent=5 // pred_check_branch
        %127 = sbr.rel (%p125) target = $region24
      $region23: #{forward.14} parent=5 // pred_region
        // Predicated region
        $region25: #{forward.14} parent=23 // pred_check
          %p128 = pneg %p50
        $region26: #{forward.14} parent=23 // pred_check_branch
          %130 = sbr.rel (%p128) target = $region28
        $region27: #{forward.14} parent=23 // pred_region
          %s131 = sand.u32 %s40, 1
          %s132 = sand.u32 %s40, 1
          %s133 = smul.addr %s132, 32
          %s134 = scalar_lea.vmem [#allocation2], %s133
          %s135 = smul.addr %s9, 4
          %s136 = scalar_lea.vmem %s1, %s135
          // Predicated region
          $region29: #{forward.14} parent=27 // pred_check
            _
          $region30: #{forward.14} parent=27 // pred_check_branch
            %138 = sbr.rel (0) target = $region32
          $region31: #{forward.14} parent=27 // pred_region
            // Predicated region
            $region33: #{forward.14} parent=31 // pred_check
              _
            $region34: #{forward.14} parent=31 // pred_check_branch
              %140 = sbr.rel target = $region36
            $region35: #{forward.14} parent=31 // pred_region
              // Predicated region
              $region48: #{forward.14} parent=35 // pred_check
                _
              $region49: #{forward.14} parent=35 // pred_check_branch
                %170 = sbr.rel (0) target = $region51
              $region50: #{forward.14} parent=35 // pred_region
                loop: start=0, step=1, limit=1
                $region52: #{forward.14} parent=50 // loop_pre_header
                  _
                $region53: #{forward.14} parent=50 // loop_header
                  %s172 = sphi 0, %s176
                  %p173 = scmp.ge.s32.totalorder %s172, 1
                  %s177 = sphi %s136, %s136
                  %s178 = sphi %s134, %s134
                $region54: #{forward.14} parent=50 // loop_header_branch
                  %175 = sbr.rel (%p173) target = $region58
                $region55: #{forward.14} parent=50 // loop_body
                  _
                $region56: #{forward.14} parent=50 // loop_footer
                  %s176 = sadd.s32 1, %s172
                $region57: #{forward.14} parent=50 // loop_footer_branch
                  %171 = sbr.rel target = $region53
                $region58: #{forward.14} parent=50 // loop_exit
                  _
                %s180 = ssub.s32 16, 1
                loop: start=0, step=1, limit=1
                $region59: #{forward.14} parent=50 // loop_pre_header
                  _
                $region60: #{forward.14} parent=50 // loop_header
                  %s182 = sphi 0, %s186
                  %p183 = scmp.ge.s32.totalorder %s182, 1
                  %s187 = sphi %s136, %s136
                  %s188 = sphi %s134, %s134
                $region61: #{forward.14} parent=50 // loop_header_branch
                  %185 = sbr.rel (%p183) target = $region65
                $region62: #{forward.14} parent=50 // loop_body
                  %v189 = vld [vmem:[%s187] sm:%s180]
                  %190 = vst [vmem:[%s188] sm:%s180] %v189
                  %v191 = vld [vmem:[%s187 + $0x8] sm:%s180]
                  %192 = vst [vmem:[%s188 + $0x4] sm:%s180] %v191
                  %v193 = vld [vmem:[%s187 + $0x10] sm:%s180]
                  %194 = vst [vmem:[%s188 + $0x8] sm:%s180] %v193
                  %v195 = vld [vmem:[%s187 + $0x18] sm:%s180]
                  %196 = vst [vmem:[%s188 + $0xc] sm:%s180] %v195
                  %v197 = vld [vmem:[%s187 + $0x20] sm:%s180]
                  %198 = vst [vmem:[%s188 + $0x10] sm:%s180] %v197
                  %v199 = vld [vmem:[%s187 + $0x28] sm:%s180]
                  %200 = vst [vmem:[%s188 + $0x14] sm:%s180] %v199
                  %v201 = vld [vmem:[%s187 + $0x30] sm:%s180]
                  %202 = vst [vmem:[%s188 + $0x18] sm:%s180] %v201
                  %v203 = vld [vmem:[%s187 + $0x38] sm:%s180]
                  %204 = vst [vmem:[%s188 + $0x1c] sm:%s180] %v203
                $region63: #{forward.14} parent=50 // loop_footer
                  %s186 = sadd.s32 1, %s182
                $region64: #{forward.14} parent=50 // loop_footer_branch
                  %181 = sbr.rel target = $region60
                $region65: #{forward.14} parent=50 // loop_exit
                  _
              $region51: #{forward.14} parent=35 // pred_fallthru
                _
            $region36: #{forward.14} parent=31 // pred_fallthru
              _
            // Predicated region
            $region37: #{forward.14} parent=31 // pred_check
              _
            $region38: #{forward.14} parent=31 // pred_check_branch
              %142 = sbr.rel (0) target = $region40
            $region39: #{forward.14} parent=31 // pred_region
              %s144 = ssub.s32 16, 1
              loop: start=0, step=1, limit=1
              $region41: #{forward.14} parent=39 // loop_pre_header
                _
              $region42: #{forward.14} parent=39 // loop_header
                %s146 = sphi 0, %s150
                %p147 = scmp.ge.s32.totalorder %s146, 1
                %s151 = sphi %s136, %s136
                %s152 = sphi %s134, %s134
              $region43: #{forward.14} parent=39 // loop_header_branch
                %149 = sbr.rel (%p147) target = $region47
              $region44: #{forward.14} parent=39 // loop_body
                %v153 = vld [vmem:[%s151] sm:%s144]
                %154 = vst [vmem:[%s152] sm:%s144] %v153
                %v155 = vld [vmem:[%s151 + $0x8] sm:%s144]
                %156 = vst [vmem:[%s152 + $0x4] sm:%s144] %v155
                %v157 = vld [vmem:[%s151 + $0x10] sm:%s144]
                %158 = vst [vmem:[%s152 + $0x8] sm:%s144] %v157
                %v159 = vld [vmem:[%s151 + $0x18] sm:%s144]
                %160 = vst [vmem:[%s152 + $0xc] sm:%s144] %v159
                %v161 = vld [vmem:[%s151 + $0x20] sm:%s144]
                %162 = vst [vmem:[%s152 + $0x10] sm:%s144] %v161
                %v163 = vld [vmem:[%s151 + $0x28] sm:%s144]
                %164 = vst [vmem:[%s152 + $0x14] sm:%s144] %v163
                %v165 = vld [vmem:[%s151 + $0x30] sm:%s144]
                %166 = vst [vmem:[%s152 + $0x18] sm:%s144] %v165
                %v167 = vld [vmem:[%s151 + $0x38] sm:%s144]
                %168 = vst [vmem:[%s152 + $0x1c] sm:%s144] %v167
              $region45: #{forward.14} parent=39 // loop_footer
                %s150 = sadd.s32 1, %s146
              $region46: #{forward.14} parent=39 // loop_footer_branch
                %145 = sbr.rel target = $region42
              $region47: #{forward.14} parent=39 // loop_exit
                _
            $region40: #{forward.14} parent=31 // pred_fallthru
              _
          $region32: #{forward.14} parent=27 // pred_fallthru
            _
          %205 = vnop
        $region28: #{forward.14} parent=23 // pred_fallthru
          _
      $region24: #{forward.14} parent=5 // pred_fallthru
        _
      %p206 = scmp.le.s32.totalorder 1, %s9
      %p207 = scmp.lt.s32.totalorder %s9, 3
      %p208 = pnand %p206, %p207
      %p209 = pneg %p208
      // Predicated region
      $region66: #{forward.14} parent=5 // pred_check
        _
      $region67: #{forward.14} parent=5 // pred_check_branch
        %211 = sbr.rel (%p208) target = $region69
      $region68: #{forward.14} parent=5 // pred_region
        %s212 = ssub.s32 %s9, 1
        %s213 = sand.u32 %s43, 1
        %s214 = sand.u32 %s43, 1
        %s215 = smul.addr %s214, 32
        %s216 = scalar_lea.vmem [#allocation2], %s215
        // Predicated region
        $region70: #{forward.14} parent=68 // pred_check
          %p217 = pneg %p56
        $region71: #{forward.14} parent=68 // pred_check_branch
          %219 = sbr.rel (%p217) target = $region73
        $region72: #{forward.14} parent=68 // pred_region
          _
        $region73: #{forward.14} parent=68 // pred_fallthru
          _
        %p220 = pneg %p30
        %p221 = pneg %p27
        %s222 = sand.u32 %s43, 1
        %s223 = sand.u32 %s43, 1
        %s224 = smul.addr %s223, 32
        %s225 = scalar_lea.vmem [#allocation2], %s224
        %p226 = pneg %p56
        %p227 = pneg %p53
        %p228 = pneg %p77
        %p229 = pneg %p74
        %p230 = pneg %p103
        %p231 = pneg %p100
        %s232 = sand.u32 %s90, 1
        %s233 = sand.u32 %s90, 1
        %s234 = smul.addr %s233, 8
        %s235 = scalar_lea.vmem [#allocation3], %s234
        %v237 = vld [vmem:[%s0] sm:$0xf]
        %v238 = vld [vmem:[%s0 + $0x4] sm:$0xf]
        %v239 = vld [vmem:[%s216] sm:$0xf]
        %v240 = vld [vmem:[%s216 + $0x4] sm:$0xf]
        %v241 = vld [vmem:[%s216 + $0x8] sm:$0xf]
        %v242 = vld [vmem:[%s216 + $0xc] sm:$0xf]
        %v243 = vld [vmem:[%s216 + $0x10] sm:$0xf]
        %v244 = vld [vmem:[%s216 + $0x14] sm:$0xf]
        %v245 = vld [vmem:[%s216 + $0x18] sm:$0xf]
        %v246 = vld [vmem:[%s216 + $0x1c] sm:$0xf]
        %v247 = vld [vmem:[%s2] sm:$0xff]
        %v248 = vld [vmem:[%s2 + $0x8] sm:$0xff]
        %250 = vset.pattern.permute.xlu0 0
        %251 = vperm.xlu0 %250, %v247
        %v252 = vpop.permute.xlu0 %251
        %255 = vset.pattern.permute.xlu0 0
        %256 = vperm.xlu0 %255, %v248
        %v257 = vpop.permute.xlu0 %256
        %v261 = vunpack.c.l.b16 %v237
        %v262 = vunpack.c.l.b16 %v238
        %v263 = vpack.c.b16 %v262, %v261
        %v272 = vunpack.c.l.b16 %v239
        %v273 = vunpack.c.l.b16 %v240
        %v274 = vunpack.c.l.b16 %v241
        %v275 = vunpack.c.l.b16 %v242
        %v276 = vunpack.c.l.b16 %v243
        %v277 = vunpack.c.l.b16 %v244
        %v278 = vunpack.c.l.b16 %v245
        %v279 = vunpack.c.l.b16 %v246
        %v280 = vpack.c.b16 %v273, %v272
        %v281 = vpack.c.b16 %v275, %v274
        %v282 = vpack.c.b16 %v277, %v276
        %v283 = vpack.c.b16 %v279, %v278
        %vm288 = vcmask 523264
        %v290 = vsel %vm288, %v263, 0
        %292 = vmatprep.subr.bf16.mxu0 0
        %293 = vmatpush1.bf16.msra.mxu0 0
        %294 = vmatprep.subr.bf16.mxu0 0
        %295 = vmatpush1.bf16.msra.mxu0 0
        %296 = vmatprep.subr.bf16.mxu0 0
        %297 = vmatpush1.bf16.msra.mxu0 0
        %298 = vmatprep.subr.bf16.mxu0 0
        %299 = vmatpush1.bf16.msra.mxu0 0
        %300 = vmatprep.subr.bf16.mxu0 0
        %301 = vmatpush1.bf16.msra.mxu0 %v283
        %302 = vmatprep.subr.bf16.mxu0 0
        %303 = vmatpush1.bf16.msra.mxu0 %v282
        %304 = vmatprep.subr.bf16.mxu0 0
        %305 = vmatpush1.bf16.msra.mxu0 %v281
        %306 = vmatprep.subr.bf16.mxu0 0
        %307 = vmatpush1.bf16.msra.mxu0 %v280
        %308 = vmatprep.subr.bf16.mxu0 0
        %309 = vmatpush2.bf16.msra.mxu0 0
        %310 = vmatprep.subr.bf16.mxu0 0
        %311 = vmatpush2.bf16.msra.mxu0 0
        %312 = vmatprep.subr.bf16.mxu0 0
        %313 = vmatpush2.bf16.msra.mxu0 0
        %314 = vmatprep.subr.bf16.mxu0 0
        %315 = vmatpush2.bf16.msra.mxu0 0
        %316 = vmatprep.subr.bf16.mxu0 0
        %317 = vmatpush2.bf16.msra.mxu0 0
        %318 = vmatprep.subr.bf16.mxu0 0
        %319 = vmatpush2.bf16.msra.mxu0 0
        %320 = vmatprep.subr.bf16.mxu0 0
        %321 = vmatpush2.bf16.msra.mxu0 0
        %322 = vmatprep.subr.bf16.mxu0 0
        %323 = vmatpush2.bf16.msra.mxu0 0
        %324 = vmatprep.mubr.bf16.mxu0 0
        %325 = vmatmul.mubr.bf16.gmra.mxu0 %v290
        %v326 = vpop.f32.mrf.mxu0
        %v327 = vadd.f32 %v252, %v326
        %v328 = vpop.f32.mrf.mxu0
        %v329 = vpop.f32.mrf.mxu0
        %v330 = vadd.f32 %v257, %v329
        %v331 = vpop.f32.mrf.mxu0
        %332 = vdwg.mxu0
        %v333 = vpack.c.bf16 %v330, %v327
        %v335 = vunpack.c.l.b16 %v333
        %v336 = vunpack.c.h.b16 %v333
        %v337 = vpack.c.b16 %v335, %v335
        %v338 = vpack.c.b16 %v336, %v336
        %341 = vst [vmem:[%s235] sm:$0xf] %v337
        %342 = vst [vmem:[%s235 + $0x4] sm:$0xf] %v338
        %s343 = sand.u32 %s90, 1
        %s344 = sand.u32 %s90, 1
        %s345 = smul.addr %s344, 8
        %s346 = scalar_lea.vmem [#allocation3], %s345
        // Predicated region
        $region74: #{forward.14} parent=68 // pred_check
          %p347 = pneg %p100
        $region75: #{forward.14} parent=68 // pred_check_branch
          %349 = sbr.rel (%p347) target = $region77
        $region76: #{forward.14} parent=68 // pred_region
          %s350 = smul.addr %s14, 4
          %s351 = scalar_lea.vmem %s3, %s350
          // Predicated region
          $region78: #{forward.14} parent=76 // pred_check
            _
          $region79: #{forward.14} parent=76 // pred_check_branch
            %353 = sbr.rel (0) target = $region81
          $region80: #{forward.14} parent=76 // pred_region
            // Predicated region
            $region82: #{forward.14} parent=80 // pred_check
              _
            $region83: #{forward.14} parent=80 // pred_check_branch
              %355 = sbr.rel target = $region85
            $region84: #{forward.14} parent=80 // pred_region
              // Predicated region
              $region97: #{forward.14} parent=84 // pred_check
                _
              $region98: #{forward.14} parent=84 // pred_check_branch
                %373 = sbr.rel (0) target = $region100
              $region99: #{forward.14} parent=84 // pred_region
                loop: start=0, step=1, limit=1
                $region101: #{forward.14} parent=99 // loop_pre_header
                  _
                $region102: #{forward.14} parent=99 // loop_header
                  %s375 = sphi 0, %s379
                  %p376 = scmp.ge.s32.totalorder %s375, 1
                  %s380 = sphi %s346, %s346
                  %s381 = sphi %s351, %s351
                $region103: #{forward.14} parent=99 // loop_header_branch
                  %378 = sbr.rel (%p376) target = $region107
                $region104: #{forward.14} parent=99 // loop_body
                  _
                $region105: #{forward.14} parent=99 // loop_footer
                  %s379 = sadd.s32 1, %s375
                $region106: #{forward.14} parent=99 // loop_footer_branch
                  %374 = sbr.rel target = $region102
                $region107: #{forward.14} parent=99 // loop_exit
                  _
                %s383 = ssub.s32 16, 1
                loop: start=0, step=1, limit=1
                $region108: #{forward.14} parent=99 // loop_pre_header
                  _
                $region109: #{forward.14} parent=99 // loop_header
                  %s385 = sphi 0, %s389
                  %p386 = scmp.ge.s32.totalorder %s385, 1
                  %s390 = sphi %s346, %s346
                  %s391 = sphi %s351, %s351
                $region110: #{forward.14} parent=99 // loop_header_branch
                  %388 = sbr.rel (%p386) target = $region114
                $region111: #{forward.14} parent=99 // loop_body
                  %v392 = vld [vmem:[%s390] sm:%s383]
                  %393 = vst [vmem:[%s391] sm:%s383] %v392
                  %v394 = vld [vmem:[%s390 + $0x4] sm:%s383]
                  %395 = vst [vmem:[%s391 + $0x8] sm:%s383] %v394
                $region112: #{forward.14} parent=99 // loop_footer
                  %s389 = sadd.s32 1, %s385
                $region113: #{forward.14} parent=99 // loop_footer_branch
                  %384 = sbr.rel target = $region109
                $region114: #{forward.14} parent=99 // loop_exit
                  _
              $region100: #{forward.14} parent=84 // pred_fallthru
                _
            $region85: #{forward.14} parent=80 // pred_fallthru
              _
            // Predicated region
            $region86: #{forward.14} parent=80 // pred_check
              _
            $region87: #{forward.14} parent=80 // pred_check_branch
              %357 = sbr.rel (0) target = $region89
            $region88: #{forward.14} parent=80 // pred_region
              %s359 = ssub.s32 16, 1
              loop: start=0, step=1, limit=1
              $region90: #{forward.14} parent=88 // loop_pre_header
                _
              $region91: #{forward.14} parent=88 // loop_header
                %s361 = sphi 0, %s365
                %p362 = scmp.ge.s32.totalorder %s361, 1
                %s366 = sphi %s346, %s346
                %s367 = sphi %s351, %s351
              $region92: #{forward.14} parent=88 // loop_header_branch
                %364 = sbr.rel (%p362) target = $region96
              $region93: #{forward.14} parent=88 // loop_body
                %v368 = vld [vmem:[%s366] sm:%s359]
                %369 = vst [vmem:[%s367] sm:%s359] %v368
                %v370 = vld [vmem:[%s366 + $0x4] sm:%s359]
                %371 = vst [vmem:[%s367 + $0x8] sm:%s359] %v370
              $region94: #{forward.14} parent=88 // loop_footer
                %s365 = sadd.s32 1, %s361
              $region95: #{forward.14} parent=88 // loop_footer_branch
                %360 = sbr.rel target = $region91
              $region96: #{forward.14} parent=88 // loop_exit
                _
            $region89: #{forward.14} parent=80 // pred_fallthru
              _
          $region81: #{forward.14} parent=76 // pred_fallthru
            _
          %396 = vnop
        $region77: #{forward.14} parent=68 // pred_fallthru
          _
      $region69: #{forward.14} parent=5 // pred_fallthru
        _
      %p397 = scmp.le.s32.totalorder 2, %s9
      // Predicated region
      $region115: #{forward.14} parent=5 // pred_check
        %p398 = pneg %p397
      $region116: #{forward.14} parent=5 // pred_check_branch
        %400 = sbr.rel (%p398) target = $region118
      $region117: #{forward.14} parent=5 // pred_region
        %s401 = ssub.s32 %s9, 2
        // Predicated region
        $region119: #{forward.14} parent=117 // pred_check
          %p402 = pneg %p106
        $region120: #{forward.14} parent=117 // pred_check_branch
          %404 = sbr.rel (%p402) target = $region122
        $region121: #{forward.14} parent=117 // pred_region
          %s405 = sand.u32 %s91, 1
          %s406 = sand.u32 %s91, 1
          %s407 = smul.addr %s406, 8
          %s408 = scalar_lea.vmem [#allocation3], %s407
        $region122: #{forward.14} parent=117 // pred_fallthru
          _
      $region118: #{forward.14} parent=5 // pred_fallthru
        _
    $region6: #{forward.14} parent=1 // loop_footer
      %s13 = sadd.s32 1, %s9
    $region7: #{forward.14} parent=1 // loop_footer_branch
      %8 = sbr.rel target = $region3
    $region8: #{forward.14} parent=1 // loop_exit
      _

// kernel: forward.15
$region0: #{forward.15}
  #allocation0 [shape = 'u32[]', space=smem, size = 0x4, offset = 0x4, fixed_abs, tag = 'smem constant byte address 0x4 - core index']
  #allocation1 [shape = 'u32[144,128]{1,0:T(1,128)}', space=vmem, size = 0x12000, scoped, tag = 'internal scratch']
  %s0 = inlined_call_operand.vmem [shape: bf16[21,8], index: 0, kind: input, shape index: {}]
  %s1 = inlined_call_operand.vmem [shape: bf16[8,512], index: 1, kind: input, shape index: {}]
  %s2 = inlined_call_operand.vmem [shape: bf16[21,8], index: 2, kind: input, shape index: {}]
  %s3 = inlined_call_operand.vmem [shape: bf16[8,512], index: 3, kind: input, shape index: {}]
  %s4 = inlined_call_operand.vmem [shape: f32[21,1], index: 4, kind: input, shape index: {}]
  %s5 = inlined_call_operand.vmem [shape: f32[21,4], index: 5, kind: input, shape index: {}]
  %s6 = inlined_call_operand.vmem [shape: f32[21,512], index: 6, kind: output, shape index: {}]
  %s7 = sld [smem:[#allocation0]]
  $region76: #{forward.15} parent=0
    _
  %s9 = ssub.s32 1, %s7
  %s10 = scalar_select 0, %s9, %s7
  $region1: #{forward.15} parent=0
    #allocation2 [shape = 'u8[49152]{0}', space=vmem, size = 0xc000, scoped, tag = 'output window, operand 0']
    loop: start=0, step=1, limit=4
    $region2: #{forward.15} parent=1 // loop_pre_header
      _
    $region3: #{forward.15} parent=1 // loop_header
      %s12 = sphi 0, %s16
      %p13 = scmp.ge.s32.totalorder %s12, 4
      %s20 = sphi 0, %s20
      %s22 = sphi 0, %s20
      %s23 = sphi 0, %s22
      %s37 = sphi 0, %s23
      %s43 = sphi 0, %s45
      %s46 = sphi 0, %s43
      %s47 = sphi 0, %s46
      %s63 = sphi 0, %s47
      %s67 = sphi 0, %s67
      %s69 = sphi 0, %s67
      %s70 = sphi 0, %s69
      %s84 = sphi 0, %s70
      %s90 = sphi 0, %s92
      %s93 = sphi 0, %s90
      %s94 = sphi 0, %s93
      %s110 = sphi 0, %s94
      %s114 = sphi 0, %s114
      %s116 = sphi 0, %s114
      %s117 = sphi 0, %s116
      %s131 = sphi 0, %s117
      %s135 = sphi 0, %s135
      %s137 = sphi 0, %s135
      %s138 = sphi 0, %s137
      %s152 = sphi 0, %s138
      %s158 = sphi 0, %s160
      %s161 = sphi 0, %s158
      %s162 = sphi 0, %s161
      %s178 = sphi 0, %s162
    $region4: #{forward.15} parent=1 // loop_header_branch
      %15 = sbr.rel (%p13) target = $region8
    $region5: #{forward.15} parent=1 // loop_body
      %s17 = ssub.s32 %s12, 1
      %s18 = ssub.s32 %s12, 2
      %s19 = sadd.s32 %s12, 1
      %s21 = sadd.s32 %s20, 1
      %p24 = scmp.eq.s32.totalorder %s12, 1
      %p25 = scmp.ne.s32.totalorder %s20, %s22
      %p26 = scmp.eq.s32.totalorder %s12, 0
      %p27 = por %p25, %p26
      %p28 = scmp.ne.s32.totalorder %s20, %s22
      %p29 = scmp.eq.s32.totalorder %s17, 1
      %p30 = por %p28, %p29
      %p31 = scmp.ne.s32.totalorder %s22, %s23
      %p32 = scmp.eq.s32.totalorder %s17, 0
      %p33 = por %p31, %p32
      %p34 = scmp.ne.s32.totalorder %s22, %s23
      %p35 = scmp.eq.s32.totalorder %s18, 1
      %p36 = por %p34, %p35
      %p38 = scmp.ne.s32.totalorder %s23, %s37
      %p39 = scmp.eq.s32.totalorder %s18, 0
      %p40 = por %p38, %p39
      %s41 = ssub.s32 %s12, %s19
      %p42 = scmp.eq.s32.totalorder %s41, 0
      %s44 = sadd.s32 %s43, 1
      %s45 = scalar_select %p42, %s43, %s44
      %p48 = pneg %p42
      %p49 = scmp.eq.s32.totalorder %s12, 1
      %p50 = por %p48, %p49
      %p51 = scmp.ne.s32.totalorder %s43, %s46
      %p52 = scmp.eq.s32.totalorder %s12, 0
      %p53 = por %p51, %p52
      %p54 = scmp.ne.s32.totalorder %s43, %s46
      %p55 = scmp.eq.s32.totalorder %s17, 1
      %p56 = por %p54, %p55
      %p57 = scmp.ne.s32.totalorder %s46, %s47
      %p58 = scmp.eq.s32.totalorder %s17, 0
      %p59 = por %p57, %p58
      %p60 = scmp.ne.s32.totalorder %s46, %s47
      %p61 = scmp.eq.s32.totalorder %s18, 1
      %p62 = por %p60, %p61
      %p64 = scmp.ne.s32.totalorder %s47, %s63
      %p65 = scmp.eq.s32.totalorder %s18, 0
      %p66 = por %p64, %p65
      %s68 = sadd.s32 %s67, 1
      %p71 = scmp.eq.s32.totalorder %s12, 1
      %p72 = scmp.ne.s32.totalorder %s67, %s69
      %p73 = scmp.eq.s32.totalorder %s12, 0
      %p74 = por %p72, %p73
      %p75 = scmp.ne.s32.totalorder %s67, %s69
      %p76 = scmp.eq.s32.totalorder %s17, 1
      %p77 = por %p75, %p76
      %p78 = scmp.ne.s32.totalorder %s69, %s70
      %p79 = scmp.eq.s32.totalorder %s17, 0
      %p80 = por %p78, %p79
      %p81 = scmp.ne.s32.totalorder %s69, %s70
      %p82 = scmp.eq.s32.totalorder %s18, 1
      %p83 = por %p81, %p82
      %p85 = scmp.ne.s32.totalorder %s70, %s84
      %p86 = scmp.eq.s32.totalorder %s18, 0
      %p87 = por %p85, %p86
      %s88 = ssub.s32 %s12, %s19
      %p89 = scmp.eq.s32.totalorder %s88, 0
      %s91 = sadd.s32 %s90, 1
      %s92 = scalar_select %p89, %s90, %s91
      %p95 = pneg %p89
      %p96 = scmp.eq.s32.totalorder %s12, 1
      %p97 = por %p95, %p96
      %p98 = scmp.ne.s32.totalorder %s90, %s93
      %p99 = scmp.eq.s32.totalorder %s12, 0
      %p100 = por %p98, %p99
      %p101 = scmp.ne.s32.totalorder %s90, %s93
      %p102 = scmp.eq.s32.totalorder %s17, 1
      %p103 = por %p101, %p102
      %p104 = scmp.ne.s32.totalorder %s93, %s94
      %p105 = scmp.eq.s32.totalorder %s17, 0
      %p106 = por %p104, %p105
      %p107 = scmp.ne.s32.totalorder %s93, %s94
      %p108 = scmp.eq.s32.totalorder %s18, 1
      %p109 = por %p107, %p108
      %p111 = scmp.ne.s32.totalorder %s94, %s110
      %p112 = scmp.eq.s32.totalorder %s18, 0
      %p113 = por %p111, %p112
      %s115 = sadd.s32 %s114, 1
      %p118 = scmp.eq.s32.totalorder %s12, 1
      %p119 = scmp.ne.s32.totalorder %s114, %s116
      %p120 = scmp.eq.s32.totalorder %s12, 0
      %p121 = por %p119, %p120
      %p122 = scmp.ne.s32.totalorder %s114, %s116
      %p123 = scmp.eq.s32.totalorder %s17, 1
      %p124 = por %p122, %p123
      %p125 = scmp.ne.s32.totalorder %s116, %s117
      %p126 = scmp.eq.s32.totalorder %s17, 0
      %p127 = por %p125, %p126
      %p128 = scmp.ne.s32.totalorder %s116, %s117
      %p129 = scmp.eq.s32.totalorder %s18, 1
      %p130 = por %p128, %p129
      %p132 = scmp.ne.s32.totalorder %s117, %s131
      %p133 = scmp.eq.s32.totalorder %s18, 0
      %p134 = por %p132, %p133
      %s136 = sadd.s32 %s135, 1
      %p139 = scmp.eq.s32.totalorder %s12, 1
      %p140 = scmp.ne.s32.totalorder %s135, %s137
      %p141 = scmp.eq.s32.totalorder %s12, 0
      %p142 = por %p140, %p141
      %p143 = scmp.ne.s32.totalorder %s135, %s137
      %p144 = scmp.eq.s32.totalorder %s17, 1
      %p145 = por %p143, %p144
      %p146 = scmp.ne.s32.totalorder %s137, %s138
      %p147 = scmp.eq.s32.totalorder %s17, 0
      %p148 = por %p146, %p147
      %p149 = scmp.ne.s32.totalorder %s137, %s138
      %p150 = scmp.eq.s32.totalorder %s18, 1
      %p151 = por %p149, %p150
      %p153 = scmp.ne.s32.totalorder %s138, %s152
      %p154 = scmp.eq.s32.totalorder %s18, 0
      %p155 = por %p153, %p154
      %s156 = ssub.s32 %s12, %s19
      %p157 = scmp.eq.s32.totalorder %s156, 0
      %s159 = sadd.s32 %s158, 1
      %s160 = scalar_select %p157, %s158, %s159
      %p163 = pneg %p157
      %p164 = scmp.eq.s32.totalorder %s12, 1
      %p165 = por %p163, %p164
      %p166 = scmp.ne.s32.totalorder %s158, %s161
      %p167 = scmp.eq.s32.totalorder %s12, 0
      %p168 = por %p166, %p167
      %p169 = scmp.ne.s32.totalorder %s158, %s161
      %p170 = scmp.eq.s32.totalorder %s17, 1
      %p171 = por %p169, %p170
      %p172 = scmp.ne.s32.totalorder %s161, %s162
      %p173 = scmp.eq.s32.totalorder %s17, 0
      %p174 = por %p172, %p173
      %p175 = scmp.ne.s32.totalorder %s161, %s162
      %p176 = scmp.eq.s32.totalorder %s18, 1
      %p177 = por %p175, %p176
      %p179 = scmp.ne.s32.totalorder %s162, %s178
      %p180 = scmp.eq.s32.totalorder %s18, 0
      %p181 = por %p179, %p180
      %p182 = scmp.le.s32.totalorder 1, %s12
      %p183 = scmp.lt.s32.totalorder %s12, 3
      %p184 = pnand %p182, %p183
      %p185 = pneg %p184
      // Predicated region
      $region9: #{forward.15} parent=5 // pred_check
        _
      $region10: #{forward.15} parent=5 // pred_check_branch
        %187 = sbr.rel (%p184) target = $region12
      $region11: #{forward.15} parent=5 // pred_region
        %s188 = ssub.s32 %s12, 1
        // Predicated region
        $region13: #{forward.15} parent=11 // pred_check
          %p189 = pneg %p33
        $region14: #{forward.15} parent=11 // pred_check_branch
          %191 = sbr.rel (%p189) target = $region16
        $region15: #{forward.15} parent=11 // pred_region
          _
        $region16: #{forward.15} parent=11 // pred_fallthru
          _
        // Predicated region
        $region17: #{forward.15} parent=11 // pred_check
          %p192 = pneg %p80
        $region18: #{forward.15} parent=11 // pred_check_branch
          %194 = sbr.rel (%p192) target = $region20
        $region19: #{forward.15} parent=11 // pred_region
          _
        $region20: #{forward.15} parent=11 // pred_fallthru
          _
        // Predicated region
        $region21: #{forward.15} parent=11 // pred_check
          %p195 = pneg %p127
        $region22: #{forward.15} parent=11 // pred_check_branch
          %197 = sbr.rel (%p195) target = $region24
        $region23: #{forward.15} parent=11 // pred_region
          _
        $region24: #{forward.15} parent=11 // pred_fallthru
          _
        // Predicated region
        $region25: #{forward.15} parent=11 // pred_check
          %p198 = pneg %p148
        $region26: #{forward.15} parent=11 // pred_check_branch
          %200 = sbr.rel (%p198) target = $region28
        $region27: #{forward.15} parent=11 // pred_region
          _
        $region28: #{forward.15} parent=11 // pred_fallthru
          _
      $region12: #{forward.15} parent=5 // pred_fallthru
        _
      %p201 = scmp.lt.s32.totalorder %s12, 2
      // Predicated region
      $region29: #{forward.15} parent=5 // pred_check
        %p202 = pneg %p201
      $region30: #{forward.15} parent=5 // pred_check_branch
        %204 = sbr.rel (%p202) target = $region32
      $region31: #{forward.15} parent=5 // pred_region
        // Predicated region
        $region33: #{forward.15} parent=31 // pred_check
          %p205 = pneg %p53
        $region34: #{forward.15} parent=31 // pred_check_branch
          %207 = sbr.rel (%p205) target = $region36
        $region35: #{forward.15} parent=31 // pred_region
          %s208 = smul.u32 2, %s12
          %p209 = scmp.lt.s32.totalorder %s208, 3
          %s210 = scalar_select %p209, %s208, 3
          %s211 = smul.addr %s210, 4
          %s212 = scalar_lea.vmem %s1, %s211
          %s213 = smul.u32 2, %s12
        $region36: #{forward.15} parent=31 // pred_fallthru
          _
        // Predicated region
        $region37: #{forward.15} parent=31 // pred_check
          %p214 = pneg %p100
        $region38: #{forward.15} parent=31 // pred_check_branch
          %216 = sbr.rel (%p214) target = $region40
        $region39: #{forward.15} parent=31 // pred_region
          %s217 = smul.u32 2, %s12
          %p218 = scmp.lt.s32.totalorder %s217, 3
          %s219 = scalar_select %p218, %s217, 3
          %s220 = smul.addr %s219, 4
          %s221 = scalar_lea.vmem %s3, %s220
          %s222 = smul.u32 2, %s12
        $region40: #{forward.15} parent=31 // pred_fallthru
          _
      $region32: #{forward.15} parent=5 // pred_fallthru
        _
      %p223 = scmp.le.s32.totalorder 1, %s12
      %p224 = scmp.lt.s32.totalorder %s12, 3
      %p225 = pnand %p223, %p224
      %p226 = pneg %p225
      // Predicated region
      $region41: #{forward.15} parent=5 // pred_check
        _
      $region42: #{forward.15} parent=5 // pred_check_branch
        %228 = sbr.rel (%p225) target = $region44
      $region43: #{forward.15} parent=5 // pred_region
        %s229 = ssub.s32 %s12, 1
        %p230 = pneg %p33
        %p231 = pneg %p30
        %s232 = smul.u32 2, %s17
        %p233 = scmp.lt.s32.totalorder %s232, 3
        %s234 = scalar_select %p233, %s232, 3
        %s235 = smul.addr %s234, 4
        %s236 = scalar_lea.vmem %s1, %s235
        %p237 = pneg %p59
        %p238 = pneg %p56
        %p239 = pneg %p80
        %p240 = pneg %p77
        %s241 = smul.u32 2, %s17
        %p242 = scmp.lt.s32.totalorder %s241, 3
        %s243 = scalar_select %p242, %s241, 3
        %s244 = smul.addr %s243, 4
        %s245 = scalar_lea.vmem %s3, %s244
        %p246 = pneg %p106
        %p247 = pneg %p103
        %p248 = pneg %p127
        %p249 = pneg %p124
        %p250 = pneg %p148
        %p251 = pneg %p145
        %p252 = pneg %p174
        %p253 = pneg %p171
        %s254 = sand.u32 %s161, 1
        %s255 = sand.u32 %s161, 1
        %s256 = smul.addr %s255, 48
        %s257 = scalar_lea.vmem [#allocation2], %s256
        %s258 = smul.u32 2, %s17
        %p259 = scmp.lt.s32.totalorder %s258, 3
        %s260 = scalar_select %p259, %s258, 3
        %s261 = smul.addr %s260, 4
        %s262 = scalar_lea.vmem %s1, %s261
        %s263 = smul.u32 2, %s17
        %s264 = smul.u32 2, %s17
        %p265 = scmp.lt.s32.totalorder %s264, 3
        %s266 = scalar_select %p265, %s264, 3
        %s267 = smul.addr %s266, 4
        %s268 = scalar_lea.vmem %s3, %s267
        %s269 = smul.u32 2, %s17
        %s270 = smul.u32 2, %s17
        %v272 = vld [vmem:[%s0] sm:$0xf]
        %v273 = vld [vmem:[%s0 + $0x4] sm:$0xf]
        %v274 = vld [vmem:[%s0 + $0x8] sm:$0x7]
        %v275 = vld [vmem:[%s262] sm:$0xff]
        %v276 = vld [vmem:[%s2] sm:$0xf]
        %v277 = vld [vmem:[%s2 + $0x4] sm:$0xf]
        %v278 = vld [vmem:[%s2 + $0x8] sm:$0x7]
        %v279 = vld [vmem:[%s268] sm:$0xff]
        %v283 = vunpack.c.l.b16 %v276
        %v284 = vunpack.c.l.b16 %v277
        %v285 = vunpack.c.l.b16 %v278
        %v286 = vpack.c.b16 %v284, %v283
        %v287 = vpack.c.b16 %v285, %v285
        %v289 = vunpack.c.l.b16 %v279
        %v290 = vunpack.c.h.b16 %v279
        %v291 = vpack.c.b16 %v289, %v289
        %v292 = vpack.c.b16 %v290, %v290
        %vm293 = vcmask 64512
        %v295 = vsel %vm293, %v286, 0
        %v298 = vsel %vm293, %v287, 0
        %vm300 = vcmask 1043456
        %v302 = vsel %vm300, %v291, 0
        %v305 = vsel %vm300, %v292, 0
        %307 = vmatprep.subr.bf16.mxu0 0
        %308 = vmatpush1.bf16.msra.mxu0 0
        %309 = vmatprep.subr.bf16.mxu0 0
        %310 = vmatpush1.bf16.msra.mxu0 0
        %311 = vmatprep.subr.bf16.mxu0 0
        %312 = vmatpush1.bf16.msra.mxu0 0
        %313 = vmatprep.subr.bf16.mxu0 0
        %314 = vmatpush1.bf16.msra.mxu0 0
        %315 = vmatprep.subr.bf16.mxu0 0
        %316 = vmatpush1.bf16.msra.mxu0 0
        %317 = vmatprep.subr.bf16.mxu0 0
        %318 = vmatpush1.bf16.msra.mxu0 0
        %319 = vmatprep.subr.bf16.mxu0 0
        %320 = vmatpush1.bf16.msra.mxu0 0
        %321 = vmatprep.subr.bf16.mxu0 %v305
        %322 = vmatpush1.bf16.msra.mxu0 %v302
        %323 = vmatprep.subr.bf16.mxu0 0
        %324 = vmatpush2.bf16.msra.mxu0 0
        %325 = vmatprep.subr.bf16.mxu0 0
        %326 = vmatpush2.bf16.msra.mxu0 0
        %327 = vmatprep.subr.bf16.mxu0 0
        %328 = vmatpush2.bf16.msra.mxu0 0
        %329 = vmatprep.subr.bf16.mxu0 0
        %330 = vmatpush2.bf16.msra.mxu0 0
        %331 = vmatprep.subr.bf16.mxu0 0
        %332 = vmatpush2.bf16.msra.mxu0 0
        %333 = vmatprep.subr.bf16.mxu0 0
        %334 = vmatpush2.bf16.msra.mxu0 0
        %335 = vmatprep.subr.bf16.mxu0 0
        %336 = vmatpush2.bf16.msra.mxu0 0
        %337 = vmatprep.subr.bf16.mxu0 0
        %338 = vmatpush2.bf16.msra.mxu0 0
        %339 = vmatprep.mubr.bf16.mxu0 0
        %340 = vmatmul.mubr.bf16.gmra.mxu0 %v295
        %v341 = vpop.f32.mrf.mxu0
        %v342 = vadd.f32 0.0, %v341
        %v343 = vpop.f32.mrf.mxu0
        %v344 = vadd.f32 0.0, %v343
        %v345 = vpop.f32.mrf.mxu0
        %v346 = vadd.f32 0.0, %v345
        %v347 = vpop.f32.mrf.mxu0
        %v348 = vadd.f32 0.0, %v347
        %349 = vmatprep.mubr.bf16.mxu0 0
        %350 = vmatmul.mubr.bf16.gmra.mxu0 %v298
        %v351 = vpop.f32.mrf.mxu0
        %v352 = vadd.f32 0.0, %v351
        %v353 = vpop.f32.mrf.mxu0
        %v354 = vadd.f32 0.0, %v353
        %v355 = vpop.f32.mrf.mxu0
        %v356 = vpop.f32.mrf.mxu0
        %357 = vdwg.mxu0
        %v361 = vunpack.c.l.b16 %v272
        %v362 = vunpack.c.l.b16 %v273
        %v363 = vunpack.c.l.b16 %v274
        %v364 = vpack.c.b16 %v362, %v361
        %v365 = vpack.c.b16 %v363, %v363
        %v367 = vunpack.c.l.b16 %v275
        %v368 = vunpack.c.h.b16 %v275
        %v369 = vpack.c.b16 %v367, %v367
        %v370 = vpack.c.b16 %v368, %v368
        %v372 = vsel %vm293, %v364, 0
        %v375 = vsel %vm293, %v365, 0
        %v378 = vsel %vm300, %v369, 0
        %v381 = vsel %vm300, %v370, 0
        %383 = vmatprep.subr.bf16.mxu0 0
        %384 = vmatpush1.bf16.msra.mxu0 0
        %385 = vmatprep.subr.bf16.mxu0 0
        %386 = vmatpush1.bf16.msra.mxu0 0
        %387 = vmatprep.subr.bf16.mxu0 0
        %388 = vmatpush1.bf16.msra.mxu0 0
        %389 = vmatprep.subr.bf16.mxu0 0
        %390 = vmatpush1.bf16.msra.mxu0 0
        %391 = vmatprep.subr.bf16.mxu0 0
        %392 = vmatpush1.bf16.msra.mxu0 0
        %393 = vmatprep.subr.bf16.mxu0 0
        %394 = vmatpush1.bf16.msra.mxu0 0
        %395 = vmatprep.subr.bf16.mxu0 0
        %396 = vmatpush1.bf16.msra.mxu0 0
        %397 = vmatprep.subr.bf16.mxu0 %v381
        %398 = vmatpush1.bf16.msra.mxu0 %v378
        %399 = vmatprep.subr.bf16.mxu0 0
        %400 = vmatpush2.bf16.msra.mxu0 0
        %401 = vmatprep.subr.bf16.mxu0 0
        %402 = vmatpush2.bf16.msra.mxu0 0
        %403 = vmatprep.subr.bf16.mxu0 0
        %404 = vmatpush2.bf16.msra.mxu0 0
        %405 = vmatprep.subr.bf16.mxu0 0
        %406 = vmatpush2.bf16.msra.mxu0 0
        %407 = vmatprep.subr.bf16.mxu0 0
        %408 = vmatpush2.bf16.msra.mxu0 0
        %409 = vmatprep.subr.bf16.mxu0 0
        %410 = vmatpush2.bf16.msra.mxu0 0
        %411 = vmatprep.subr.bf16.mxu0 0
        %412 = vmatpush2.bf16.msra.mxu0 0
        %413 = vmatprep.subr.bf16.mxu0 0
        %414 = vmatpush2.bf16.msra.mxu0 0
        %415 = vmatprep.mubr.bf16.mxu0 0
        %416 = vmatmul.mubr.bf16.gmra.mxu0 %v372
        %v417 = vpop.f32.mrf.mxu0
        %v418 = vadd.f32 %v342, %v417
        %v419 = vpop.f32.mrf.mxu0
        %v420 = vadd.f32 %v344, %v419
        %v421 = vpop.f32.mrf.mxu0
        %v422 = vadd.f32 %v346, %v421
        %v423 = vpop.f32.mrf.mxu0
        %v424 = vadd.f32 %v348, %v423
        %425 = vmatprep.mubr.bf16.mxu0 0
        %426 = vmatmul.mubr.bf16.gmra.mxu0 %v375
        %v427 = vpop.f32.mrf.mxu0
        %v428 = vadd.f32 %v352, %v427
        %v429 = vpop.f32.mrf.mxu0
        %v430 = vadd.f32 %v354, %v429
        %v431 = vpop.f32.mrf.mxu0
        %v432 = vpop.f32.mrf.mxu0
        %433 = vdwg.mxu0
        %v434 = vld [vmem:[%s4] sm:$0xff]
        %v435 = vld [vmem:[%s4 + $0x8] sm:$0xff]
        %v436 = vld [vmem:[%s4 + $0x10] sm:$0x1f]
        %438 = vset.pattern.permute.xlu0 0
        %439 = vperm.xlu0 %438, %v434
        %v440 = vpop.permute.xlu0 %439
        %443 = vset.pattern.permute.xlu0 0
        %444 = vperm.xlu0 %443, %v435
        %v445 = vpop.permute.xlu0 %444
        %448 = vset.pattern.permute.xlu0 0
        %449 = vperm.xlu0 %448, %v436
        %v450 = vpop.permute.xlu0 %449
        %v452 = vadd.f32 %v418, %v440
        %v453 = vadd.f32 %v420, %v440
        %v454 = vadd.f32 %v422, %v445
        %v455 = vadd.f32 %v424, %v445
        %v456 = vadd.f32 %v428, %v450
        %v457 = vadd.f32 %v430, %v450
        %s458 = smul.u32 %s17, 256
        %v459 = vlaneseq
        %v460 = vand.u32 %v459, 127
        %v461 = vadd.s32 %v460, 128
        %v462 = vstv %s458
        %v463 = vadd.s32 %v462, %v460
        %v464 = vadd.s32 %v462, %v461
        %v465 = vand.u32 %v463, 255
        %v466 = vand.u32 %v464, 255
        %v467 = vand.u32 %v465, 15
        %v468 = vand.u32 %v466, 15
        %v469 = vcvt.s32.f32 %v467
        %v470 = vcvt.s32.f32 %v468
        %v471 = vshra.s32 %v465, 4
        %v472 = vshra.s32 %v466, 4
        %v473 = vcvt.s32.f32 %v471
        %v474 = vcvt.s32.f32 %v472
        %v475 = vld [vmem:[%s5] sm:$0xff]
        %v476 = vld [vmem:[%s5 + $0x8] sm:$0xff]
        %v477 = vld [vmem:[%s5 + $0x10] sm:$0x1f]
        %vm478 = vcmp.gt.f32.partialorder %v475, 0.5
        %vm479 = vcmp.gt.f32.partialorder %v476, 0.5
        %vm480 = vcmp.gt.f32.partialorder %v477, 0.5
        %v481 = vsub.f32 0.0, %v452
        %v482 = vsub.f32 0.0, %v453
        %v483 = vsub.f32 0.0, %v454
        %v484 = vsub.f32 0.0, %v455
        %v485 = vsub.f32 0.0, %v456
        %v486 = vsub.f32 0.0, %v457
        %v487 = vmul.f32 %v481, 1.442695
        %v488 = vpow.pop %v487
        %v489 = vmul.f32 %v482, 1.442695
        %v490 = vpow.pop %v489
        %v491 = vmul.f32 %v483, 1.442695
        %v492 = vpow.pop %v491
        %v493 = vmul.f32 %v484, 1.442695
        %v494 = vpow.pop %v493
        %v495 = vmul.f32 %v485, 1.442695
        %v496 = vpow.pop %v495
        %v497 = vmul.f32 %v486, 1.442695
        %v498 = vpow.pop %v497
        %v499 = vadd.f32 %v488, 1.0
        %v500 = vadd.f32 %v490, 1.0
        %v501 = vadd.f32 %v492, 1.0
        %v502 = vadd.f32 %v494, 1.0
        %v503 = vadd.f32 %v496, 1.0
        %v504 = vadd.f32 %v498, 1.0
        %v505 = vrcp.pop %v499
        %v506 = vrcp.pop %v500
        %v507 = vrcp.pop %v501
        %v508 = vrcp.pop %v502
        %v509 = vrcp.pop %v503
        %v510 = vrcp.pop %v504
        %v511 = vrcp.pop %v488
        %v512 = vrcp.pop %v490
        %v513 = vrcp.pop %v492
        %v514 = vrcp.pop %v494
        %v515 = vrcp.pop %v496
        %v516 = vrcp.pop %v498
        %v517 = vsel %vm478, 1, 0
        %v518 = vsel %vm479, 1, 0
        %v519 = vsel %vm480, 1, 0
        %520 = vset.pattern.permute.xlu0 1
        %521 = vperm.xlu0 %520, %v517
        %v522 = vpop.permute.xlu0 %521
        %523 = vset.pattern.permute.xlu0 1
        %524 = vperm.xlu0 %523, %v518
        %v525 = vpop.permute.xlu0 %524
        %526 = vset.pattern.permute.xlu0 1
        %527 = vperm.xlu0 %526, %v519
        %v528 = vpop.permute.xlu0 %527
        %vm529 = vcmp.eq.s32.totalorder %v522, 1
        %vm530 = vcmp.eq.s32.totalorder %v525, 1
        %vm531 = vcmp.eq.s32.totalorder %v528, 1
        %v532 = vsel %vm529, %v511, %v505
        %v533 = vsel %vm529, %v512, %v506
        %v534 = vsel %vm530, %v513, %v507
        %v535 = vsel %vm530, %v514, %v508
        %v536 = vsel %vm531, %v515, %v509
        %v537 = vsel %vm531, %v516, %v510
        %539 = vset.pattern.permute.xlu0 0
        %540 = vperm.xlu0 %539, %v475
        %v541 = vpop.permute.xlu0 %540
        %544 = vset.pattern.permute.xlu0 0
        %545 = vperm.xlu0 %544, %v476
        %v546 = vpop.permute.xlu0 %545
        %549 = vset.pattern.permute.xlu0 0
        %550 = vperm.xlu0 %549, %v477
        %v551 = vpop.permute.xlu0 %550
        %v553 = vmul.f32 %v532, %v541
        %v554 = vmul.f32 %v533, %v541
        %v555 = vmul.f32 %v534, %v546
        %v556 = vmul.f32 %v535, %v546
        %v557 = vmul.f32 %v536, %v551
        %v558 = vmul.f32 %v537, %v551
        %559 = vset.pattern.permute.xlu0 2
        %560 = vperm.xlu0 %559, %v475
        %v561 = vpop.permute.xlu0 %560
        %563 = vset.pattern.permute.xlu0 2
        %564 = vperm.xlu0 %563, %v476
        %v565 = vpop.permute.xlu0 %564
        %567 = vset.pattern.permute.xlu0 2
        %568 = vperm.xlu0 %567, %v477
        %v569 = vpop.permute.xlu0 %568
        %v571 = vmul.f32 %v561, %v469
        %v572 = vmul.f32 %v561, %v470
        %v573 = vmul.f32 %v565, %v469
        %v574 = vmul.f32 %v565, %v470
        %v575 = vmul.f32 %v569, %v469
        %v576 = vmul.f32 %v569, %v470
        %577 = vset.pattern.permute.xlu0 3
        %578 = vperm.xlu0 %577, %v475
        %v579 = vpop.permute.xlu0 %578
        %581 = vset.pattern.permute.xlu0 3
        %582 = vperm.xlu0 %581, %v476
        %v583 = vpop.permute.xlu0 %582
        %585 = vset.pattern.permute.xlu0 3
        %586 = vperm.xlu0 %585, %v477
        %v587 = vpop.permute.xlu0 %586
        %v589 = vmul.f32 %v579, %v473
        %v590 = vmul.f32 %v579, %v474
        %v591 = vmul.f32 %v583, %v473
        %v592 = vmul.f32 %v583, %v474
        %v593 = vmul.f32 %v587, %v473
        %v594 = vmul.f32 %v587, %v474
        %v595 = vadd.f32 %v571, %v589
        %v596 = vadd.f32 %v572, %v590
        %v597 = vadd.f32 %v573, %v591
        %v598 = vadd.f32 %v574, %v592
        %v599 = vadd.f32 %v575, %v593
        %v600 = vadd.f32 %v576, %v594
        %v601 = vadd.f32 %v553, %v595
        %v602 = vadd.f32 %v554, %v596
        %v603 = vadd.f32 %v555, %v597
        %v604 = vadd.f32 %v556, %v598
        %v605 = vadd.f32 %v557, %v599
        %v606 = vadd.f32 %v558, %v600
        %607 = vst [vmem:[%s257] sm:$0xff] %v601
        %608 = vst [vmem:[%s257 + $0x8] sm:$0xff] %v602
        %609 = vst [vmem:[%s257 + $0x10] sm:$0xff] %v603
        %610 = vst [vmem:[%s257 + $0x18] sm:$0xff] %v604
        %611 = vst [vmem:[%s257 + $0x20] sm:$0x1f] %v605
        %612 = vst [vmem:[%s257 + $0x28] sm:$0x1f] %v606
        %s613 = sand.u32 %s161, 1
        %s614 = sand.u32 %s161, 1
        %s615 = smul.addr %s614, 48
        %s616 = scalar_lea.vmem [#allocation2], %s615
        // Predicated region
        $region45: #{forward.15} parent=43 // pred_check
          %p617 = pneg %p171
        $region46: #{forward.15} parent=43 // pred_check_branch
          %619 = sbr.rel (%p617) target = $region48
        $region47: #{forward.15} parent=43 // pred_region
          %s620 = smul.u32 2, %s17
          %s621 = smul.addr %s620, 8
          %s622 = scalar_lea.vmem %s6, %s621
          // Predicated region
          $region49: #{forward.15} parent=47 // pred_check
            _
          $region50: #{forward.15} parent=47 // pred_check_branch
            %624 = sbr.rel (0) target = $region52
          $region51: #{forward.15} parent=47 // pred_region
            // Predicated region
            $region53: #{forward.15} parent=51 // pred_check
              _
            $region54: #{forward.15} parent=51 // pred_check_branch
              %626 = sbr.rel (0) target = $region56
            $region55: #{forward.15} parent=51 // pred_region
              loop: start=0, step=1, limit=1
              $region57: #{forward.15} parent=55 // loop_pre_header
                _
              $region58: #{forward.15} parent=55 // loop_header
                %s628 = sphi 0, %s632
                %p629 = scmp.ge.s32.totalorder %s628, 1
                %s633 = sphi %s616, %s616
                %s634 = sphi %s622, %s622
              $region59: #{forward.15} parent=55 // loop_header_branch
                %631 = sbr.rel (%p629) target = $region63
              $region60: #{forward.15} parent=55 // loop_body
                %v635 = vld [vmem:[%s633] sm:$0xff]
                %636 = vst [vmem:[%s634] sm:$0xff] %v635
                %v637 = vld [vmem:[%s633 + $0x8] sm:$0xff]
                %638 = vst [vmem:[%s634 + $0x8] sm:$0xff] %v637
                %v639 = vld [vmem:[%s633 + $0x10] sm:$0xff]
                %640 = vst [vmem:[%s634 + $0x20] sm:$0xff] %v639
                %v641 = vld [vmem:[%s633 + $0x18] sm:$0xff]
                %642 = vst [vmem:[%s634 + $0x28] sm:$0xff] %v641
                %v643 = vld [vmem:[%s633 + $0x20] sm:$0xff]
                %644 = vst [vmem:[%s634 + $0x40] sm:$0xff] %v643
                %v645 = vld [vmem:[%s633 + $0x28] sm:$0xff]
                %646 = vst [vmem:[%s634 + $0x48] sm:$0xff] %v645
              $region61: #{forward.15} parent=55 // loop_footer
                %s632 = sadd.s32 1, %s628
              $region62: #{forward.15} parent=55 // loop_footer_branch
                %627 = sbr.rel target = $region58
              $region63: #{forward.15} parent=55 // loop_exit
                _
            $region56: #{forward.15} parent=51 // pred_fallthru
              _
            // Predicated region
            $region64: #{forward.15} parent=51 // pred_check
              _
            $region65: #{forward.15} parent=51 // pred_check_branch
              %648 = sbr.rel target = $region67
            $region66: #{forward.15} parent=51 // pred_region
              _
            $region67: #{forward.15} parent=51 // pred_fallthru
              _
          $region52: #{forward.15} parent=47 // pred_fallthru
            _
          %649 = vnop
        $region48: #{forward.15} parent=43 // pred_fallthru
          _
      $region44: #{forward.15} parent=5 // pred_fallthru
        _
      %p650 = scmp.le.s32.totalorder 2, %s12
      // Predicated region
      $region68: #{forward.15} parent=5 // pred_check
        %p651 = pneg %p650
      $region69: #{forward.15} parent=5 // pred_check_branch
        %653 = sbr.rel (%p651) target = $region71
      $region70: #{forward.15} parent=5 // pred_region
        %s654 = ssub.s32 %s12, 2
        // Predicated region
        $region72: #{forward.15} parent=70 // pred_check
          %p655 = pneg %p177
        $region73: #{forward.15} parent=70 // pred_check_branch
          %657 = sbr.rel (%p655) target = $region75
        $region74: #{forward.15} parent=70 // pred_region
          %s658 = sand.u32 %s162, 1
          %s659 = sand.u32 %s162, 1
          %s660 = smul.addr %s659, 48
          %s661 = scalar_lea.vmem [#allocation2], %s660
        $region75: #{forward.15} parent=70 // pred_fallthru
          _
      $region71: #{forward.15} parent=5 // pred_fallthru
        _
    $region6: #{forward.15} parent=1 // loop_footer
      %s16 = sadd.s32 1, %s12
    $region7: #{forward.15} parent=1 // loop_footer_branch
      %11 = sbr.rel target = $region3
    $region8: #{forward.15} parent=1 // loop_exit
      _

// kernel: forward.12
$region0: #{forward.12}
  #allocation0 [shape = 'u32[]', space=smem, size = 0x4, offset = 0x4, fixed_abs, tag = 'smem constant byte address 0x4 - core index']
  #allocation1 [shape = 'u32[144,128]{1,0:T(1,128)}', space=vmem, size = 0x12000, scoped, tag = 'internal scratch']
  %s0 = inlined_call_operand.vmem [shape: bf16[21,16], index: 0, kind: input, shape index: {}]
  %s1 = inlined_call_operand.vmem [shape: bf16[16,128], index: 1, kind: input, shape index: {}]
  %s2 = inlined_call_operand.vmem [shape: f32[21,1], index: 2, kind: input, shape index: {}]
  %s3 = inlined_call_operand.vmem [shape: f32[21,4], index: 3, kind: input, shape index: {}]
  %s4 = inlined_call_operand.vmem [shape: f32[21,128], index: 4, kind: output, shape index: {}]
  %s5 = sld [smem:[#allocation0]]
  $region26: #{forward.12} parent=0
    _
  %s7 = ssub.s32 1, %s5
  %s8 = scalar_select 0, %s7, %s5
  // Predicated region
  $region2: #{forward.12} parent=0 // pred_check
    _
  $region3: #{forward.12} parent=0 // pred_check_branch
    %10 = sbr.rel (0) target = $region5
  $region4: #{forward.12} parent=0 // pred_region
    _
  $region5: #{forward.12} parent=0 // pred_fallthru
    _
  // Predicated region
  $region6: #{forward.12} parent=0 // pred_check
    _
  $region7: #{forward.12} parent=0 // pred_check_branch
    %12 = sbr.rel (0) target = $region9
  $region8: #{forward.12} parent=0 // pred_region
    _
  $region9: #{forward.12} parent=0 // pred_fallthru
    _
  // Predicated region
  $region10: #{forward.12} parent=0 // pred_check
    _
  $region11: #{forward.12} parent=0 // pred_check_branch
    %14 = sbr.rel (0) target = $region13
  $region12: #{forward.12} parent=0 // pred_region
    _
  $region13: #{forward.12} parent=0 // pred_fallthru
    _
  // Predicated region
  $region14: #{forward.12} parent=0 // pred_check
    _
  $region15: #{forward.12} parent=0 // pred_check_branch
    %16 = sbr.rel (0) target = $region17
  $region16: #{forward.12} parent=0 // pred_region
    _
  $region17: #{forward.12} parent=0 // pred_fallthru
    _
  %v18 = vld [vmem:[%s0] sm:$0xf]
  %v19 = vld [vmem:[%s0 + $0x4] sm:$0xf]
  %v20 = vld [vmem:[%s0 + $0x8] sm:$0x7]
  %v21 = vld [vmem:[%s1] sm:$0xf]
  %v22 = vld [vmem:[%s1 + $0x4] sm:$0xf]
  %v23 = vld [vmem:[%s2] sm:$0xff]
  %v24 = vld [vmem:[%s2 + $0x8] sm:$0xff]
  %v25 = vld [vmem:[%s2 + $0x10] sm:$0x1f]
  %27 = vset.pattern.permute.xlu0 0
  %28 = vperm.xlu0 %27, %v23
  %v29 = vpop.permute.xlu0 %28
  %32 = vset.pattern.permute.xlu0 0
  %33 = vperm.xlu0 %32, %v24
  %v34 = vpop.permute.xlu0 %33
  %37 = vset.pattern.permute.xlu0 0
  %38 = vperm.xlu0 %37, %v25
  %v39 = vpop.permute.xlu0 %38
  %v44 = vunpack.c.l.b16 %v18
  %v45 = vunpack.c.l.b16 %v19
  %v46 = vunpack.c.l.b16 %v20
  %v47 = vpack.c.b16 %v45, %v44
  %v48 = vpack.c.b16 %v46, %v46
  %v51 = vunpack.c.l.b16 %v21
  %v52 = vunpack.c.l.b16 %v22
  %v53 = vpack.c.b16 %v52, %v51
  %vm55 = vcmask 130048
  %v57 = vsel %vm55, %v47, 0
  %v60 = vsel %vm55, %v48, 0
  %62 = vmatprep.subr.bf16.mxu0 0
  %63 = vmatpush1.bf16.msra.mxu0 0
  %64 = vmatprep.subr.bf16.mxu0 0
  %65 = vmatpush1.bf16.msra.mxu0 0
  %66 = vmatprep.subr.bf16.mxu0 0
  %67 = vmatpush1.bf16.msra.mxu0 0
  %68 = vmatprep.subr.bf16.mxu0 0
  %69 = vmatpush1.bf16.msra.mxu0 0
  %70 = vmatprep.subr.bf16.mxu0 0
  %71 = vmatpush1.bf16.msra.mxu0 0
  %72 = vmatprep.subr.bf16.mxu0 0
  %73 = vmatpush1.bf16.msra.mxu0 0
  %74 = vmatprep.subr.bf16.mxu0 0
  %75 = vmatpush1.bf16.msra.mxu0 0
  %76 = vmatprep.subr.bf16.mxu0 0
  %77 = vmatpush1.bf16.msra.mxu0 %v53
  %78 = vmatprep.subr.bf16.mxu0 0
  %79 = vmatpush2.bf16.msra.mxu0 0
  %80 = vmatprep.subr.bf16.mxu0 0
  %81 = vmatpush2.bf16.msra.mxu0 0
  %82 = vmatprep.subr.bf16.mxu0 0
  %83 = vmatpush2.bf16.msra.mxu0 0
  %84 = vmatprep.subr.bf16.mxu0 0
  %85 = vmatpush2.bf16.msra.mxu0 0
  %86 = vmatprep.subr.bf16.mxu0 0
  %87 = vmatpush2.bf16.msra.mxu0 0
  %88 = vmatprep.subr.bf16.mxu0 0
  %89 = vmatpush2.bf16.msra.mxu0 0
  %90 = vmatprep.subr.bf16.mxu0 0
  %91 = vmatpush2.bf16.msra.mxu0 0
  %92 = vmatprep.subr.bf16.mxu0 0
  %93 = vmatpush2.bf16.msra.mxu0 0
  %94 = vmatprep.mubr.bf16.mxu0 0
  %95 = vmatmul.mubr.bf16.gmra.mxu0 %v57
  %v96 = vpop.f32.mrf.mxu0
  %v97 = vadd.f32 %v29, %v96
  %v98 = vpop.f32.mrf.mxu0
  %v99 = vpop.f32.mrf.mxu0
  %v100 = vadd.f32 %v34, %v99
  %v101 = vpop.f32.mrf.mxu0
  %102 = vmatprep.mubr.bf16.mxu0 0
  %103 = vmatmul.mubr.bf16.gmra.mxu0 %v60
  %v104 = vpop.f32.mrf.mxu0
  %v105 = vadd.f32 %v39, %v104
  %v106 = vpop.f32.mrf.mxu0
  %v107 = vpop.f32.mrf.mxu0
  %v108 = vpop.f32.mrf.mxu0
  %109 = vdwg.mxu0
  %s110 = smul.u32 0, 128
  %v111 = vlaneseq
  %v112 = vand.u32 %v111, 127
  %v113 = vstv %s110
  %v114 = vadd.s32 %v113, %v112
  %v115 = vand.u32 %v114, 63
  %v116 = vand.u32 %v115, 7
  %v117 = vcvt.s32.f32 %v116
  %v118 = vshra.s32 %v115, 3
  %v119 = vcvt.s32.f32 %v118
  %v120 = vld [vmem:[%s3] sm:$0xff]
  %v121 = vld [vmem:[%s3 + $0x8] sm:$0xff]
  %v122 = vld [vmem:[%s3 + $0x10] sm:$0x1f]
  %vm123 = vcmp.gt.f32.partialorder %v120, 0.5
  %vm124 = vcmp.gt.f32.partialorder %v121, 0.5
  %vm125 = vcmp.gt.f32.partialorder %v122, 0.5
  %v126 = vsub.f32 0.0, %v97
  %v127 = vsub.f32 0.0, %v100
  %v128 = vsub.f32 0.0, %v105
  %v129 = vmul.f32 %v126, 1.442695
  %v130 = vpow.pop %v129
  %v131 = vmul.f32 %v127, 1.442695
  %v132 = vpow.pop %v131
  %v133 = vmul.f32 %v128, 1.442695
  %v134 = vpow.pop %v133
  %v135 = vadd.f32 %v130, 1.0
  %v136 = vadd.f32 %v132, 1.0
  %v137 = vadd.f32 %v134, 1.0
  %v138 = vrcp.pop %v135
  %v139 = vrcp.pop %v136
  %v140 = vrcp.pop %v137
  %v141 = vrcp.pop %v130
  %v142 = vrcp.pop %v132
  %v143 = vrcp.pop %v134
  %v144 = vsel %vm123, 1, 0
  %v145 = vsel %vm124, 1, 0
  %v146 = vsel %vm125, 1, 0
  %147 = vset.pattern.permute.xlu0 1
  %148 = vperm.xlu0 %147, %v144
  %v149 = vpop.permute.xlu0 %148
  %150 = vset.pattern.permute.xlu0 1
  %151 = vperm.xlu0 %150, %v145
  %v152 = vpop.permute.xlu0 %151
  %153 = vset.pattern.permute.xlu0 1
  %154 = vperm.xlu0 %153, %v146
  %v155 = vpop.permute.xlu0 %154
  %vm156 = vcmp.eq.s32.totalorder %v149, 1
  %vm157 = vcmp.eq.s32.totalorder %v152, 1
  %vm158 = vcmp.eq.s32.totalorder %v155, 1
  %v159 = vsel %vm156, %v141, %v138
  %v160 = vsel %vm157, %v142, %v139
  %v161 = vsel %vm158, %v143, %v140
  %163 = vset.pattern.permute.xlu0 0
  %164 = vperm.xlu0 %163, %v120
  %v165 = vpop.permute.xlu0 %164
  %168 = vset.pattern.permute.xlu0 0
  %169 = vperm.xlu0 %168, %v121
  %v170 = vpop.permute.xlu0 %169
  %173 = vset.pattern.permute.xlu0 0
  %174 = vperm.xlu0 %173, %v122
  %v175 = vpop.permute.xlu0 %174
  %v177 = vmul.f32 %v159, %v165
  %v178 = vmul.f32 %v160, %v170
  %v179 = vmul.f32 %v161, %v175
  %180 = vset.pattern.permute.xlu0 2
  %181 = vperm.xlu0 %180, %v120
  %v182 = vpop.permute.xlu0 %181
  %184 = vset.pattern.permute.xlu0 2
  %185 = vperm.xlu0 %184, %v121
  %v186 = vpop.permute.xlu0 %185
  %188 = vset.pattern.permute.xlu0 2
  %189 = vperm.xlu0 %188, %v122
  %v190 = vpop.permute.xlu0 %189
  %v192 = vmul.f32 %v182, %v117
  %v193 = vmul.f32 %v186, %v117
  %v194 = vmul.f32 %v190, %v117
  %195 = vset.pattern.permute.xlu0 3
  %196 = vperm.xlu0 %195, %v120
  %v197 = vpop.permute.xlu0 %196
  %199 = vset.pattern.permute.xlu0 3
  %200 = vperm.xlu0 %199, %v121
  %v201 = vpop.permute.xlu0 %200
  %203 = vset.pattern.permute.xlu0 3
  %204 = vperm.xlu0 %203, %v122
  %v205 = vpop.permute.xlu0 %204
  %v207 = vmul.f32 %v197, %v119
  %v208 = vmul.f32 %v201, %v119
  %v209 = vmul.f32 %v205, %v119
  %v210 = vadd.f32 %v192, %v207
  %v211 = vadd.f32 %v193, %v208
  %v212 = vadd.f32 %v194, %v209
  %v213 = vmul.f32 %v210, 2.0
  %v214 = vmul.f32 %v211, 2.0
  %v215 = vmul.f32 %v212, 2.0
  %v216 = vadd.f32 %v177, %v213
  %v217 = vadd.f32 %v178, %v214
  %v218 = vadd.f32 %v179, %v215
  %219 = vst [vmem:[%s4] sm:$0xff] %v216
  %220 = vst [vmem:[%s4 + $0x8] sm:$0xff] %v217
  %221 = vst [vmem:[%s4 + $0x10] sm:$0x1f] %v218
  // Predicated region
  $region18: #{forward.12} parent=0 // pred_check
    _
  $region19: #{forward.12} parent=0 // pred_check_branch
    %223 = sbr.rel (0) target = $region21
  $region20: #{forward.12} parent=0 // pred_region
    _
  $region21: #{forward.12} parent=0 // pred_fallthru
    _
  // Predicated region
  $region22: #{forward.12} parent=0 // pred_check
    _
  $region23: #{forward.12} parent=0 // pred_check_branch
    %225 = sbr.rel (0) target = $region25
  $region24: #{forward.12} parent=0 // pred_region
    _
  $region25: #{forward.12} parent=0 // pred_fallthru
    _

</llo_original>
